<compile_context>
chip_gen: v6e
topology: v6e:2x2x1
jax: 0.10.0
libtpu: 0.0.40
codegen_flags: <defaults>
</compile_context>

<pallas_src>
import functools

import jax
import jax.numpy as jnp
from jax.experimental import pallas as pl
from jax.experimental.pallas import tpu as pltpu

EPS = 1e-5
_VMEM_LIMIT = 32 * 1024 * 1024  # conservative for v7x (64 MiB physical VMEM)


def _elu(y):
    # exp on the positive branch is selected away; post-ELU values are >= -1.
    # (exp(y)-1 kept instead of expm1 for guaranteed Mosaic lowering.)
    return jnp.where(y > 0, y, jnp.exp(y) - 1.0)


# ----------------------------- Pallas kernels --------------------------------
def _conv_tail(acc, b_ref, y_ref, sum_ref, sq_ref, sacc_ref, qacc_ref, ho, wo, cout):
    """bias -> ELU -> store raw activations -> accumulate BN statistics."""
    y = _elu(acc + b_ref[...])                      # (ho*wo, cout), f32
    y_ref[...] = y.reshape(1, ho, wo, cout)

    @pl.when(pl.program_id(0) == 0)
    def _init():
        sacc_ref[...] = jnp.zeros_like(sacc_ref)
        qacc_ref[...] = jnp.zeros_like(qacc_ref)

    sacc_ref[...] += jnp.sum(y, axis=0, keepdims=True)
    qacc_ref[...] += jnp.sum(y * y, axis=0, keepdims=True)
    sum_ref[...] = sacc_ref[...]
    sq_ref[...] = qacc_ref[...]


def _enc_conv_kernel(xs_ref, w_ref, b_ref, y_ref, sum_ref, sq_ref,
                     sacc_ref, qacc_ref, *, ho, wo, cin, cout):
    """Stride-2 3x3 conv (+bias, ELU) of one image from its space-to-depth view."""
    xs = xs_ref[...]                                # (4, ho+1, wo+1, cin), phase-major
    m = ho * wo
    acc = jnp.zeros((m, cout), jnp.float32)
    for ki in range(3):
        for kj in range(3):
            ph = (ki % 2) * 2 + (kj % 2)            # 2x2 stride phase of this tap
            ai, aj = ki // 2, kj // 2               # offset within the phase plane
            tap = xs[ph, ai:ai + ho, aj:aj + wo, :]  # (ho, wo, cin)
            acc += jnp.dot(tap.reshape(m, cin), w_ref[ki * 3 + kj],
                           preferred_element_type=jnp.float32)
    _conv_tail(acc, b_ref, y_ref, sum_ref, sq_ref, sacc_ref, qacc_ref, ho, wo, cout)


def _res_conv_kernel(yp_ref, scale_ref, shift_ref, w_ref, b_ref,
                     y_ref, sum_ref, sq_ref, sacc_ref, qacc_ref,
                     *, ho, wo, cin, cout):
    """Previous stage's BN folded into an FMA, then stride-1 3x3 conv (+bias, ELU)."""
    hp, wp = ho + 2, wo + 2
    x = yp_ref[0]                                   # (hp, wp, cin), raw, zero-padded
    # BN of the previous stage as a single FMA; keep the zero padding at the border.
    row = jax.lax.broadcasted_iota(jnp.int32, (hp, wp, cin), 0)
    col = jax.lax.broadcasted_iota(jnp.int32, (hp, wp, cin), 1)
    interior = (row >= 1) & (row <= ho) & (col >= 1) & (col <= wo)
    scale = scale_ref[...].reshape(1, 1, cin)
    shift = shift_ref[...].reshape(1, 1, cin)
    xn = jnp.where(interior, x * scale + shift, 0.0)
    m = ho * wo
    acc = jnp.zeros((m, cout), jnp.float32)
    for ki in range(3):
        for kj in range(3):
            tap = xn[ki:ki + ho, kj:kj + wo, :]     # (ho, wo, cin)
            acc += jnp.dot(tap.reshape(m, cin), w_ref[ki * 3 + kj],
                           preferred_element_type=jnp.float32)
    _conv_tail(acc, b_ref, y_ref, sum_ref, sq_ref, sacc_ref, qacc_ref, ho, wo, cout)


def _norm_residual_kernel(y3_ref, y1_ref, s3_ref, t3_ref, s1_ref, t1_ref, o_ref):
    """out = BN3(y3_raw) + BN1(y1_raw), both folded to per-channel FMAs."""
    o_ref[...] = (y3_ref[...] * s3_ref[...] + t3_ref[...]
                  + y1_ref[...] * s1_ref[...] + t1_ref[...])


# ------------------------------ pallas_call wrappers --------------------------
def _conv_stage_s2(xs2d, w_taps, bias, ho, wo):
    nb = xs2d.shape[0] // 4
    hh, wh, cin = xs2d.shape[1], xs2d.shape[2], xs2d.shape[3]
    cout = w_taps.shape[2]
    kernel = functools.partial(_enc_conv_kernel, ho=ho, wo=wo, cin=cin, cout=cout)
    return pl.pallas_call(
        kernel,
        grid=(nb,),
        in_specs=[pl.BlockSpec((4, hh, wh, cin), lambda b: (b, 0, 0, 0)),
                  pl.BlockSpec((9, cin, cout), lambda b: (0, 0, 0)),
                  pl.BlockSpec((1, cout), lambda b: (0, 0))],
        out_specs=[pl.BlockSpec((1, ho, wo, cout), lambda b: (b, 0, 0, 0)),
                   pl.BlockSpec((1, cout), lambda b: (0, 0)),
                   pl.BlockSpec((1, cout), lambda b: (0, 0))],
        out_shape=[jax.ShapeDtypeStruct((nb, ho, wo, cout), jnp.float32),
                   jax.ShapeDtypeStruct((1, cout), jnp.float32),
                   jax.ShapeDtypeStruct((1, cout), jnp.float32)],
        scratch_shapes=[pltpu.VMEM((1, cout), jnp.float32),
                        pltpu.VMEM((1, cout), jnp.float32)],
        compiler_params=pltpu.CompilerParams(
            dimension_semantics=("arbitrary",),       # stats accumulate across batch
            vmem_limit_bytes=_VMEM_LIMIT),
    )(xs2d, w_taps, bias.reshape(1, -1))


def _conv_stage_s1(y_prev_raw, scale, shift, w_taps, bias, ho, wo):
    nb, _, _, cin = y_prev_raw.shape
    cout = w_taps.shape[2]
    hp, wp = ho + 2, wo + 2
    yp = jnp.pad(y_prev_raw, ((0, 0), (1, 1), (1, 1), (0, 0)))
    kernel = functools.partial(_res_conv_kernel, ho=ho, wo=wo, cin=cin, cout=cout)
    return pl.pallas_call(
        kernel,
        grid=(nb,),
        in_specs=[pl.BlockSpec((1, hp, wp, cin), lambda b: (b, 0, 0, 0)),
                  pl.BlockSpec((1, cin), lambda b: (0, 0)),
                  pl.BlockSpec((1, cin), lambda b: (0, 0)),
                  pl.BlockSpec((9, cin, cout), lambda b: (0, 0, 0)),
                  pl.BlockSpec((1, cout), lambda b: (0, 0))],
        out_specs=[pl.BlockSpec((1, ho, wo, cout), lambda b: (b, 0, 0, 0)),
                   pl.BlockSpec((1, cout), lambda b: (0, 0)),
                   pl.BlockSpec((1, cout), lambda b: (0, 0))],
        out_shape=[jax.ShapeDtypeStruct((nb, ho, wo, cout), jnp.float32),
                   jax.ShapeDtypeStruct((1, cout), jnp.float32),
                   jax.ShapeDtypeStruct((1, cout), jnp.float32)],
        scratch_shapes=[pltpu.VMEM((1, cout), jnp.float32),
                        pltpu.VMEM((1, cout), jnp.float32)],
        compiler_params=pltpu.CompilerParams(
            dimension_semantics=("arbitrary",),
            vmem_limit_bytes=_VMEM_LIMIT),
    )(yp, scale, shift, w_taps, bias.reshape(1, -1))


def _pick_row_tile(m):
    """Largest row tile (multiple of 8, <=512) dividing M and giving >=2 grid steps."""
    for t in (512, 256, 128, 64, 32, 16, 8):
        if m % t == 0 and m // t >= 2:
            return t
    return m


def _norm_residual(y3_flat, y1_flat, scale3, shift3, scale1, shift1):
    m, c = y3_flat.shape
    tm = _pick_row_tile(m)
    return pl.pallas_call(
        _norm_residual_kernel,
        grid=(m // tm,),
        in_specs=[pl.BlockSpec((tm, c), lambda i: (i, 0)),
                  pl.BlockSpec((tm, c), lambda i: (i, 0)),
                  pl.BlockSpec((1, c), lambda i: (0, 0)),
                  pl.BlockSpec((1, c), lambda i: (0, 0)),
                  pl.BlockSpec((1, c), lambda i: (0, 0)),
                  pl.BlockSpec((1, c), lambda i: (0, 0))],
        out_specs=pl.BlockSpec((tm, c), lambda i: (i, 0)),
        out_shape=jax.ShapeDtypeStruct((m, c), jnp.float32),
        compiler_params=pltpu.CompilerParams(
            dimension_semantics=("parallel",),        # megacore-shardable on v7x
            vmem_limit_bytes=_VMEM_LIMIT),
    )(y3_flat, y1_flat, scale3, shift3, scale1, shift1)


# ------------------------------- JAX glue -------------------------------------
def _bn_scale_shift(total, total_sq, count, gamma, beta):
    """Fold training-mode BatchNorm into y*scale + shift (one-pass variance)."""
    mean = total / count
    var = jnp.maximum(total_sq / count - mean * mean, 0.0)
    scale = gamma.reshape(1, -1) * jax.lax.rsqrt(var + EPS)
    shift = beta.reshape(1, -1) - mean * scale
    return scale, shift


def _w_taps(w_oihw):
    """PyTorch (Cout, Cin, 3, 3) -> (9, Cin, Cout), tap-major."""
    cout, cin = w_oihw.shape[0], w_oihw.shape[1]
    return jnp.transpose(w_oihw, (2, 3, 1, 0)).reshape(9, cin, cout)


def _space_to_depth_padded(x_nhwc):
    """Zero-pad by 1 and fold the 2x2 stride phases into a leading phase axis."""
    xp = jnp.pad(x_nhwc, ((0, 0), (1, 1), (1, 1), (0, 0)))
    n, hp, wp, c = xp.shape
    xs = xp.reshape(n, hp // 2, 2, wp // 2, 2, c)
    xs = jnp.transpose(xs, (0, 2, 4, 1, 3, 5))       # (n, pi, pj, hh, wh, c)
    return xs.reshape(n * 4, hp // 2, wp // 2, c)    # phase = pi*2 + pj


def encoder_block_forward(x_nchw, params):
    x = jnp.transpose(x_nchw, (0, 2, 3, 1)).astype(jnp.float32)   # NHWC
    n, h, w, _ = x.shape
    assert h % 2 == 0 and w % 2 == 0
    cout = params["w_enc"].shape[0]
    ho, wo = h // 2, w // 2
    count = float(n * ho * wo)

    # stage 1: encoder conv (stride 2) + ELU; batch statistics
    y1, s1, q1 = _conv_stage_s2(_space_to_depth_padded(x), _w_taps(params["w_enc"]),
                                params["b_enc"], ho, wo)
    sc1, sh1 = _bn_scale_shift(s1, q1, count, params["g_enc"], params["beta_enc"])

    # stage 2: ResidualBlock conv1 (stride 1); stage-1 BN folded in as an FMA
    y2, s2, q2 = _conv_stage_s1(y1, sc1, sh1, _w_taps(params["w_r1"]),
                                params["b_r1"], ho, wo)
    sc2, sh2 = _bn_scale_shift(s2, q2, count, params["g_res"], params["beta_res"])

    # stage 3: ResidualBlock conv2 (stride 1); stage-2 BN folded in as an FMA
    y3, s3, q3 = _conv_stage_s1(y2, sc2, sh2, _w_taps(params["w_r2"]),
                                params["b_r2"], ho, wo)
    sc3, sh3 = _bn_scale_shift(s3, q3, count, params["g_res"], params["beta_res"])

    # final: BN(stage 3) + residual (= BN(stage 1)), tiled element-wise pass
    out = _norm_residual(y3.reshape(n * ho * wo, cout), y1.reshape(n * ho * wo, cout),
                         sc3, sh3, sc1, sh1)
    return jnp.transpose(out.reshape(n, ho, wo, cout), (0, 3, 1, 2))  # NCHW


# ------------------------- pure-JAX reference --------------------------------
def _ref_conv(x, w, b, stride):
    y = jax.lax.conv_general_dilated(
        x, w, (stride, stride), ((1, 1), (1, 1)),
        dimension_numbers=("NCHW", "OIHW", "NCHW"),
        precision=jax.lax.Precision.HIGHEST)
    return y + b[None, :, None, None]


def _ref_elu(x):
    return jnp.where(x > 0, x, jnp.exp(x) - 1.0)


def _ref_bn(x, g, bt):
    mean = jnp.mean(x, axis=(0, 2, 3), keepdims=True)
    var = jnp.mean(jnp.square(x - mean), axis=(0, 2, 3), keepdims=True)
    xhat = (x - mean) * jax.lax.rsqrt(var + EPS)
    return xhat * g[None, :, None, None] + bt[None, :, None, None]


def encoder_block_reference(x, p):
    out = _ref_bn(_ref_elu(_ref_conv(x, p["w_enc"], p["b_enc"], 2)),
                  p["g_enc"], p["beta_enc"])
    res = out
    out = _ref_bn(_ref_elu(_ref_conv(out, p["w_r1"], p["b_r1"], 1)),
                  p["g_res"], p["beta_res"])
    out = _ref_bn(_ref_elu(_ref_conv(out, p["w_r2"], p["b_r2"], 1)),
                  p["g_res"], p["beta_res"])
    return out + res


# --------------------------------- main ---------------------------------------
if __name__ == "__main__":
    key = jax.random.PRNGKey(0)
    in_channels, out_channels = 4, 8
    n, h, w = 2, 16, 16

    k = jax.random.split(key, 8)
    params = {
        "w_enc": 0.1 * jax.random.normal(k[0], (out_channels, in_channels, 3, 3), jnp.float32),
        "b_enc": 0.1 * jax.random.normal(k[1], (out_channels,), jnp.float32),
        "w_r1":  0.1 * jax.random.normal(k[2], (out_channels, out_channels, 3, 3), jnp.float32),
        "b_r1":  0.1 * jax.random.normal(k[3], (out_channels,), jnp.float32),
        "w_r2":  0.1 * jax.random.normal(k[4], (out_channels, out_channels, 3, 3), jnp.float32),
        "b_r2":  0.1 * jax.random.normal(k[5], (out_channels,), jnp.float32),
        # PyTorch BatchNorm2d default affine init: gamma=1, beta=0
        "g_enc": jnp.ones((out_channels,), jnp.float32),
        "beta_enc": jnp.zeros((out_channels,), jnp.float32),
        "g_res": jnp.ones((out_channels,), jnp.float32),
        "beta_res": jnp.zeros((out_channels,), jnp.float32),
    }

    x = jax.random.normal(k[6], (n, in_channels, h, w), jnp.float32)

    fwd = jax.jit(encoder_block_forward)
    out = jax.block_until_ready(fwd(x, params))
    ref = jax.block_until_ready(encoder_block_reference(x, params))

    assert out.shape == (n, out_channels, h // 2, w // 2), out.shape
    err = float(jnp.max(jnp.abs(out - ref)))
    assert jnp.allclose(out, ref, atol=1e-2, rtol=1e-2), err

    print("KERNEL_OK")
</pallas_src>

<mosaic_0001>
module attributes {stable_mosaic.version = 11 : i64} {
  func.func @_enc_conv_kernel(%arg0: i32, %arg1: memref<4x9x9x4xf32, #tpu.memory_space<vmem>>, %arg2: memref<9x4x8xf32, #tpu.memory_space<vmem>>, %arg3: memref<1x8xf32, #tpu.memory_space<vmem>>, %arg4: memref<1x8x8x8xf32, #tpu.memory_space<vmem>>, %arg5: memref<1x8xf32, #tpu.memory_space<vmem>>, %arg6: memref<1x8xf32, #tpu.memory_space<vmem>>, %arg7: memref<1x8xf32, #tpu.memory_space<vmem>>, %arg8: memref<1x8xf32, #tpu.memory_space<vmem>>) attributes {dimension_semantics = [#tpu.dimension_semantics<arbitrary>], iteration_bounds = array<i64: 2>, scalar_prefetch = 0 : i64, scratch_operands = 2 : i64, tpu.core_type = #tpu.core_type<tc>, window_params = [{transform_indices = @transform_0, window_bounds = array<i64: 4, 9, 9, 4>}, {pipeline_mode = #tpu.pipeline_mode<synchronous>, transform_indices = @transform_1, window_bounds = array<i64: 9, 4, 8>}, {pipeline_mode = #tpu.pipeline_mode<synchronous>, transform_indices = @transform_2, window_bounds = array<i64: 1, 8>}, {transform_indices = @transform_3, window_bounds = array<i64: 1, 8, 8, 8>}, {pipeline_mode = #tpu.pipeline_mode<synchronous>, transform_indices = @transform_4, window_bounds = array<i64: 1, 8>}, {pipeline_mode = #tpu.pipeline_mode<synchronous>, transform_indices = @transform_5, window_bounds = array<i64: 1, 8>}]} {
    %c0 = arith.constant 0 : index
    %c0_0 = arith.constant 0 : index
    %c0_1 = arith.constant 0 : index
    %c0_2 = arith.constant 0 : index
    %0 = vector.load %arg1[%c0, %c0_0, %c0_1, %c0_2] : memref<4x9x9x4xf32, #tpu.memory_space<vmem>>, vector<4x9x9x4xf32>
    %cst = arith.constant 0.000000e+00 : f32
    %1 = vector.broadcast %cst : f32 to vector<64x8xf32>
    %2 = vector.extract_strided_slice %0 {offsets = [0, 0, 0, 0], sizes = [1, 8, 8, 4], strides = [1, 1, 1, 1]} : vector<4x9x9x4xf32> to vector<1x8x8x4xf32>
    %3 = vector.shape_cast %2 : vector<1x8x8x4xf32> to vector<8x8x4xf32>
    %4 = vector.shape_cast %3 : vector<8x8x4xf32> to vector<64x4xf32>
    %c0_3 = arith.constant 0 : index
    %c0_4 = arith.constant 0 : index
    %c0_5 = arith.constant 0 : index
    %5 = vector.load %arg2[%c0_3, %c0_4, %c0_5] : memref<9x4x8xf32, #tpu.memory_space<vmem>>, vector<1x4x8xf32>
    %6 = vector.shape_cast %5 : vector<1x4x8xf32> to vector<4x8xf32>
    %cst_6 = arith.constant dense<0.000000e+00> : vector<64x8xf32>
    %7 = tpu.matmul %4, %6, %cst_6 {dimension_numbers = #tpu.dot_dimension_numbers<[1], [0], [0], [1], [0, 0, 1, 1], [], []>} : vector<64x4xf32>, vector<4x8xf32>, vector<64x8xf32> -> vector<64x8xf32>
    %8 = arith.addf %1, %7 : vector<64x8xf32>
    %9 = vector.extract_strided_slice %0 {offsets = [1, 0, 0, 0], sizes = [1, 8, 8, 4], strides = [1, 1, 1, 1]} : vector<4x9x9x4xf32> to vector<1x8x8x4xf32>
    %10 = vector.shape_cast %9 : vector<1x8x8x4xf32> to vector<8x8x4xf32>
    %11 = vector.shape_cast %10 : vector<8x8x4xf32> to vector<64x4xf32>
    %c1 = arith.constant 1 : index
    %c0_7 = arith.constant 0 : index
    %c0_8 = arith.constant 0 : index
    %12 = vector.load %arg2[%c1, %c0_7, %c0_8] : memref<9x4x8xf32, #tpu.memory_space<vmem>>, vector<1x4x8xf32>
    %13 = vector.shape_cast %12 : vector<1x4x8xf32> to vector<4x8xf32>
    %cst_9 = arith.constant dense<0.000000e+00> : vector<64x8xf32>
    %14 = tpu.matmul %11, %13, %cst_9 {dimension_numbers = #tpu.dot_dimension_numbers<[1], [0], [0], [1], [0, 0, 1, 1], [], []>} : vector<64x4xf32>, vector<4x8xf32>, vector<64x8xf32> -> vector<64x8xf32>
    %15 = arith.addf %8, %14 : vector<64x8xf32>
    %16 = vector.extract_strided_slice %0 {offsets = [0, 0, 1, 0], sizes = [1, 8, 8, 4], strides = [1, 1, 1, 1]} : vector<4x9x9x4xf32> to vector<1x8x8x4xf32>
    %17 = vector.shape_cast %16 : vector<1x8x8x4xf32> to vector<8x8x4xf32>
    %18 = vector.shape_cast %17 : vector<8x8x4xf32> to vector<64x4xf32>
    %c2 = arith.constant 2 : index
    %c0_10 = arith.constant 0 : index
    %c0_11 = arith.constant 0 : index
    %19 = vector.load %arg2[%c2, %c0_10, %c0_11] : memref<9x4x8xf32, #tpu.memory_space<vmem>>, vector<1x4x8xf32>
    %20 = vector.shape_cast %19 : vector<1x4x8xf32> to vector<4x8xf32>
    %cst_12 = arith.constant dense<0.000000e+00> : vector<64x8xf32>
    %21 = tpu.matmul %18, %20, %cst_12 {dimension_numbers = #tpu.dot_dimension_numbers<[1], [0], [0], [1], [0, 0, 1, 1], [], []>} : vector<64x4xf32>, vector<4x8xf32>, vector<64x8xf32> -> vector<64x8xf32>
    %22 = arith.addf %15, %21 : vector<64x8xf32>
    %23 = vector.extract_strided_slice %0 {offsets = [2, 0, 0, 0], sizes = [1, 8, 8, 4], strides = [1, 1, 1, 1]} : vector<4x9x9x4xf32> to vector<1x8x8x4xf32>
    %24 = vector.shape_cast %23 : vector<1x8x8x4xf32> to vector<8x8x4xf32>
    %25 = vector.shape_cast %24 : vector<8x8x4xf32> to vector<64x4xf32>
    %c3 = arith.constant 3 : index
    %c0_13 = arith.constant 0 : index
    %c0_14 = arith.constant 0 : index
    %26 = vector.load %arg2[%c3, %c0_13, %c0_14] : memref<9x4x8xf32, #tpu.memory_space<vmem>>, vector<1x4x8xf32>
    %27 = vector.shape_cast %26 : vector<1x4x8xf32> to vector<4x8xf32>
    %cst_15 = arith.constant dense<0.000000e+00> : vector<64x8xf32>
    %28 = tpu.matmul %25, %27, %cst_15 {dimension_numbers = #tpu.dot_dimension_numbers<[1], [0], [0], [1], [0, 0, 1, 1], [], []>} : vector<64x4xf32>, vector<4x8xf32>, vector<64x8xf32> -> vector<64x8xf32>
    %29 = arith.addf %22, %28 : vector<64x8xf32>
    %30 = vector.extract_strided_slice %0 {offsets = [3, 0, 0, 0], sizes = [1, 8, 8, 4], strides = [1, 1, 1, 1]} : vector<4x9x9x4xf32> to vector<1x8x8x4xf32>
    %31 = vector.shape_cast %30 : vector<1x8x8x4xf32> to vector<8x8x4xf32>
    %32 = vector.shape_cast %31 : vector<8x8x4xf32> to vector<64x4xf32>
    %c4 = arith.constant 4 : index
    %c0_16 = arith.constant 0 : index
    %c0_17 = arith.constant 0 : index
    %33 = vector.load %arg2[%c4, %c0_16, %c0_17] : memref<9x4x8xf32, #tpu.memory_space<vmem>>, vector<1x4x8xf32>
    %34 = vector.shape_cast %33 : vector<1x4x8xf32> to vector<4x8xf32>
    %cst_18 = arith.constant dense<0.000000e+00> : vector<64x8xf32>
    %35 = tpu.matmul %32, %34, %cst_18 {dimension_numbers = #tpu.dot_dimension_numbers<[1], [0], [0], [1], [0, 0, 1, 1], [], []>} : vector<64x4xf32>, vector<4x8xf32>, vector<64x8xf32> -> vector<64x8xf32>
    %36 = arith.addf %29, %35 : vector<64x8xf32>
    %37 = vector.extract_strided_slice %0 {offsets = [2, 0, 1, 0], sizes = [1, 8, 8, 4], strides = [1, 1, 1, 1]} : vector<4x9x9x4xf32> to vector<1x8x8x4xf32>
    %38 = vector.shape_cast %37 : vector<1x8x8x4xf32> to vector<8x8x4xf32>
    %39 = vector.shape_cast %38 : vector<8x8x4xf32> to vector<64x4xf32>
    %c5 = arith.constant 5 : index
    %c0_19 = arith.constant 0 : index
    %c0_20 = arith.constant 0 : index
    %40 = vector.load %arg2[%c5, %c0_19, %c0_20] : memref<9x4x8xf32, #tpu.memory_space<vmem>>, vector<1x4x8xf32>
    %41 = vector.shape_cast %40 : vector<1x4x8xf32> to vector<4x8xf32>
    %cst_21 = arith.constant dense<0.000000e+00> : vector<64x8xf32>
    %42 = tpu.matmul %39, %41, %cst_21 {dimension_numbers = #tpu.dot_dimension_numbers<[1], [0], [0], [1], [0, 0, 1, 1], [], []>} : vector<64x4xf32>, vector<4x8xf32>, vector<64x8xf32> -> vector<64x8xf32>
    %43 = arith.addf %36, %42 : vector<64x8xf32>
    %44 = vector.extract_strided_slice %0 {offsets = [0, 1, 0, 0], sizes = [1, 8, 8, 4], strides = [1, 1, 1, 1]} : vector<4x9x9x4xf32> to vector<1x8x8x4xf32>
    %45 = vector.shape_cast %44 : vector<1x8x8x4xf32> to vector<8x8x4xf32>
    %46 = vector.shape_cast %45 : vector<8x8x4xf32> to vector<64x4xf32>
    %c6 = arith.constant 6 : index
    %c0_22 = arith.constant 0 : index
    %c0_23 = arith.constant 0 : index
    %47 = vector.load %arg2[%c6, %c0_22, %c0_23] : memref<9x4x8xf32, #tpu.memory_space<vmem>>, vector<1x4x8xf32>
    %48 = vector.shape_cast %47 : vector<1x4x8xf32> to vector<4x8xf32>
    %cst_24 = arith.constant dense<0.000000e+00> : vector<64x8xf32>
    %49 = tpu.matmul %46, %48, %cst_24 {dimension_numbers = #tpu.dot_dimension_numbers<[1], [0], [0], [1], [0, 0, 1, 1], [], []>} : vector<64x4xf32>, vector<4x8xf32>, vector<64x8xf32> -> vector<64x8xf32>
    %50 = arith.addf %43, %49 : vector<64x8xf32>
    %51 = vector.extract_strided_slice %0 {offsets = [1, 1, 0, 0], sizes = [1, 8, 8, 4], strides = [1, 1, 1, 1]} : vector<4x9x9x4xf32> to vector<1x8x8x4xf32>
    %52 = vector.shape_cast %51 : vector<1x8x8x4xf32> to vector<8x8x4xf32>
    %53 = vector.shape_cast %52 : vector<8x8x4xf32> to vector<64x4xf32>
    %c7 = arith.constant 7 : index
    %c0_25 = arith.constant 0 : index
    %c0_26 = arith.constant 0 : index
    %54 = vector.load %arg2[%c7, %c0_25, %c0_26] : memref<9x4x8xf32, #tpu.memory_space<vmem>>, vector<1x4x8xf32>
    %55 = vector.shape_cast %54 : vector<1x4x8xf32> to vector<4x8xf32>
    %cst_27 = arith.constant dense<0.000000e+00> : vector<64x8xf32>
    %56 = tpu.matmul %53, %55, %cst_27 {dimension_numbers = #tpu.dot_dimension_numbers<[1], [0], [0], [1], [0, 0, 1, 1], [], []>} : vector<64x4xf32>, vector<4x8xf32>, vector<64x8xf32> -> vector<64x8xf32>
    %57 = arith.addf %50, %56 : vector<64x8xf32>
    %58 = vector.extract_strided_slice %0 {offsets = [0, 1, 1, 0], sizes = [1, 8, 8, 4], strides = [1, 1, 1, 1]} : vector<4x9x9x4xf32> to vector<1x8x8x4xf32>
    %59 = vector.shape_cast %58 : vector<1x8x8x4xf32> to vector<8x8x4xf32>
    %60 = vector.shape_cast %59 : vector<8x8x4xf32> to vector<64x4xf32>
    %c8 = arith.constant 8 : index
    %c0_28 = arith.constant 0 : index
    %c0_29 = arith.constant 0 : index
    %61 = vector.load %arg2[%c8, %c0_28, %c0_29] : memref<9x4x8xf32, #tpu.memory_space<vmem>>, vector<1x4x8xf32>
    %62 = vector.shape_cast %61 : vector<1x4x8xf32> to vector<4x8xf32>
    %cst_30 = arith.constant dense<0.000000e+00> : vector<64x8xf32>
    %63 = tpu.matmul %60, %62, %cst_30 {dimension_numbers = #tpu.dot_dimension_numbers<[1], [0], [0], [1], [0, 0, 1, 1], [], []>} : vector<64x4xf32>, vector<4x8xf32>, vector<64x8xf32> -> vector<64x8xf32>
    %64 = arith.addf %57, %63 : vector<64x8xf32>
    %c0_31 = arith.constant 0 : index
    %c0_32 = arith.constant 0 : index
    %65 = vector.load %arg3[%c0_31, %c0_32] : memref<1x8xf32, #tpu.memory_space<vmem>>, vector<1x8xf32>
    %66 = vector.broadcast %65 : vector<1x8xf32> to vector<64x8xf32>
    %67 = arith.addf %64, %66 : vector<64x8xf32>
    %cst_33 = arith.constant 0.000000e+00 : f32
    %68 = vector.broadcast %cst_33 : f32 to vector<64x8xf32>
    %69 = arith.cmpf ogt, %67, %68 : vector<64x8xf32>
    %70 = math.exp %67 : vector<64x8xf32>
    %cst_34 = arith.constant 1.000000e+00 : f32
    %71 = vector.broadcast %cst_34 : f32 to vector<64x8xf32>
    %72 = arith.subf %70, %71 : vector<64x8xf32>
    %73 = arith.select %69, %67, %72 : vector<64x8xi1>, vector<64x8xf32>
    %74 = vector.shape_cast %73 : vector<64x8xf32> to vector<1x8x8x8xf32>
    %c0_35 = arith.constant 0 : index
    %c0_36 = arith.constant 0 : index
    %c0_37 = arith.constant 0 : index
    %c0_38 = arith.constant 0 : index
    %75 = vector.load %arg4[%c0_35, %c0_36, %c0_37, %c0_38] : memref<1x8x8x8xf32, #tpu.memory_space<vmem>>, vector<1x8x8x8xf32>
    tpu.vector_store %arg4[%c0_35, %c0_36, %c0_37, %c0_38], %74 {strides = array<i32>} : memref<1x8x8x8xf32, #tpu.memory_space<vmem>>, vector<1x8x8x8xf32>,
    %c0_i32 = arith.constant 0 : i32
    %76 = arith.cmpi eq, %arg0, %c0_i32 : i32
    %77 = arith.extui %76 : i1 to i32
    %c0_i32_39 = arith.constant 0 : i32
    %78 = arith.cmpi ne, %77, %c0_i32_39 : i32
    scf.if %78 {
      %cst_58 = arith.constant 0.000000e+00 : f32
      %94 = vector.broadcast %cst_58 : f32 to vector<1x8xf32>
      %c0_59 = arith.constant 0 : index
      %c0_60 = arith.constant 0 : index
      %95 = vector.load %arg7[%c0_59, %c0_60] : memref<1x8xf32, #tpu.memory_space<vmem>>, vector<1x8xf32>
      tpu.vector_store %arg7[%c0_59, %c0_60], %94 {strides = array<i32>} : memref<1x8xf32, #tpu.memory_space<vmem>>, vector<1x8xf32>,
      %cst_61 = arith.constant 0.000000e+00 : f32
      %96 = vector.broadcast %cst_61 : f32 to vector<1x8xf32>
      %c0_62 = arith.constant 0 : index
      %c0_63 = arith.constant 0 : index
      %97 = vector.load %arg8[%c0_62, %c0_63] : memref<1x8xf32, #tpu.memory_space<vmem>>, vector<1x8xf32>
      tpu.vector_store %arg8[%c0_62, %c0_63], %96 {strides = array<i32>} : memref<1x8xf32, #tpu.memory_space<vmem>>, vector<1x8xf32>,
    } else {
    }
    %c0_40 = arith.constant 0 : index
    %c0_41 = arith.constant 0 : index
    %79 = vector.load %arg7[%c0_40, %c0_41] : memref<1x8xf32, #tpu.memory_space<vmem>>, vector<1x8xf32>
    %cst_42 = arith.constant dense<0.000000e+00> : vector<8xf32>
    %80 = vector.multi_reduction <add>, %73, %cst_42 [0] : vector<64x8xf32> to vector<8xf32>
    %81 = vector.shape_cast %80 : vector<8xf32> to vector<1x8xf32>
    %82 = arith.addf %79, %81 : vector<1x8xf32>
    %c0_43 = arith.constant 0 : index
    %c0_44 = arith.constant 0 : index
    %83 = vector.load %arg7[%c0_43, %c0_44] : memref<1x8xf32, #tpu.memory_space<vmem>>, vector<1x8xf32>
    tpu.vector_store %arg7[%c0_43, %c0_44], %82 {strides = array<i32>} : memref<1x8xf32, #tpu.memory_space<vmem>>, vector<1x8xf32>,
    %c0_45 = arith.constant 0 : index
    %c0_46 = arith.constant 0 : index
    %84 = vector.load %arg8[%c0_45, %c0_46] : memref<1x8xf32, #tpu.memory_space<vmem>>, vector<1x8xf32>
    %85 = arith.mulf %73, %73 : vector<64x8xf32>
    %cst_47 = arith.constant dense<0.000000e+00> : vector<8xf32>
    %86 = vector.multi_reduction <add>, %85, %cst_47 [0] : vector<64x8xf32> to vector<8xf32>
    %87 = vector.shape_cast %86 : vector<8xf32> to vector<1x8xf32>
    %88 = arith.addf %84, %87 : vector<1x8xf32>
    %c0_48 = arith.constant 0 : index
    %c0_49 = arith.constant 0 : index
    %89 = vector.load %arg8[%c0_48, %c0_49] : memref<1x8xf32, #tpu.memory_space<vmem>>, vector<1x8xf32>
    tpu.vector_store %arg8[%c0_48, %c0_49], %88 {strides = array<i32>} : memref<1x8xf32, #tpu.memory_space<vmem>>, vector<1x8xf32>,
    %c0_50 = arith.constant 0 : index
    %c0_51 = arith.constant 0 : index
    %90 = vector.load %arg7[%c0_50, %c0_51] : memref<1x8xf32, #tpu.memory_space<vmem>>, vector<1x8xf32>
    %c0_52 = arith.constant 0 : index
    %c0_53 = arith.constant 0 : index
    %91 = vector.load %arg5[%c0_52, %c0_53] : memref<1x8xf32, #tpu.memory_space<vmem>>, vector<1x8xf32>
    tpu.vector_store %arg5[%c0_52, %c0_53], %90 {strides = array<i32>} : memref<1x8xf32, #tpu.memory_space<vmem>>, vector<1x8xf32>,
    %c0_54 = arith.constant 0 : index
    %c0_55 = arith.constant 0 : index
    %92 = vector.load %arg8[%c0_54, %c0_55] : memref<1x8xf32, #tpu.memory_space<vmem>>, vector<1x8xf32>
    %c0_56 = arith.constant 0 : index
    %c0_57 = arith.constant 0 : index
    %93 = vector.load %arg6[%c0_56, %c0_57] : memref<1x8xf32, #tpu.memory_space<vmem>>, vector<1x8xf32>
    tpu.vector_store %arg6[%c0_56, %c0_57], %92 {strides = array<i32>} : memref<1x8xf32, #tpu.memory_space<vmem>>, vector<1x8xf32>,
    return
  }
  func.func @transform_0(%arg0: i32) -> (i32, i32, i32, i32) {
    %c0_i32 = arith.constant 0 : i32
    %c0_i32_0 = arith.constant 0 : i32
    %c0_i32_1 = arith.constant 0 : i32
    %c0_i32_2 = arith.constant 0 : i32
    return %arg0, %c0_i32, %c0_i32_0, %c0_i32_1 : i32, i32, i32, i32
  }
  func.func @transform_1(%arg0: i32) -> (i32, i32, i32) {
    %c0_i32 = arith.constant 0 : i32
    %c0_i32_0 = arith.constant 0 : i32
    %c0_i32_1 = arith.constant 0 : i32
    %c0_i32_2 = arith.constant 0 : i32
    return %c0_i32, %c0_i32_0, %c0_i32_1 : i32, i32, i32
  }
  func.func @transform_2(%arg0: i32) -> (i32, i32) {
    %c0_i32 = arith.constant 0 : i32
    %c0_i32_0 = arith.constant 0 : i32
    %c0_i32_1 = arith.constant 0 : i32
    return %c0_i32, %c0_i32_0 : i32, i32
  }
  func.func @transform_3(%arg0: i32) -> (i32, i32, i32, i32) {
    %c0_i32 = arith.constant 0 : i32
    %c0_i32_0 = arith.constant 0 : i32
    %c0_i32_1 = arith.constant 0 : i32
    %c0_i32_2 = arith.constant 0 : i32
    return %arg0, %c0_i32, %c0_i32_0, %c0_i32_1 : i32, i32, i32, i32
  }
  func.func @transform_4(%arg0: i32) -> (i32, i32) {
    %c0_i32 = arith.constant 0 : i32
    %c0_i32_0 = arith.constant 0 : i32
    %c0_i32_1 = arith.constant 0 : i32
    return %c0_i32, %c0_i32_0 : i32, i32
  }
  func.func @transform_5(%arg0: i32) -> (i32, i32) {
    %c0_i32 = arith.constant 0 : i32
    %c0_i32_0 = arith.constant 0 : i32
    %c0_i32_1 = arith.constant 0 : i32
    return %c0_i32, %c0_i32_0 : i32, i32
  }
}

module attributes {stable_mosaic.version = 11 : i64} {
  func.func @_res_conv_kernel(%arg0: i32, %arg1: memref<1x10x10x8xf32, #tpu.memory_space<vmem>>, %arg2: memref<1x8xf32, #tpu.memory_space<vmem>>, %arg3: memref<1x8xf32, #tpu.memory_space<vmem>>, %arg4: memref<9x8x8xf32, #tpu.memory_space<vmem>>, %arg5: memref<1x8xf32, #tpu.memory_space<vmem>>, %arg6: memref<1x8x8x8xf32, #tpu.memory_space<vmem>>, %arg7: memref<1x8xf32, #tpu.memory_space<vmem>>, %arg8: memref<1x8xf32, #tpu.memory_space<vmem>>, %arg9: memref<1x8xf32, #tpu.memory_space<vmem>>, %arg10: memref<1x8xf32, #tpu.memory_space<vmem>>) attributes {dimension_semantics = [#tpu.dimension_semantics<arbitrary>], iteration_bounds = array<i64: 2>, scalar_prefetch = 0 : i64, scratch_operands = 2 : i64, tpu.core_type = #tpu.core_type<tc>, window_params = [{transform_indices = @transform_0, window_bounds = array<i64: 1, 10, 10, 8>}, {pipeline_mode = #tpu.pipeline_mode<synchronous>, transform_indices = @transform_1, window_bounds = array<i64: 1, 8>}, {pipeline_mode = #tpu.pipeline_mode<synchronous>, transform_indices = @transform_2, window_bounds = array<i64: 1, 8>}, {pipeline_mode = #tpu.pipeline_mode<synchronous>, transform_indices = @transform_3, window_bounds = array<i64: 9, 8, 8>}, {pipeline_mode = #tpu.pipeline_mode<synchronous>, transform_indices = @transform_4, window_bounds = array<i64: 1, 8>}, {transform_indices = @transform_5, window_bounds = array<i64: 1, 8, 8, 8>}, {pipeline_mode = #tpu.pipeline_mode<synchronous>, transform_indices = @transform_6, window_bounds = array<i64: 1, 8>}, {pipeline_mode = #tpu.pipeline_mode<synchronous>, transform_indices = @transform_7, window_bounds = array<i64: 1, 8>}]} {
    %c0 = arith.constant 0 : index
    %c0_0 = arith.constant 0 : index
    %c0_1 = arith.constant 0 : index
    %c0_2 = arith.constant 0 : index
    %0 = vector.load %arg1[%c0, %c0_0, %c0_1, %c0_2] : memref<1x10x10x8xf32, #tpu.memory_space<vmem>>, vector<1x10x10x8xf32>
    %1 = vector.shape_cast %0 : vector<1x10x10x8xf32> to vector<10x10x8xf32>
    %2 = tpu.iota {dimensions = array<i32: 0>} : vector<10x10x8xi32>
    %3 = tpu.iota {dimensions = array<i32: 1>} : vector<10x10x8xi32>
    %c1_i32 = arith.constant 1 : i32
    %4 = vector.broadcast %c1_i32 : i32 to vector<10x10x8xi32>
    %5 = arith.cmpi sge, %2, %4 : vector<10x10x8xi32>
    %c8_i32 = arith.constant 8 : i32
    %6 = vector.broadcast %c8_i32 : i32 to vector<10x10x8xi32>
    %7 = arith.cmpi sle, %2, %6 : vector<10x10x8xi32>
    %8 = arith.andi %5, %7 : vector<10x10x8xi1>
    %c1_i32_3 = arith.constant 1 : i32
    %9 = vector.broadcast %c1_i32_3 : i32 to vector<10x10x8xi32>
    %10 = arith.cmpi sge, %3, %9 : vector<10x10x8xi32>
    %11 = arith.andi %8, %10 : vector<10x10x8xi1>
    %c8_i32_4 = arith.constant 8 : i32
    %12 = vector.broadcast %c8_i32_4 : i32 to vector<10x10x8xi32>
    %13 = arith.cmpi sle, %3, %12 : vector<10x10x8xi32>
    %14 = arith.andi %11, %13 : vector<10x10x8xi1>
    %c0_5 = arith.constant 0 : index
    %c0_6 = arith.constant 0 : index
    %15 = vector.load %arg2[%c0_5, %c0_6] : memref<1x8xf32, #tpu.memory_space<vmem>>, vector<1x8xf32>
    %16 = vector.shape_cast %15 : vector<1x8xf32> to vector<1x1x8xf32>
    %c0_7 = arith.constant 0 : index
    %c0_8 = arith.constant 0 : index
    %17 = vector.load %arg3[%c0_7, %c0_8] : memref<1x8xf32, #tpu.memory_space<vmem>>, vector<1x8xf32>
    %18 = vector.shape_cast %17 : vector<1x8xf32> to vector<1x1x8xf32>
    %19 = vector.broadcast %16 : vector<1x1x8xf32> to vector<10x10x8xf32>
    %20 = arith.mulf %1, %19 : vector<10x10x8xf32>
    %21 = vector.broadcast %18 : vector<1x1x8xf32> to vector<10x10x8xf32>
    %22 = arith.addf %20, %21 : vector<10x10x8xf32>
    %cst = arith.constant 0.000000e+00 : f32
    %23 = vector.broadcast %cst : f32 to vector<10x10x8xf32>
    %24 = arith.select %14, %22, %23 : vector<10x10x8xi1>, vector<10x10x8xf32>
    %cst_9 = arith.constant 0.000000e+00 : f32
    %25 = vector.broadcast %cst_9 : f32 to vector<64x8xf32>
    %26 = vector.extract_strided_slice %24 {offsets = [0, 0, 0], sizes = [8, 8, 8], strides = [1, 1, 1]} : vector<10x10x8xf32> to vector<8x8x8xf32>
    %27 = vector.shape_cast %26 : vector<8x8x8xf32> to vector<64x8xf32>
    %c0_10 = arith.constant 0 : index
    %c0_11 = arith.constant 0 : index
    %c0_12 = arith.constant 0 : index
    %28 = vector.load %arg4[%c0_10, %c0_11, %c0_12] : memref<9x8x8xf32, #tpu.memory_space<vmem>>, vector<1x8x8xf32>
    %29 = vector.shape_cast %28 : vector<1x8x8xf32> to vector<8x8xf32>
    %cst_13 = arith.constant dense<0.000000e+00> : vector<64x8xf32>
    %30 = tpu.matmul %27, %29, %cst_13 {dimension_numbers = #tpu.dot_dimension_numbers<[1], [0], [0], [1], [0, 0, 1, 1], [], []>} : vector<64x8xf32>, vector<8x8xf32>, vector<64x8xf32> -> vector<64x8xf32>
    %31 = arith.addf %25, %30 : vector<64x8xf32>
    %32 = vector.extract_strided_slice %24 {offsets = [0, 1, 0], sizes = [8, 8, 8], strides = [1, 1, 1]} : vector<10x10x8xf32> to vector<8x8x8xf32>
    %33 = vector.shape_cast %32 : vector<8x8x8xf32> to vector<64x8xf32>
    %c1 = arith.constant 1 : index
    %c0_14 = arith.constant 0 : index
    %c0_15 = arith.constant 0 : index
    %34 = vector.load %arg4[%c1, %c0_14, %c0_15] : memref<9x8x8xf32, #tpu.memory_space<vmem>>, vector<1x8x8xf32>
    %35 = vector.shape_cast %34 : vector<1x8x8xf32> to vector<8x8xf32>
    %cst_16 = arith.constant dense<0.000000e+00> : vector<64x8xf32>
    %36 = tpu.matmul %33, %35, %cst_16 {dimension_numbers = #tpu.dot_dimension_numbers<[1], [0], [0], [1], [0, 0, 1, 1], [], []>} : vector<64x8xf32>, vector<8x8xf32>, vector<64x8xf32> -> vector<64x8xf32>
    %37 = arith.addf %31, %36 : vector<64x8xf32>
    %38 = vector.extract_strided_slice %24 {offsets = [0, 2, 0], sizes = [8, 8, 8], strides = [1, 1, 1]} : vector<10x10x8xf32> to vector<8x8x8xf32>
    %39 = vector.shape_cast %38 : vector<8x8x8xf32> to vector<64x8xf32>
    %c2 = arith.constant 2 : index
    %c0_17 = arith.constant 0 : index
    %c0_18 = arith.constant 0 : index
    %40 = vector.load %arg4[%c2, %c0_17, %c0_18] : memref<9x8x8xf32, #tpu.memory_space<vmem>>, vector<1x8x8xf32>
    %41 = vector.shape_cast %40 : vector<1x8x8xf32> to vector<8x8xf32>
    %cst_19 = arith.constant dense<0.000000e+00> : vector<64x8xf32>
    %42 = tpu.matmul %39, %41, %cst_19 {dimension_numbers = #tpu.dot_dimension_numbers<[1], [0], [0], [1], [0, 0, 1, 1], [], []>} : vector<64x8xf32>, vector<8x8xf32>, vector<64x8xf32> -> vector<64x8xf32>
    %43 = arith.addf %37, %42 : vector<64x8xf32>
    %44 = vector.extract_strided_slice %24 {offsets = [1, 0, 0], sizes = [8, 8, 8], strides = [1, 1, 1]} : vector<10x10x8xf32> to vector<8x8x8xf32>
    %45 = vector.shape_cast %44 : vector<8x8x8xf32> to vector<64x8xf32>
    %c3 = arith.constant 3 : index
    %c0_20 = arith.constant 0 : index
    %c0_21 = arith.constant 0 : index
    %46 = vector.load %arg4[%c3, %c0_20, %c0_21] : memref<9x8x8xf32, #tpu.memory_space<vmem>>, vector<1x8x8xf32>
    %47 = vector.shape_cast %46 : vector<1x8x8xf32> to vector<8x8xf32>
    %cst_22 = arith.constant dense<0.000000e+00> : vector<64x8xf32>
    %48 = tpu.matmul %45, %47, %cst_22 {dimension_numbers = #tpu.dot_dimension_numbers<[1], [0], [0], [1], [0, 0, 1, 1], [], []>} : vector<64x8xf32>, vector<8x8xf32>, vector<64x8xf32> -> vector<64x8xf32>
    %49 = arith.addf %43, %48 : vector<64x8xf32>
    %50 = vector.extract_strided_slice %24 {offsets = [1, 1, 0], sizes = [8, 8, 8], strides = [1, 1, 1]} : vector<10x10x8xf32> to vector<8x8x8xf32>
    %51 = vector.shape_cast %50 : vector<8x8x8xf32> to vector<64x8xf32>
    %c4 = arith.constant 4 : index
    %c0_23 = arith.constant 0 : index
    %c0_24 = arith.constant 0 : index
    %52 = vector.load %arg4[%c4, %c0_23, %c0_24] : memref<9x8x8xf32, #tpu.memory_space<vmem>>, vector<1x8x8xf32>
    %53 = vector.shape_cast %52 : vector<1x8x8xf32> to vector<8x8xf32>
    %cst_25 = arith.constant dense<0.000000e+00> : vector<64x8xf32>
    %54 = tpu.matmul %51, %53, %cst_25 {dimension_numbers = #tpu.dot_dimension_numbers<[1], [0], [0], [1], [0, 0, 1, 1], [], []>} : vector<64x8xf32>, vector<8x8xf32>, vector<64x8xf32> -> vector<64x8xf32>
    %55 = arith.addf %49, %54 : vector<64x8xf32>
    %56 = vector.extract_strided_slice %24 {offsets = [1, 2, 0], sizes = [8, 8, 8], strides = [1, 1, 1]} : vector<10x10x8xf32> to vector<8x8x8xf32>
    %57 = vector.shape_cast %56 : vector<8x8x8xf32> to vector<64x8xf32>
    %c5 = arith.constant 5 : index
    %c0_26 = arith.constant 0 : index
    %c0_27 = arith.constant 0 : index
    %58 = vector.load %arg4[%c5, %c0_26, %c0_27] : memref<9x8x8xf32, #tpu.memory_space<vmem>>, vector<1x8x8xf32>
    %59 = vector.shape_cast %58 : vector<1x8x8xf32> to vector<8x8xf32>
    %cst_28 = arith.constant dense<0.000000e+00> : vector<64x8xf32>
    %60 = tpu.matmul %57, %59, %cst_28 {dimension_numbers = #tpu.dot_dimension_numbers<[1], [0], [0], [1], [0, 0, 1, 1], [], []>} : vector<64x8xf32>, vector<8x8xf32>, vector<64x8xf32> -> vector<64x8xf32>
    %61 = arith.addf %55, %60 : vector<64x8xf32>
    %62 = vector.extract_strided_slice %24 {offsets = [2, 0, 0], sizes = [8, 8, 8], strides = [1, 1, 1]} : vector<10x10x8xf32> to vector<8x8x8xf32>
    %63 = vector.shape_cast %62 : vector<8x8x8xf32> to vector<64x8xf32>
    %c6 = arith.constant 6 : index
    %c0_29 = arith.constant 0 : index
    %c0_30 = arith.constant 0 : index
    %64 = vector.load %arg4[%c6, %c0_29, %c0_30] : memref<9x8x8xf32, #tpu.memory_space<vmem>>, vector<1x8x8xf32>
    %65 = vector.shape_cast %64 : vector<1x8x8xf32> to vector<8x8xf32>
    %cst_31 = arith.constant dense<0.000000e+00> : vector<64x8xf32>
    %66 = tpu.matmul %63, %65, %cst_31 {dimension_numbers = #tpu.dot_dimension_numbers<[1], [0], [0], [1], [0, 0, 1, 1], [], []>} : vector<64x8xf32>, vector<8x8xf32>, vector<64x8xf32> -> vector<64x8xf32>
    %67 = arith.addf %61, %66 : vector<64x8xf32>
    %68 = vector.extract_strided_slice %24 {offsets = [2, 1, 0], sizes = [8, 8, 8], strides = [1, 1, 1]} : vector<10x10x8xf32> to vector<8x8x8xf32>
    %69 = vector.shape_cast %68 : vector<8x8x8xf32> to vector<64x8xf32>
    %c7 = arith.constant 7 : index
    %c0_32 = arith.constant 0 : index
    %c0_33 = arith.constant 0 : index
    %70 = vector.load %arg4[%c7, %c0_32, %c0_33] : memref<9x8x8xf32, #tpu.memory_space<vmem>>, vector<1x8x8xf32>
    %71 = vector.shape_cast %70 : vector<1x8x8xf32> to vector<8x8xf32>
    %cst_34 = arith.constant dense<0.000000e+00> : vector<64x8xf32>
    %72 = tpu.matmul %69, %71, %cst_34 {dimension_numbers = #tpu.dot_dimension_numbers<[1], [0], [0], [1], [0, 0, 1, 1], [], []>} : vector<64x8xf32>, vector<8x8xf32>, vector<64x8xf32> -> vector<64x8xf32>
    %73 = arith.addf %67, %72 : vector<64x8xf32>
    %74 = vector.extract_strided_slice %24 {offsets = [2, 2, 0], sizes = [8, 8, 8], strides = [1, 1, 1]} : vector<10x10x8xf32> to vector<8x8x8xf32>
    %75 = vector.shape_cast %74 : vector<8x8x8xf32> to vector<64x8xf32>
    %c8 = arith.constant 8 : index
    %c0_35 = arith.constant 0 : index
    %c0_36 = arith.constant 0 : index
    %76 = vector.load %arg4[%c8, %c0_35, %c0_36] : memref<9x8x8xf32, #tpu.memory_space<vmem>>, vector<1x8x8xf32>
    %77 = vector.shape_cast %76 : vector<1x8x8xf32> to vector<8x8xf32>
    %cst_37 = arith.constant dense<0.000000e+00> : vector<64x8xf32>
    %78 = tpu.matmul %75, %77, %cst_37 {dimension_numbers = #tpu.dot_dimension_numbers<[1], [0], [0], [1], [0, 0, 1, 1], [], []>} : vector<64x8xf32>, vector<8x8xf32>, vector<64x8xf32> -> vector<64x8xf32>
    %79 = arith.addf %73, %78 : vector<64x8xf32>
    %c0_38 = arith.constant 0 : index
    %c0_39 = arith.constant 0 : index
    %80 = vector.load %arg5[%c0_38, %c0_39] : memref<1x8xf32, #tpu.memory_space<vmem>>, vector<1x8xf32>
    %81 = vector.broadcast %80 : vector<1x8xf32> to vector<64x8xf32>
    %82 = arith.addf %79, %81 : vector<64x8xf32>
    %cst_40 = arith.constant 0.000000e+00 : f32
    %83 = vector.broadcast %cst_40 : f32 to vector<64x8xf32>
    %84 = arith.cmpf ogt, %82, %83 : vector<64x8xf32>
    %85 = math.exp %82 : vector<64x8xf32>
    %cst_41 = arith.constant 1.000000e+00 : f32
    %86 = vector.broadcast %cst_41 : f32 to vector<64x8xf32>
    %87 = arith.subf %85, %86 : vector<64x8xf32>
    %88 = arith.select %84, %82, %87 : vector<64x8xi1>, vector<64x8xf32>
    %89 = vector.shape_cast %88 : vector<64x8xf32> to vector<1x8x8x8xf32>
    %c0_42 = arith.constant 0 : index
    %c0_43 = arith.constant 0 : index
    %c0_44 = arith.constant 0 : index
    %c0_45 = arith.constant 0 : index
    %90 = vector.load %arg6[%c0_42, %c0_43, %c0_44, %c0_45] : memref<1x8x8x8xf32, #tpu.memory_space<vmem>>, vector<1x8x8x8xf32>
    tpu.vector_store %arg6[%c0_42, %c0_43, %c0_44, %c0_45], %89 {strides = array<i32>} : memref<1x8x8x8xf32, #tpu.memory_space<vmem>>, vector<1x8x8x8xf32>,
    %c0_i32 = arith.constant 0 : i32
    %91 = arith.cmpi eq, %arg0, %c0_i32 : i32
    %92 = arith.extui %91 : i1 to i32
    %c0_i32_46 = arith.constant 0 : i32
    %93 = arith.cmpi ne, %92, %c0_i32_46 : i32
    scf.if %93 {
      %cst_65 = arith.constant 0.000000e+00 : f32
      %109 = vector.broadcast %cst_65 : f32 to vector<1x8xf32>
      %c0_66 = arith.constant 0 : index
      %c0_67 = arith.constant 0 : index
      %110 = vector.load %arg9[%c0_66, %c0_67] : memref<1x8xf32, #tpu.memory_space<vmem>>, vector<1x8xf32>
      tpu.vector_store %arg9[%c0_66, %c0_67], %109 {strides = array<i32>} : memref<1x8xf32, #tpu.memory_space<vmem>>, vector<1x8xf32>,
      %cst_68 = arith.constant 0.000000e+00 : f32
      %111 = vector.broadcast %cst_68 : f32 to vector<1x8xf32>
      %c0_69 = arith.constant 0 : index
      %c0_70 = arith.constant 0 : index
      %112 = vector.load %arg10[%c0_69, %c0_70] : memref<1x8xf32, #tpu.memory_space<vmem>>, vector<1x8xf32>
      tpu.vector_store %arg10[%c0_69, %c0_70], %111 {strides = array<i32>} : memref<1x8xf32, #tpu.memory_space<vmem>>, vector<1x8xf32>,
    } else {
    }
    %c0_47 = arith.constant 0 : index
    %c0_48 = arith.constant 0 : index
    %94 = vector.load %arg9[%c0_47, %c0_48] : memref<1x8xf32, #tpu.memory_space<vmem>>, vector<1x8xf32>
    %cst_49 = arith.constant dense<0.000000e+00> : vector<8xf32>
    %95 = vector.multi_reduction <add>, %88, %cst_49 [0] : vector<64x8xf32> to vector<8xf32>
    %96 = vector.shape_cast %95 : vector<8xf32> to vector<1x8xf32>
    %97 = arith.addf %94, %96 : vector<1x8xf32>
    %c0_50 = arith.constant 0 : index
    %c0_51 = arith.constant 0 : index
    %98 = vector.load %arg9[%c0_50, %c0_51] : memref<1x8xf32, #tpu.memory_space<vmem>>, vector<1x8xf32>
    tpu.vector_store %arg9[%c0_50, %c0_51], %97 {strides = array<i32>} : memref<1x8xf32, #tpu.memory_space<vmem>>, vector<1x8xf32>,
    %c0_52 = arith.constant 0 : index
    %c0_53 = arith.constant 0 : index
    %99 = vector.load %arg10[%c0_52, %c0_53] : memref<1x8xf32, #tpu.memory_space<vmem>>, vector<1x8xf32>
    %100 = arith.mulf %88, %88 : vector<64x8xf32>
    %cst_54 = arith.constant dense<0.000000e+00> : vector<8xf32>
    %101 = vector.multi_reduction <add>, %100, %cst_54 [0] : vector<64x8xf32> to vector<8xf32>
    %102 = vector.shape_cast %101 : vector<8xf32> to vector<1x8xf32>
    %103 = arith.addf %99, %102 : vector<1x8xf32>
    %c0_55 = arith.constant 0 : index
    %c0_56 = arith.constant 0 : index
    %104 = vector.load %arg10[%c0_55, %c0_56] : memref<1x8xf32, #tpu.memory_space<vmem>>, vector<1x8xf32>
    tpu.vector_store %arg10[%c0_55, %c0_56], %103 {strides = array<i32>} : memref<1x8xf32, #tpu.memory_space<vmem>>, vector<1x8xf32>,
    %c0_57 = arith.constant 0 : index
    %c0_58 = arith.constant 0 : index
    %105 = vector.load %arg9[%c0_57, %c0_58] : memref<1x8xf32, #tpu.memory_space<vmem>>, vector<1x8xf32>
    %c0_59 = arith.constant 0 : index
    %c0_60 = arith.constant 0 : index
    %106 = vector.load %arg7[%c0_59, %c0_60] : memref<1x8xf32, #tpu.memory_space<vmem>>, vector<1x8xf32>
    tpu.vector_store %arg7[%c0_59, %c0_60], %105 {strides = array<i32>} : memref<1x8xf32, #tpu.memory_space<vmem>>, vector<1x8xf32>,
    %c0_61 = arith.constant 0 : index
    %c0_62 = arith.constant 0 : index
    %107 = vector.load %arg10[%c0_61, %c0_62] : memref<1x8xf32, #tpu.memory_space<vmem>>, vector<1x8xf32>
    %c0_63 = arith.constant 0 : index
    %c0_64 = arith.constant 0 : index
    %108 = vector.load %arg8[%c0_63, %c0_64] : memref<1x8xf32, #tpu.memory_space<vmem>>, vector<1x8xf32>
    tpu.vector_store %arg8[%c0_63, %c0_64], %107 {strides = array<i32>} : memref<1x8xf32, #tpu.memory_space<vmem>>, vector<1x8xf32>,
    return
  }
  func.func @transform_0(%arg0: i32) -> (i32, i32, i32, i32) {
    %c0_i32 = arith.constant 0 : i32
    %c0_i32_0 = arith.constant 0 : i32
    %c0_i32_1 = arith.constant 0 : i32
    %c0_i32_2 = arith.constant 0 : i32
    return %arg0, %c0_i32, %c0_i32_0, %c0_i32_1 : i32, i32, i32, i32
  }
  func.func @transform_1(%arg0: i32) -> (i32, i32) {
    %c0_i32 = arith.constant 0 : i32
    %c0_i32_0 = arith.constant 0 : i32
    %c0_i32_1 = arith.constant 0 : i32
    return %c0_i32, %c0_i32_0 : i32, i32
  }
  func.func @transform_2(%arg0: i32) -> (i32, i32) {
    %c0_i32 = arith.constant 0 : i32
    %c0_i32_0 = arith.constant 0 : i32
    %c0_i32_1 = arith.constant 0 : i32
    return %c0_i32, %c0_i32_0 : i32, i32
  }
  func.func @transform_3(%arg0: i32) -> (i32, i32, i32) {
    %c0_i32 = arith.constant 0 : i32
    %c0_i32_0 = arith.constant 0 : i32
    %c0_i32_1 = arith.constant 0 : i32
    %c0_i32_2 = arith.constant 0 : i32
    return %c0_i32, %c0_i32_0, %c0_i32_1 : i32, i32, i32
  }
  func.func @transform_4(%arg0: i32) -> (i32, i32) {
    %c0_i32 = arith.constant 0 : i32
    %c0_i32_0 = arith.constant 0 : i32
    %c0_i32_1 = arith.constant 0 : i32
    return %c0_i32, %c0_i32_0 : i32, i32
  }
  func.func @transform_5(%arg0: i32) -> (i32, i32, i32, i32) {
    %c0_i32 = arith.constant 0 : i32
    %c0_i32_0 = arith.constant 0 : i32
    %c0_i32_1 = arith.constant 0 : i32
    %c0_i32_2 = arith.constant 0 : i32
    return %arg0, %c0_i32, %c0_i32_0, %c0_i32_1 : i32, i32, i32, i32
  }
  func.func @transform_6(%arg0: i32) -> (i32, i32) {
    %c0_i32 = arith.constant 0 : i32
    %c0_i32_0 = arith.constant 0 : i32
    %c0_i32_1 = arith.constant 0 : i32
    return %c0_i32, %c0_i32_0 : i32, i32
  }
  func.func @transform_7(%arg0: i32) -> (i32, i32) {
    %c0_i32 = arith.constant 0 : i32
    %c0_i32_0 = arith.constant 0 : i32
    %c0_i32_1 = arith.constant 0 : i32
    return %c0_i32, %c0_i32_0 : i32, i32
  }
}

module attributes {stable_mosaic.version = 11 : i64} {
  func.func @_norm_residual_kernel(%arg0: i32, %arg1: memref<64x8xf32, #tpu.memory_space<vmem>>, %arg2: memref<64x8xf32, #tpu.memory_space<vmem>>, %arg3: memref<1x8xf32, #tpu.memory_space<vmem>>, %arg4: memref<1x8xf32, #tpu.memory_space<vmem>>, %arg5: memref<1x8xf32, #tpu.memory_space<vmem>>, %arg6: memref<1x8xf32, #tpu.memory_space<vmem>>, %arg7: memref<64x8xf32, #tpu.memory_space<vmem>>) attributes {dimension_semantics = [#tpu.dimension_semantics<parallel>], iteration_bounds = array<i64: 2>, scalar_prefetch = 0 : i64, scratch_operands = 0 : i64, tpu.core_type = #tpu.core_type<tc>, window_params = [{transform_indices = @transform_0, window_bounds = array<i64: 64, 8>}, {transform_indices = @transform_1, window_bounds = array<i64: 64, 8>}, {pipeline_mode = #tpu.pipeline_mode<synchronous>, transform_indices = @transform_2, window_bounds = array<i64: 1, 8>}, {pipeline_mode = #tpu.pipeline_mode<synchronous>, transform_indices = @transform_3, window_bounds = array<i64: 1, 8>}, {pipeline_mode = #tpu.pipeline_mode<synchronous>, transform_indices = @transform_4, window_bounds = array<i64: 1, 8>}, {pipeline_mode = #tpu.pipeline_mode<synchronous>, transform_indices = @transform_5, window_bounds = array<i64: 1, 8>}, {transform_indices = @transform_6, window_bounds = array<i64: 64, 8>}]} {
    %c0 = arith.constant 0 : index
    %c0_0 = arith.constant 0 : index
    %0 = vector.load %arg1[%c0, %c0_0] : memref<64x8xf32, #tpu.memory_space<vmem>>, vector<64x8xf32>
    %c0_1 = arith.constant 0 : index
    %c0_2 = arith.constant 0 : index
    %1 = vector.load %arg3[%c0_1, %c0_2] : memref<1x8xf32, #tpu.memory_space<vmem>>, vector<1x8xf32>
    %2 = vector.broadcast %1 : vector<1x8xf32> to vector<64x8xf32>
    %3 = arith.mulf %0, %2 : vector<64x8xf32>
    %c0_3 = arith.constant 0 : index
    %c0_4 = arith.constant 0 : index
    %4 = vector.load %arg4[%c0_3, %c0_4] : memref<1x8xf32, #tpu.memory_space<vmem>>, vector<1x8xf32>
    %5 = vector.broadcast %4 : vector<1x8xf32> to vector<64x8xf32>
    %6 = arith.addf %3, %5 : vector<64x8xf32>
    %c0_5 = arith.constant 0 : index
    %c0_6 = arith.constant 0 : index
    %7 = vector.load %arg2[%c0_5, %c0_6] : memref<64x8xf32, #tpu.memory_space<vmem>>, vector<64x8xf32>
    %c0_7 = arith.constant 0 : index
    %c0_8 = arith.constant 0 : index
    %8 = vector.load %arg5[%c0_7, %c0_8] : memref<1x8xf32, #tpu.memory_space<vmem>>, vector<1x8xf32>
    %9 = vector.broadcast %8 : vector<1x8xf32> to vector<64x8xf32>
    %10 = arith.mulf %7, %9 : vector<64x8xf32>
    %11 = arith.addf %6, %10 : vector<64x8xf32>
    %c0_9 = arith.constant 0 : index
    %c0_10 = arith.constant 0 : index
    %12 = vector.load %arg6[%c0_9, %c0_10] : memref<1x8xf32, #tpu.memory_space<vmem>>, vector<1x8xf32>
    %13 = vector.broadcast %12 : vector<1x8xf32> to vector<64x8xf32>
    %14 = arith.addf %11, %13 : vector<64x8xf32>
    %c0_11 = arith.constant 0 : index
    %c0_12 = arith.constant 0 : index
    %15 = vector.load %arg7[%c0_11, %c0_12] : memref<64x8xf32, #tpu.memory_space<vmem>>, vector<64x8xf32>
    tpu.vector_store %arg7[%c0_11, %c0_12], %14 {strides = array<i32>} : memref<64x8xf32, #tpu.memory_space<vmem>>, vector<64x8xf32>,
    return
  }
  func.func @transform_0(%arg0: i32) -> (i32, i32) {
    %c0_i32 = arith.constant 0 : i32
    %c0_i32_0 = arith.constant 0 : i32
    return %arg0, %c0_i32 : i32, i32
  }
  func.func @transform_1(%arg0: i32) -> (i32, i32) {
    %c0_i32 = arith.constant 0 : i32
    %c0_i32_0 = arith.constant 0 : i32
    return %arg0, %c0_i32 : i32, i32
  }
  func.func @transform_2(%arg0: i32) -> (i32, i32) {
    %c0_i32 = arith.constant 0 : i32
    %c0_i32_0 = arith.constant 0 : i32
    %c0_i32_1 = arith.constant 0 : i32
    return %c0_i32, %c0_i32_0 : i32, i32
  }
  func.func @transform_3(%arg0: i32) -> (i32, i32) {
    %c0_i32 = arith.constant 0 : i32
    %c0_i32_0 = arith.constant 0 : i32
    %c0_i32_1 = arith.constant 0 : i32
    return %c0_i32, %c0_i32_0 : i32, i32
  }
  func.func @transform_4(%arg0: i32) -> (i32, i32) {
    %c0_i32 = arith.constant 0 : i32
    %c0_i32_0 = arith.constant 0 : i32
    %c0_i32_1 = arith.constant 0 : i32
    return %c0_i32, %c0_i32_0 : i32, i32
  }
  func.func @transform_5(%arg0: i32) -> (i32, i32) {
    %c0_i32 = arith.constant 0 : i32
    %c0_i32_0 = arith.constant 0 : i32
    %c0_i32_1 = arith.constant 0 : i32
    return %c0_i32, %c0_i32_0 : i32, i32
  }
  func.func @transform_6(%arg0: i32) -> (i32, i32) {
    %c0_i32 = arith.constant 0 : i32
    %c0_i32_0 = arith.constant 0 : i32
    return %arg0, %c0_i32 : i32, i32
  }
}

</mosaic_0001>

<llo_original>
// kernel: encoder_block_forward.4
$region0: #{encoder_block_forward.4}
  #allocation0 [shape = 'u32[]', space=smem, size = 0x4, offset = 0x4, fixed_abs, tag = 'smem constant byte address 0x4 - core index']
  #allocation1 [shape = 'u32[144,128]{1,0:T(1,128)}', space=vmem, size = 0x12000, scoped, tag = 'internal scratch']
  #allocation2 [shape = 'f32[1,8]{1,0:T(1,128)}', space=vmem, size = 0x200, scoped, tag = 'scratch operand']
  #allocation3 [shape = 'f32[1,8]{1,0:T(1,128)}', space=vmem, size = 0x200, scoped, tag = 'scratch operand']
  %s0 = inlined_call_operand.vmem [shape: f32[8,9,9,4], index: 0, kind: input, shape index: {}]
  %s1 = inlined_call_operand.vmem [shape: f32[9,4,8], index: 1, kind: input, shape index: {}]
  %s2 = inlined_call_operand.vmem [shape: f32[1,8], index: 2, kind: input, shape index: {}]
  %s3 = inlined_call_operand.vmem [shape: f32[2,8,8,8], index: 3, kind: output, shape index: {0}]
  %s4 = inlined_call_operand.vmem [shape: f32[1,8], index: 4, kind: output, shape index: {1}]
  %s5 = inlined_call_operand.vmem [shape: f32[1,8], index: 5, kind: output, shape index: {2}]
  %6 = xla_tuple %s3, %s4, %s5
  %s7 = sld [smem:[#allocation0]]
  $region65: #{encoder_block_forward.4} parent=0
    _
  %s9 = ssub.s32 1, %s7
  %s10 = scalar_select 0, %s9, %s7
  loop: start=0, step=1, limit=4
  $region2: #{encoder_block_forward.4} parent=0 // loop_pre_header
    _
  $region3: #{encoder_block_forward.4} parent=0 // loop_header
    %s12 = sphi 0, %s16
    %p13 = scmp.ge.s32.totalorder %s12, 4
    %s22 = sphi 0, %s24
    %s25 = sphi 0, %s22
    %s26 = sphi 0, %s25
    %s42 = sphi 0, %s26
    %s46 = sphi 0, %s46
    %s48 = sphi 0, %s46
    %s49 = sphi 0, %s48
    %s63 = sphi 0, %s49
    %s67 = sphi 0, %s67
    %s69 = sphi 0, %s67
    %s70 = sphi 0, %s69
    %s84 = sphi 0, %s70
    %s90 = sphi 0, %s92
    %s93 = sphi 0, %s90
    %s94 = sphi 0, %s93
    %s110 = sphi 0, %s94
    %s114 = sphi 0, %s114
    %s116 = sphi 0, %s114
    %s117 = sphi 0, %s116
    %s131 = sphi 0, %s117
    %s135 = sphi 0, %s135
    %s137 = sphi 0, %s135
    %s138 = sphi 0, %s137
    %s152 = sphi 0, %s138
  $region4: #{encoder_block_forward.4} parent=0 // loop_header_branch
    %15 = sbr.rel (%p13) target = $region8
  $region5: #{encoder_block_forward.4} parent=0 // loop_body
    %s17 = ssub.s32 %s12, 1
    %s18 = ssub.s32 %s12, 2
    %s19 = sadd.s32 %s12, 1
    %s20 = ssub.s32 %s12, %s19
    %p21 = scmp.eq.s32.totalorder %s20, 0
    %s23 = sadd.s32 %s22, 1
    %s24 = scalar_select %p21, %s22, %s23
    %p27 = pneg %p21
    %p28 = scmp.eq.s32.totalorder %s12, 1
    %p29 = por %p27, %p28
    %p30 = scmp.ne.s32.totalorder %s22, %s25
    %p31 = scmp.eq.s32.totalorder %s12, 0
    %p32 = por %p30, %p31
    %p33 = scmp.ne.s32.totalorder %s22, %s25
    %p34 = scmp.eq.s32.totalorder %s17, 1
    %p35 = por %p33, %p34
    %p36 = scmp.ne.s32.totalorder %s25, %s26
    %p37 = scmp.eq.s32.totalorder %s17, 0
    %p38 = por %p36, %p37
    %p39 = scmp.ne.s32.totalorder %s25, %s26
    %p40 = scmp.eq.s32.totalorder %s18, 1
    %p41 = por %p39, %p40
    %p43 = scmp.ne.s32.totalorder %s26, %s42
    %p44 = scmp.eq.s32.totalorder %s18, 0
    %p45 = por %p43, %p44
    %s47 = sadd.s32 %s46, 1
    %p50 = scmp.eq.s32.totalorder %s12, 1
    %p51 = scmp.ne.s32.totalorder %s46, %s48
    %p52 = scmp.eq.s32.totalorder %s12, 0
    %p53 = por %p51, %p52
    %p54 = scmp.ne.s32.totalorder %s46, %s48
    %p55 = scmp.eq.s32.totalorder %s17, 1
    %p56 = por %p54, %p55
    %p57 = scmp.ne.s32.totalorder %s48, %s49
    %p58 = scmp.eq.s32.totalorder %s17, 0
    %p59 = por %p57, %p58
    %p60 = scmp.ne.s32.totalorder %s48, %s49
    %p61 = scmp.eq.s32.totalorder %s18, 1
    %p62 = por %p60, %p61
    %p64 = scmp.ne.s32.totalorder %s49, %s63
    %p65 = scmp.eq.s32.totalorder %s18, 0
    %p66 = por %p64, %p65
    %s68 = sadd.s32 %s67, 1
    %p71 = scmp.eq.s32.totalorder %s12, 1
    %p72 = scmp.ne.s32.totalorder %s67, %s69
    %p73 = scmp.eq.s32.totalorder %s12, 0
    %p74 = por %p72, %p73
    %p75 = scmp.ne.s32.totalorder %s67, %s69
    %p76 = scmp.eq.s32.totalorder %s17, 1
    %p77 = por %p75, %p76
    %p78 = scmp.ne.s32.totalorder %s69, %s70
    %p79 = scmp.eq.s32.totalorder %s17, 0
    %p80 = por %p78, %p79
    %p81 = scmp.ne.s32.totalorder %s69, %s70
    %p82 = scmp.eq.s32.totalorder %s18, 1
    %p83 = por %p81, %p82
    %p85 = scmp.ne.s32.totalorder %s70, %s84
    %p86 = scmp.eq.s32.totalorder %s18, 0
    %p87 = por %p85, %p86
    %s88 = ssub.s32 %s12, %s19
    %p89 = scmp.eq.s32.totalorder %s88, 0
    %s91 = sadd.s32 %s90, 1
    %s92 = scalar_select %p89, %s90, %s91
    %p95 = pneg %p89
    %p96 = scmp.eq.s32.totalorder %s12, 1
    %p97 = por %p95, %p96
    %p98 = scmp.ne.s32.totalorder %s90, %s93
    %p99 = scmp.eq.s32.totalorder %s12, 0
    %p100 = por %p98, %p99
    %p101 = scmp.ne.s32.totalorder %s90, %s93
    %p102 = scmp.eq.s32.totalorder %s17, 1
    %p103 = por %p101, %p102
    %p104 = scmp.ne.s32.totalorder %s93, %s94
    %p105 = scmp.eq.s32.totalorder %s17, 0
    %p106 = por %p104, %p105
    %p107 = scmp.ne.s32.totalorder %s93, %s94
    %p108 = scmp.eq.s32.totalorder %s18, 1
    %p109 = por %p107, %p108
    %p111 = scmp.ne.s32.totalorder %s94, %s110
    %p112 = scmp.eq.s32.totalorder %s18, 0
    %p113 = por %p111, %p112
    %s115 = sadd.s32 %s114, 1
    %p118 = scmp.eq.s32.totalorder %s12, 1
    %p119 = scmp.ne.s32.totalorder %s114, %s116
    %p120 = scmp.eq.s32.totalorder %s12, 0
    %p121 = por %p119, %p120
    %p122 = scmp.ne.s32.totalorder %s114, %s116
    %p123 = scmp.eq.s32.totalorder %s17, 1
    %p124 = por %p122, %p123
    %p125 = scmp.ne.s32.totalorder %s116, %s117
    %p126 = scmp.eq.s32.totalorder %s17, 0
    %p127 = por %p125, %p126
    %p128 = scmp.ne.s32.totalorder %s116, %s117
    %p129 = scmp.eq.s32.totalorder %s18, 1
    %p130 = por %p128, %p129
    %p132 = scmp.ne.s32.totalorder %s117, %s131
    %p133 = scmp.eq.s32.totalorder %s18, 0
    %p134 = por %p132, %p133
    %s136 = sadd.s32 %s135, 1
    %p139 = scmp.eq.s32.totalorder %s12, 1
    %p140 = scmp.ne.s32.totalorder %s135, %s137
    %p141 = scmp.eq.s32.totalorder %s12, 0
    %p142 = por %p140, %p141
    %p143 = scmp.ne.s32.totalorder %s135, %s137
    %p144 = scmp.eq.s32.totalorder %s17, 1
    %p145 = por %p143, %p144
    %p146 = scmp.ne.s32.totalorder %s137, %s138
    %p147 = scmp.eq.s32.totalorder %s17, 0
    %p148 = por %p146, %p147
    %p149 = scmp.ne.s32.totalorder %s137, %s138
    %p150 = scmp.eq.s32.totalorder %s18, 1
    %p151 = por %p149, %p150
    %p153 = scmp.ne.s32.totalorder %s138, %s152
    %p154 = scmp.eq.s32.totalorder %s18, 0
    %p155 = por %p153, %p154
    %p156 = scmp.le.s32.totalorder 1, %s12
    %p157 = scmp.lt.s32.totalorder %s12, 3
    %p158 = pnand %p156, %p157
    %p159 = pneg %p158
    // Predicated region
    $region9: #{encoder_block_forward.4} parent=5 // pred_check
      _
    $region10: #{encoder_block_forward.4} parent=5 // pred_check_branch
      %161 = sbr.rel (%p158) target = $region12
    $region11: #{encoder_block_forward.4} parent=5 // pred_region
      %s162 = ssub.s32 %s12, 1
      // Predicated region
      $region13: #{encoder_block_forward.4} parent=11 // pred_check
        %p163 = pneg %p59
      $region14: #{encoder_block_forward.4} parent=11 // pred_check_branch
        %165 = sbr.rel (%p163) target = $region16
      $region15: #{encoder_block_forward.4} parent=11 // pred_region
        _
      $region16: #{encoder_block_forward.4} parent=11 // pred_fallthru
        _
      // Predicated region
      $region17: #{encoder_block_forward.4} parent=11 // pred_check
        %p166 = pneg %p80
      $region18: #{encoder_block_forward.4} parent=11 // pred_check_branch
        %168 = sbr.rel (%p166) target = $region20
      $region19: #{encoder_block_forward.4} parent=11 // pred_region
        _
      $region20: #{encoder_block_forward.4} parent=11 // pred_fallthru
        _
    $region12: #{encoder_block_forward.4} parent=5 // pred_fallthru
      _
    %p169 = scmp.lt.s32.totalorder %s12, 2
    // Predicated region
    $region21: #{encoder_block_forward.4} parent=5 // pred_check
      %p170 = pneg %p169
    $region22: #{encoder_block_forward.4} parent=5 // pred_check_branch
      %172 = sbr.rel (%p170) target = $region24
    $region23: #{encoder_block_forward.4} parent=5 // pred_region
      // Predicated region
      $region25: #{encoder_block_forward.4} parent=23 // pred_check
        %p173 = pneg %p32
      $region26: #{encoder_block_forward.4} parent=23 // pred_check_branch
        %175 = sbr.rel (%p173) target = $region28
      $region27: #{encoder_block_forward.4} parent=23 // pred_region
        %s176 = smul.u32 4, %s12
        %p177 = scmp.lt.s32.totalorder %s176, 7
        %s178 = scalar_select %p177, %s176, 7
        %s179 = smul.addr %s178, 18
        %s180 = smul.addr %s179, 8
        %s181 = scalar_lea.vmem %s0, %s180
        %s182 = smul.u32 4, %s12
      $region28: #{encoder_block_forward.4} parent=23 // pred_fallthru
        _
    $region24: #{encoder_block_forward.4} parent=5 // pred_fallthru
      _
    %p183 = scmp.le.s32.totalorder 1, %s12
    %p184 = scmp.lt.s32.totalorder %s12, 3
    %p185 = pnand %p183, %p184
    %p186 = pneg %p185
    // Predicated region
    $region29: #{encoder_block_forward.4} parent=5 // pred_check
      _
    $region30: #{encoder_block_forward.4} parent=5 // pred_check_branch
      %188 = sbr.rel (%p185) target = $region32
    $region31: #{encoder_block_forward.4} parent=5 // pred_region
      %s189 = ssub.s32 %s12, 1
      %s190 = smul.u32 4, %s17
      %p191 = scmp.lt.s32.totalorder %s190, 7
      %s192 = scalar_select %p191, %s190, 7
      %s193 = smul.addr %s192, 18
      %s194 = smul.addr %s193, 8
      %s195 = scalar_lea.vmem %s0, %s194
      %p196 = pneg %p38
      %p197 = pneg %p35
      %p198 = pneg %p59
      %p199 = pneg %p56
      %p200 = pneg %p80
      %p201 = pneg %p77
      %p202 = pneg %p106
      %p203 = pneg %p103
      %p204 = scmp.lt.s32.totalorder %s17, 1
      %s205 = scalar_select %p204, %s17, 1
      %s206 = smul.addr %s205, 8
      %s207 = smul.addr %s206, 8
      %s208 = scalar_lea.vmem %s3, %s207
      %p209 = pneg %p127
      %p210 = pneg %p124
      %p211 = pneg %p148
      %p212 = pneg %p145
      %s213 = smul.u32 4, %s17
      %p214 = scmp.lt.s32.totalorder %s213, 7
      %s215 = scalar_select %p214, %s213, 7
      %s216 = smul.addr %s215, 18
      %s217 = smul.addr %s216, 8
      %s218 = scalar_lea.vmem %s0, %s217
      %s219 = smul.u32 4, %s17
      %p220 = scmp.lt.s32.totalorder %s17, 1
      %s221 = scalar_select %p220, %s17, 1
      %s222 = smul.addr %s221, 8
      %s223 = smul.addr %s222, 8
      %s224 = scalar_lea.vmem %s3, %s223
      %v225 = vld [vmem:[%s218] sm:$0xff]
      %v226 = vld [vmem:[%s218 + $0x8] sm:$0x1]
      %v227 = vld [vmem:[%s218 + $0x10] sm:$0xff]
      %v228 = vld [vmem:[%s218 + $0x18] sm:$0x1]
      %v229 = vld [vmem:[%s218 + $0x20] sm:$0xff]
      %v230 = vld [vmem:[%s218 + $0x28] sm:$0x1]
      %v231 = vld [vmem:[%s218 + $0x30] sm:$0xff]
      %v232 = vld [vmem:[%s218 + $0x38] sm:$0x1]
      %v233 = vld [vmem:[%s218 + $0x40] sm:$0xff]
      %v234 = vld [vmem:[%s218 + $0x48] sm:$0x1]
      %v235 = vld [vmem:[%s218 + $0x50] sm:$0xff]
      %v236 = vld [vmem:[%s218 + $0x58] sm:$0x1]
      %v237 = vld [vmem:[%s218 + $0x60] sm:$0xff]
      %v238 = vld [vmem:[%s218 + $0x68] sm:$0x1]
      %v239 = vld [vmem:[%s218 + $0x70] sm:$0xff]
      %v240 = vld [vmem:[%s218 + $0x78] sm:$0x1]
      %v241 = vld [vmem:[%s218 + $0x80] sm:$0xff]
      %v242 = vld [vmem:[%s218 + $0x88] sm:$0x1]
      %v243 = vld [vmem:[%s218 + $0x90] sm:$0xff]
      %v244 = vld [vmem:[%s218 + $0xa0] sm:$0xff]
      %v245 = vld [vmem:[%s218 + $0xb0] sm:$0xff]
      %v246 = vld [vmem:[%s218 + $0xc0] sm:$0xff]
      %v247 = vld [vmem:[%s218 + $0xd0] sm:$0xff]
      %v248 = vld [vmem:[%s218 + $0xe0] sm:$0xff]
      %v249 = vld [vmem:[%s218 + $0xf0] sm:$0xff]
      %v250 = vld [vmem:[%s218 + $0x100] sm:$0xff]
      %v251 = vld [vmem:[%s218 + $0x110] sm:$0xff]
      %v252 = vld [vmem:[%s218 + $0x120] sm:$0xff]
      %v253 = vld [vmem:[%s218 + $0x128] sm:$0x1]
      %v254 = vld [vmem:[%s218 + $0x130] sm:$0xff]
      %v255 = vld [vmem:[%s218 + $0x138] sm:$0x1]
      %v256 = vld [vmem:[%s218 + $0x140] sm:$0xff]
      %v257 = vld [vmem:[%s218 + $0x148] sm:$0x1]
      %v258 = vld [vmem:[%s218 + $0x150] sm:$0xff]
      %v259 = vld [vmem:[%s218 + $0x158] sm:$0x1]
      %v260 = vld [vmem:[%s218 + $0x160] sm:$0xff]
      %v261 = vld [vmem:[%s218 + $0x168] sm:$0x1]
      %v262 = vld [vmem:[%s218 + $0x170] sm:$0xff]
      %v263 = vld [vmem:[%s218 + $0x178] sm:$0x1]
      %v264 = vld [vmem:[%s218 + $0x180] sm:$0xff]
      %v265 = vld [vmem:[%s218 + $0x188] sm:$0x1]
      %v266 = vld [vmem:[%s218 + $0x190] sm:$0xff]
      %v267 = vld [vmem:[%s218 + $0x198] sm:$0x1]
      %v268 = vld [vmem:[%s218 + $0x1b0] sm:$0xff]
      %v269 = vld [vmem:[%s218 + $0x1c0] sm:$0xff]
      %v270 = vld [vmem:[%s218 + $0x1d0] sm:$0xff]
      %v271 = vld [vmem:[%s218 + $0x1e0] sm:$0xff]
      %v272 = vld [vmem:[%s218 + $0x1f0] sm:$0xff]
      %v273 = vld [vmem:[%s218 + $0x200] sm:$0xff]
      %v274 = vld [vmem:[%s218 + $0x210] sm:$0xff]
      %v275 = vld [vmem:[%s218 + $0x220] sm:$0xff]
      %v276 = vld [vmem:[%s1] sm:$0xf]
      %s277 = scalar_lea.vmem %s1, 4
      %v278 = vld [vmem:[%s277] sm:$0xf]
      %vm279 = vcmask 31744
      %v281 = vsel %vm279, %v243, 0
      %v284 = vsel %vm279, %v244, 0
      %v287 = vsel %vm279, %v245, 0
      %v290 = vsel %vm279, %v246, 0
      %v293 = vsel %vm279, %v247, 0
      %v296 = vsel %vm279, %v248, 0
      %v299 = vsel %vm279, %v249, 0
      %v302 = vsel %vm279, %v250, 0
      %vm304 = vcmask 1043456
      %v306 = vsel %vm304, %v278, 0
      %308 = vmatprep.subr.mxu0 0.0
      %309 = vmatpush1.msra.mxu0 0.0
      %310 = vmatprep.subr.mxu0 0.0
      %311 = vmatpush1.msra.mxu0 0.0
      %312 = vmatprep.subr.mxu0 0.0
      %313 = vmatpush1.msra.mxu0 0.0
      %314 = vmatprep.subr.mxu0 0.0
      %315 = vmatpush1.msra.mxu0 0.0
      %316 = vmatprep.subr.mxu0 0.0
      %317 = vmatpush1.msra.mxu0 0.0
      %318 = vmatprep.subr.mxu0 0.0
      %319 = vmatpush1.msra.mxu0 0.0
      %320 = vmatprep.subr.mxu0 0.0
      %321 = vmatpush1.msra.mxu0 0.0
      %322 = vmatprep.subr.mxu0 0.0
      %323 = vmatpush1.msra.mxu0 0.0
      %324 = vmatprep.subr.mxu0 0.0
      %325 = vmatpush1.msra.mxu0 0.0
      %326 = vmatprep.subr.mxu0 0.0
      %327 = vmatpush1.msra.mxu0 0.0
      %328 = vmatprep.subr.mxu0 0.0
      %329 = vmatpush1.msra.mxu0 0.0
      %330 = vmatprep.subr.mxu0 0.0
      %331 = vmatpush1.msra.mxu0 0.0
      %332 = vmatprep.subr.mxu0 0.0
      %333 = vmatpush1.msra.mxu0 0.0
      %334 = vmatprep.subr.mxu0 0.0
      %335 = vmatpush1.msra.mxu0 0.0
      %336 = vmatprep.subr.mxu0 0.0
      %337 = vmatpush1.msra.mxu0 0.0
      %338 = vmatprep.subr.mxu0 0.0
      %339 = vmatpush1.msra.mxu0 %v306
      %340 = vmatprep.subr.mxu0 0.0
      %341 = vmatpush2.msra.mxu0 0.0
      %342 = vmatprep.subr.mxu0 0.0
      %343 = vmatpush2.msra.mxu0 0.0
      %344 = vmatprep.subr.mxu0 0.0
      %345 = vmatpush2.msra.mxu0 0.0
      %346 = vmatprep.subr.mxu0 0.0
      %347 = vmatpush2.msra.mxu0 0.0
      %348 = vmatprep.subr.mxu0 0.0
      %349 = vmatpush2.msra.mxu0 0.0
      %350 = vmatprep.subr.mxu0 0.0
      %351 = vmatpush2.msra.mxu0 0.0
      %352 = vmatprep.subr.mxu0 0.0
      %353 = vmatpush2.msra.mxu0 0.0
      %354 = vmatprep.subr.mxu0 0.0
      %355 = vmatpush2.msra.mxu0 0.0
      %356 = vmatprep.subr.mxu0 0.0
      %357 = vmatpush2.msra.mxu0 0.0
      %358 = vmatprep.subr.mxu0 0.0
      %359 = vmatpush2.msra.mxu0 0.0
      %360 = vmatprep.subr.mxu0 0.0
      %361 = vmatpush2.msra.mxu0 0.0
      %362 = vmatprep.subr.mxu0 0.0
      %363 = vmatpush2.msra.mxu0 0.0
      %364 = vmatprep.subr.mxu0 0.0
      %365 = vmatpush2.msra.mxu0 0.0
      %366 = vmatprep.subr.mxu0 0.0
      %367 = vmatpush2.msra.mxu0 0.0
      %368 = vmatprep.subr.mxu0 0.0
      %369 = vmatpush2.msra.mxu0 0.0
      %370 = vmatprep.subr.mxu0 0.0
      %371 = vmatpush2.msra.mxu0 0.0
      %372 = vmatprep.mubr.f32.mxu0 0.0
      %373 = vmatmul.mubr.f32.gmra.mxu0 %v281
      %v374 = vpop.f32.mrf.mxu0
      %v375 = vadd.f32 0.0, %v374
      %v376 = vpop.f32.mrf.mxu0
      %377 = vmatprep.mubr.f32.mxu0 0.0
      %378 = vmatmul.mubr.f32.gmra.mxu0 %v284
      %v379 = vpop.f32.mrf.mxu0
      %v380 = vadd.f32 0.0, %v379
      %v381 = vpop.f32.mrf.mxu0
      %382 = vmatprep.mubr.f32.mxu0 0.0
      %383 = vmatmul.mubr.f32.gmra.mxu0 %v287
      %v384 = vpop.f32.mrf.mxu0
      %v385 = vadd.f32 0.0, %v384
      %v386 = vpop.f32.mrf.mxu0
      %387 = vmatprep.mubr.f32.mxu0 0.0
      %388 = vmatmul.mubr.f32.gmra.mxu0 %v290
      %v389 = vpop.f32.mrf.mxu0
      %v390 = vadd.f32 0.0, %v389
      %v391 = vpop.f32.mrf.mxu0
      %392 = vmatprep.mubr.f32.mxu0 0.0
      %393 = vmatmul.mubr.f32.gmra.mxu0 %v293
      %v394 = vpop.f32.mrf.mxu0
      %v395 = vadd.f32 0.0, %v394
      %v396 = vpop.f32.mrf.mxu0
      %397 = vmatprep.mubr.f32.mxu0 0.0
      %398 = vmatmul.mubr.f32.gmra.mxu0 %v296
      %v399 = vpop.f32.mrf.mxu0
      %v400 = vadd.f32 0.0, %v399
      %v401 = vpop.f32.mrf.mxu0
      %402 = vmatprep.mubr.f32.mxu0 0.0
      %403 = vmatmul.mubr.f32.gmra.mxu0 %v299
      %v404 = vpop.f32.mrf.mxu0
      %v405 = vadd.f32 0.0, %v404
      %v406 = vpop.f32.mrf.mxu0
      %407 = vmatprep.mubr.f32.mxu0 0.0
      %408 = vmatmul.mubr.f32.gmra.mxu0 %v302
      %v409 = vpop.f32.mrf.mxu0
      %v410 = vadd.f32 0.0, %v409
      %v411 = vpop.f32.mrf.mxu0
      %412 = vdwg.mxu0
      %v414 = vsel %vm279, %v225, 0
      %v417 = vsel %vm279, %v227, 0
      %v420 = vsel %vm279, %v229, 0
      %v423 = vsel %vm279, %v231, 0
      %v426 = vsel %vm279, %v233, 0
      %v429 = vsel %vm279, %v235, 0
      %v432 = vsel %vm279, %v237, 0
      %v435 = vsel %vm279, %v239, 0
      %v438 = vsel %vm304, %v276, 0
      %440 = vmatprep.subr.mxu0 0.0
      %441 = vmatpush1.msra.mxu0 0.0
      %442 = vmatprep.subr.mxu0 0.0
      %443 = vmatpush1.msra.mxu0 0.0
      %444 = vmatprep.subr.mxu0 0.0
      %445 = vmatpush1.msra.mxu0 0.0
      %446 = vmatprep.subr.mxu0 0.0
      %447 = vmatpush1.msra.mxu0 0.0
      %448 = vmatprep.subr.mxu0 0.0
      %449 = vmatpush1.msra.mxu0 0.0
      %450 = vmatprep.subr.mxu0 0.0
      %451 = vmatpush1.msra.mxu0 0.0
      %452 = vmatprep.subr.mxu0 0.0
      %453 = vmatpush1.msra.mxu0 0.0
      %454 = vmatprep.subr.mxu0 0.0
      %455 = vmatpush1.msra.mxu0 0.0
      %456 = vmatprep.subr.mxu0 0.0
      %457 = vmatpush1.msra.mxu0 0.0
      %458 = vmatprep.subr.mxu0 0.0
      %459 = vmatpush1.msra.mxu0 0.0
      %460 = vmatprep.subr.mxu0 0.0
      %461 = vmatpush1.msra.mxu0 0.0
      %462 = vmatprep.subr.mxu0 0.0
      %463 = vmatpush1.msra.mxu0 0.0
      %464 = vmatprep.subr.mxu0 0.0
      %465 = vmatpush1.msra.mxu0 0.0
      %466 = vmatprep.subr.mxu0 0.0
      %467 = vmatpush1.msra.mxu0 0.0
      %468 = vmatprep.subr.mxu0 0.0
      %469 = vmatpush1.msra.mxu0 0.0
      %470 = vmatprep.subr.mxu0 0.0
      %471 = vmatpush1.msra.mxu0 %v438
      %472 = vmatprep.subr.mxu0 0.0
      %473 = vmatpush2.msra.mxu0 0.0
      %474 = vmatprep.subr.mxu0 0.0
      %475 = vmatpush2.msra.mxu0 0.0
      %476 = vmatprep.subr.mxu0 0.0
      %477 = vmatpush2.msra.mxu0 0.0
      %478 = vmatprep.subr.mxu0 0.0
      %479 = vmatpush2.msra.mxu0 0.0
      %480 = vmatprep.subr.mxu0 0.0
      %481 = vmatpush2.msra.mxu0 0.0
      %482 = vmatprep.subr.mxu0 0.0
      %483 = vmatpush2.msra.mxu0 0.0
      %484 = vmatprep.subr.mxu0 0.0
      %485 = vmatpush2.msra.mxu0 0.0
      %486 = vmatprep.subr.mxu0 0.0
      %487 = vmatpush2.msra.mxu0 0.0
      %488 = vmatprep.subr.mxu0 0.0
      %489 = vmatpush2.msra.mxu0 0.0
      %490 = vmatprep.subr.mxu0 0.0
      %491 = vmatpush2.msra.mxu0 0.0
      %492 = vmatprep.subr.mxu0 0.0
      %493 = vmatpush2.msra.mxu0 0.0
      %494 = vmatprep.subr.mxu0 0.0
      %495 = vmatpush2.msra.mxu0 0.0
      %496 = vmatprep.subr.mxu0 0.0
      %497 = vmatpush2.msra.mxu0 0.0
      %498 = vmatprep.subr.mxu0 0.0
      %499 = vmatpush2.msra.mxu0 0.0
      %500 = vmatprep.subr.mxu0 0.0
      %501 = vmatpush2.msra.mxu0 0.0
      %502 = vmatprep.subr.mxu0 0.0
      %503 = vmatpush2.msra.mxu0 0.0
      %504 = vmatprep.mubr.f32.mxu0 0.0
      %505 = vmatmul.mubr.f32.gmra.mxu0 %v414
      %v506 = vpop.f32.mrf.mxu0
      %v507 = vadd.f32 %v375, %v506
      %v508 = vpop.f32.mrf.mxu0
      %509 = vmatprep.mubr.f32.mxu0 0.0
      %510 = vmatmul.mubr.f32.gmra.mxu0 %v417
      %v511 = vpop.f32.mrf.mxu0
      %v512 = vadd.f32 %v380, %v511
      %v513 = vpop.f32.mrf.mxu0
      %514 = vmatprep.mubr.f32.mxu0 0.0
      %515 = vmatmul.mubr.f32.gmra.mxu0 %v420
      %v516 = vpop.f32.mrf.mxu0
      %v517 = vadd.f32 %v385, %v516
      %v518 = vpop.f32.mrf.mxu0
      %519 = vmatprep.mubr.f32.mxu0 0.0
      %520 = vmatmul.mubr.f32.gmra.mxu0 %v423
      %v521 = vpop.f32.mrf.mxu0
      %v522 = vadd.f32 %v390, %v521
      %v523 = vpop.f32.mrf.mxu0
      %524 = vmatprep.mubr.f32.mxu0 0.0
      %525 = vmatmul.mubr.f32.gmra.mxu0 %v426
      %v526 = vpop.f32.mrf.mxu0
      %v527 = vadd.f32 %v395, %v526
      %v528 = vpop.f32.mrf.mxu0
      %529 = vmatprep.mubr.f32.mxu0 0.0
      %530 = vmatmul.mubr.f32.gmra.mxu0 %v429
      %v531 = vpop.f32.mrf.mxu0
      %v532 = vadd.f32 %v400, %v531
      %v533 = vpop.f32.mrf.mxu0
      %534 = vmatprep.mubr.f32.mxu0 0.0
      %535 = vmatmul.mubr.f32.gmra.mxu0 %v432
      %v536 = vpop.f32.mrf.mxu0
      %v537 = vadd.f32 %v405, %v536
      %v538 = vpop.f32.mrf.mxu0
      %539 = vmatprep.mubr.f32.mxu0 0.0
      %540 = vmatmul.mubr.f32.gmra.mxu0 %v435
      %v541 = vpop.f32.mrf.mxu0
      %v542 = vadd.f32 %v410, %v541
      %v543 = vpop.f32.mrf.mxu0
      %544 = vdwg.mxu0
      %vm553 = vcmask 1046528
      %v554 = vrot.slane %v225, 1
      %v555 = vrot.slane %v226, 1
      %v556 = vsel %vm553, %v554, %v555
      %v557 = vrot.slane %v227, 1
      %v558 = vrot.slane %v228, 1
      %v559 = vsel %vm553, %v557, %v558
      %v560 = vrot.slane %v229, 1
      %v561 = vrot.slane %v230, 1
      %v562 = vsel %vm553, %v560, %v561
      %v563 = vrot.slane %v231, 1
      %v564 = vrot.slane %v232, 1
      %v565 = vsel %vm553, %v563, %v564
      %v566 = vrot.slane %v233, 1
      %v567 = vrot.slane %v234, 1
      %v568 = vsel %vm553, %v566, %v567
      %v569 = vrot.slane %v235, 1
      %v570 = vrot.slane %v236, 1
      %v571 = vsel %vm553, %v569, %v570
      %v572 = vrot.slane %v237, 1
      %v573 = vrot.slane %v238, 1
      %v574 = vsel %vm553, %v572, %v573
      %v575 = vrot.slane %v239, 1
      %v576 = vrot.slane %v240, 1
      %v577 = vsel %vm553, %v575, %v576
      %s578 = scalar_lea.vmem %s1, 8
      %v579 = vld [vmem:[%s578] sm:$0xf]
      %v580 = vsel %vm279, %v556, 0
      %v582 = vsel %vm279, %v559, 0
      %v584 = vsel %vm279, %v562, 0
      %v586 = vsel %vm279, %v565, 0
      %v588 = vsel %vm279, %v568, 0
      %v590 = vsel %vm279, %v571, 0
      %v592 = vsel %vm279, %v574, 0
      %v594 = vsel %vm279, %v577, 0
      %v597 = vsel %vm304, %v579, 0
      %599 = vmatprep.subr.mxu0 0.0
      %600 = vmatpush1.msra.mxu0 0.0
      %601 = vmatprep.subr.mxu0 0.0
      %602 = vmatpush1.msra.mxu0 0.0
      %603 = vmatprep.subr.mxu0 0.0
      %604 = vmatpush1.msra.mxu0 0.0
      %605 = vmatprep.subr.mxu0 0.0
      %606 = vmatpush1.msra.mxu0 0.0
      %607 = vmatprep.subr.mxu0 0.0
      %608 = vmatpush1.msra.mxu0 0.0
      %609 = vmatprep.subr.mxu0 0.0
      %610 = vmatpush1.msra.mxu0 0.0
      %611 = vmatprep.subr.mxu0 0.0
      %612 = vmatpush1.msra.mxu0 0.0
      %613 = vmatprep.subr.mxu0 0.0
      %614 = vmatpush1.msra.mxu0 0.0
      %615 = vmatprep.subr.mxu0 0.0
      %616 = vmatpush1.msra.mxu0 0.0
      %617 = vmatprep.subr.mxu0 0.0
      %618 = vmatpush1.msra.mxu0 0.0
      %619 = vmatprep.subr.mxu0 0.0
      %620 = vmatpush1.msra.mxu0 0.0
      %621 = vmatprep.subr.mxu0 0.0
      %622 = vmatpush1.msra.mxu0 0.0
      %623 = vmatprep.subr.mxu0 0.0
      %624 = vmatpush1.msra.mxu0 0.0
      %625 = vmatprep.subr.mxu0 0.0
      %626 = vmatpush1.msra.mxu0 0.0
      %627 = vmatprep.subr.mxu0 0.0
      %628 = vmatpush1.msra.mxu0 0.0
      %629 = vmatprep.subr.mxu0 0.0
      %630 = vmatpush1.msra.mxu0 %v597
      %631 = vmatprep.subr.mxu0 0.0
      %632 = vmatpush2.msra.mxu0 0.0
      %633 = vmatprep.subr.mxu0 0.0
      %634 = vmatpush2.msra.mxu0 0.0
      %635 = vmatprep.subr.mxu0 0.0
      %636 = vmatpush2.msra.mxu0 0.0
      %637 = vmatprep.subr.mxu0 0.0
      %638 = vmatpush2.msra.mxu0 0.0
      %639 = vmatprep.subr.mxu0 0.0
      %640 = vmatpush2.msra.mxu0 0.0
      %641 = vmatprep.subr.mxu0 0.0
      %642 = vmatpush2.msra.mxu0 0.0
      %643 = vmatprep.subr.mxu0 0.0
      %644 = vmatpush2.msra.mxu0 0.0
      %645 = vmatprep.subr.mxu0 0.0
      %646 = vmatpush2.msra.mxu0 0.0
      %647 = vmatprep.subr.mxu0 0.0
      %648 = vmatpush2.msra.mxu0 0.0
      %649 = vmatprep.subr.mxu0 0.0
      %650 = vmatpush2.msra.mxu0 0.0
      %651 = vmatprep.subr.mxu0 0.0
      %652 = vmatpush2.msra.mxu0 0.0
      %653 = vmatprep.subr.mxu0 0.0
      %654 = vmatpush2.msra.mxu0 0.0
      %655 = vmatprep.subr.mxu0 0.0
      %656 = vmatpush2.msra.mxu0 0.0
      %657 = vmatprep.subr.mxu0 0.0
      %658 = vmatpush2.msra.mxu0 0.0
      %659 = vmatprep.subr.mxu0 0.0
      %660 = vmatpush2.msra.mxu0 0.0
      %661 = vmatprep.subr.mxu0 0.0
      %662 = vmatpush2.msra.mxu0 0.0
      %663 = vmatprep.mubr.f32.mxu0 0.0
      %664 = vmatmul.mubr.f32.gmra.mxu0 %v580
      %v665 = vpop.f32.mrf.mxu0
      %v666 = vadd.f32 0.0, %v665
      %v667 = vpop.f32.mrf.mxu0
      %668 = vmatprep.mubr.f32.mxu0 0.0
      %669 = vmatmul.mubr.f32.gmra.mxu0 %v582
      %v670 = vpop.f32.mrf.mxu0
      %v671 = vadd.f32 0.0, %v670
      %v672 = vpop.f32.mrf.mxu0
      %673 = vmatprep.mubr.f32.mxu0 0.0
      %674 = vmatmul.mubr.f32.gmra.mxu0 %v584
      %v675 = vpop.f32.mrf.mxu0
      %v676 = vadd.f32 0.0, %v675
      %v677 = vpop.f32.mrf.mxu0
      %678 = vmatprep.mubr.f32.mxu0 0.0
      %679 = vmatmul.mubr.f32.gmra.mxu0 %v586
      %v680 = vpop.f32.mrf.mxu0
      %v681 = vadd.f32 0.0, %v680
      %v682 = vpop.f32.mrf.mxu0
      %683 = vmatprep.mubr.f32.mxu0 0.0
      %684 = vmatmul.mubr.f32.gmra.mxu0 %v588
      %v685 = vpop.f32.mrf.mxu0
      %v686 = vadd.f32 0.0, %v685
      %v687 = vpop.f32.mrf.mxu0
      %688 = vmatprep.mubr.f32.mxu0 0.0
      %689 = vmatmul.mubr.f32.gmra.mxu0 %v590
      %v690 = vpop.f32.mrf.mxu0
      %v691 = vadd.f32 0.0, %v690
      %v692 = vpop.f32.mrf.mxu0
      %693 = vmatprep.mubr.f32.mxu0 0.0
      %694 = vmatmul.mubr.f32.gmra.mxu0 %v592
      %v695 = vpop.f32.mrf.mxu0
      %v696 = vadd.f32 0.0, %v695
      %v697 = vpop.f32.mrf.mxu0
      %698 = vmatprep.mubr.f32.mxu0 0.0
      %699 = vmatmul.mubr.f32.gmra.mxu0 %v594
      %v700 = vpop.f32.mrf.mxu0
      %v701 = vadd.f32 0.0, %v700
      %v702 = vpop.f32.mrf.mxu0
      %703 = vdwg.mxu0
      %v704 = vadd.f32 %v507, %v666
      %v705 = vadd.f32 %v512, %v671
      %v706 = vadd.f32 %v517, %v676
      %v707 = vadd.f32 %v522, %v681
      %v708 = vadd.f32 %v527, %v686
      %v709 = vadd.f32 %v532, %v691
      %v710 = vadd.f32 %v537, %v696
      %v711 = vadd.f32 %v542, %v701
      %s712 = scalar_lea.vmem %s1, 12
      %v713 = vld [vmem:[%s712] sm:$0xf]
      %v715 = vsel %vm279, %v252, 0
      %v718 = vsel %vm279, %v254, 0
      %v721 = vsel %vm279, %v256, 0
      %v724 = vsel %vm279, %v258, 0
      %v727 = vsel %vm279, %v260, 0
      %v730 = vsel %vm279, %v262, 0
      %v733 = vsel %vm279, %v264, 0
      %v736 = vsel %vm279, %v266, 0
      %v739 = vsel %vm304, %v713, 0
      %741 = vmatprep.subr.mxu0 0.0
      %742 = vmatpush1.msra.mxu0 0.0
      %743 = vmatprep.subr.mxu0 0.0
      %744 = vmatpush1.msra.mxu0 0.0
      %745 = vmatprep.subr.mxu0 0.0
      %746 = vmatpush1.msra.mxu0 0.0
      %747 = vmatprep.subr.mxu0 0.0
      %748 = vmatpush1.msra.mxu0 0.0
      %749 = vmatprep.subr.mxu0 0.0
      %750 = vmatpush1.msra.mxu0 0.0
      %751 = vmatprep.subr.mxu0 0.0
      %752 = vmatpush1.msra.mxu0 0.0
      %753 = vmatprep.subr.mxu0 0.0
      %754 = vmatpush1.msra.mxu0 0.0
      %755 = vmatprep.subr.mxu0 0.0
      %756 = vmatpush1.msra.mxu0 0.0
      %757 = vmatprep.subr.mxu0 0.0
      %758 = vmatpush1.msra.mxu0 0.0
      %759 = vmatprep.subr.mxu0 0.0
      %760 = vmatpush1.msra.mxu0 0.0
      %761 = vmatprep.subr.mxu0 0.0
      %762 = vmatpush1.msra.mxu0 0.0
      %763 = vmatprep.subr.mxu0 0.0
      %764 = vmatpush1.msra.mxu0 0.0
      %765 = vmatprep.subr.mxu0 0.0
      %766 = vmatpush1.msra.mxu0 0.0
      %767 = vmatprep.subr.mxu0 0.0
      %768 = vmatpush1.msra.mxu0 0.0
      %769 = vmatprep.subr.mxu0 0.0
      %770 = vmatpush1.msra.mxu0 0.0
      %771 = vmatprep.subr.mxu0 0.0
      %772 = vmatpush1.msra.mxu0 %v739
      %773 = vmatprep.subr.mxu0 0.0
      %774 = vmatpush2.msra.mxu0 0.0
      %775 = vmatprep.subr.mxu0 0.0
      %776 = vmatpush2.msra.mxu0 0.0
      %777 = vmatprep.subr.mxu0 0.0
      %778 = vmatpush2.msra.mxu0 0.0
      %779 = vmatprep.subr.mxu0 0.0
      %780 = vmatpush2.msra.mxu0 0.0
      %781 = vmatprep.subr.mxu0 0.0
      %782 = vmatpush2.msra.mxu0 0.0
      %783 = vmatprep.subr.mxu0 0.0
      %784 = vmatpush2.msra.mxu0 0.0
      %785 = vmatprep.subr.mxu0 0.0
      %786 = vmatpush2.msra.mxu0 0.0
      %787 = vmatprep.subr.mxu0 0.0
      %788 = vmatpush2.msra.mxu0 0.0
      %789 = vmatprep.subr.mxu0 0.0
      %790 = vmatpush2.msra.mxu0 0.0
      %791 = vmatprep.subr.mxu0 0.0
      %792 = vmatpush2.msra.mxu0 0.0
      %793 = vmatprep.subr.mxu0 0.0
      %794 = vmatpush2.msra.mxu0 0.0
      %795 = vmatprep.subr.mxu0 0.0
      %796 = vmatpush2.msra.mxu0 0.0
      %797 = vmatprep.subr.mxu0 0.0
      %798 = vmatpush2.msra.mxu0 0.0
      %799 = vmatprep.subr.mxu0 0.0
      %800 = vmatpush2.msra.mxu0 0.0
      %801 = vmatprep.subr.mxu0 0.0
      %802 = vmatpush2.msra.mxu0 0.0
      %803 = vmatprep.subr.mxu0 0.0
      %804 = vmatpush2.msra.mxu0 0.0
      %805 = vmatprep.mubr.f32.mxu0 0.0
      %806 = vmatmul.mubr.f32.gmra.mxu0 %v715
      %v807 = vpop.f32.mrf.mxu0
      %v808 = vadd.f32 0.0, %v807
      %v809 = vpop.f32.mrf.mxu0
      %810 = vmatprep.mubr.f32.mxu0 0.0
      %811 = vmatmul.mubr.f32.gmra.mxu0 %v718
      %v812 = vpop.f32.mrf.mxu0
      %v813 = vadd.f32 0.0, %v812
      %v814 = vpop.f32.mrf.mxu0
      %815 = vmatprep.mubr.f32.mxu0 0.0
      %816 = vmatmul.mubr.f32.gmra.mxu0 %v721
      %v817 = vpop.f32.mrf.mxu0
      %v818 = vadd.f32 0.0, %v817
      %v819 = vpop.f32.mrf.mxu0
      %820 = vmatprep.mubr.f32.mxu0 0.0
      %821 = vmatmul.mubr.f32.gmra.mxu0 %v724
      %v822 = vpop.f32.mrf.mxu0
      %v823 = vadd.f32 0.0, %v822
      %v824 = vpop.f32.mrf.mxu0
      %825 = vmatprep.mubr.f32.mxu0 0.0
      %826 = vmatmul.mubr.f32.gmra.mxu0 %v727
      %v827 = vpop.f32.mrf.mxu0
      %v828 = vadd.f32 0.0, %v827
      %v829 = vpop.f32.mrf.mxu0
      %830 = vmatprep.mubr.f32.mxu0 0.0
      %831 = vmatmul.mubr.f32.gmra.mxu0 %v730
      %v832 = vpop.f32.mrf.mxu0
      %v833 = vadd.f32 0.0, %v832
      %v834 = vpop.f32.mrf.mxu0
      %835 = vmatprep.mubr.f32.mxu0 0.0
      %836 = vmatmul.mubr.f32.gmra.mxu0 %v733
      %v837 = vpop.f32.mrf.mxu0
      %v838 = vadd.f32 0.0, %v837
      %v839 = vpop.f32.mrf.mxu0
      %840 = vmatprep.mubr.f32.mxu0 0.0
      %841 = vmatmul.mubr.f32.gmra.mxu0 %v736
      %v842 = vpop.f32.mrf.mxu0
      %v843 = vadd.f32 0.0, %v842
      %v844 = vpop.f32.mrf.mxu0
      %845 = vdwg.mxu0
      %v846 = vadd.f32 %v704, %v808
      %v847 = vadd.f32 %v705, %v813
      %v848 = vadd.f32 %v706, %v818
      %v849 = vadd.f32 %v707, %v823
      %v850 = vadd.f32 %v708, %v828
      %v851 = vadd.f32 %v709, %v833
      %v852 = vadd.f32 %v710, %v838
      %v853 = vadd.f32 %v711, %v843
      %s854 = scalar_lea.vmem %s1, 16
      %v855 = vld [vmem:[%s854] sm:$0xf]
      %v857 = vsel %vm279, %v268, 0
      %v860 = vsel %vm279, %v269, 0
      %v863 = vsel %vm279, %v270, 0
      %v866 = vsel %vm279, %v271, 0
      %v869 = vsel %vm279, %v272, 0
      %v872 = vsel %vm279, %v273, 0
      %v875 = vsel %vm279, %v274, 0
      %v878 = vsel %vm279, %v275, 0
      %v881 = vsel %vm304, %v855, 0
      %883 = vmatprep.subr.mxu0 0.0
      %884 = vmatpush1.msra.mxu0 0.0
      %885 = vmatprep.subr.mxu0 0.0
      %886 = vmatpush1.msra.mxu0 0.0
      %887 = vmatprep.subr.mxu0 0.0
      %888 = vmatpush1.msra.mxu0 0.0
      %889 = vmatprep.subr.mxu0 0.0
      %890 = vmatpush1.msra.mxu0 0.0
      %891 = vmatprep.subr.mxu0 0.0
      %892 = vmatpush1.msra.mxu0 0.0
      %893 = vmatprep.subr.mxu0 0.0
      %894 = vmatpush1.msra.mxu0 0.0
      %895 = vmatprep.subr.mxu0 0.0
      %896 = vmatpush1.msra.mxu0 0.0
      %897 = vmatprep.subr.mxu0 0.0
      %898 = vmatpush1.msra.mxu0 0.0
      %899 = vmatprep.subr.mxu0 0.0
      %900 = vmatpush1.msra.mxu0 0.0
      %901 = vmatprep.subr.mxu0 0.0
      %902 = vmatpush1.msra.mxu0 0.0
      %903 = vmatprep.subr.mxu0 0.0
      %904 = vmatpush1.msra.mxu0 0.0
      %905 = vmatprep.subr.mxu0 0.0
      %906 = vmatpush1.msra.mxu0 0.0
      %907 = vmatprep.subr.mxu0 0.0
      %908 = vmatpush1.msra.mxu0 0.0
      %909 = vmatprep.subr.mxu0 0.0
      %910 = vmatpush1.msra.mxu0 0.0
      %911 = vmatprep.subr.mxu0 0.0
      %912 = vmatpush1.msra.mxu0 0.0
      %913 = vmatprep.subr.mxu0 0.0
      %914 = vmatpush1.msra.mxu0 %v881
      %915 = vmatprep.subr.mxu0 0.0
      %916 = vmatpush2.msra.mxu0 0.0
      %917 = vmatprep.subr.mxu0 0.0
      %918 = vmatpush2.msra.mxu0 0.0
      %919 = vmatprep.subr.mxu0 0.0
      %920 = vmatpush2.msra.mxu0 0.0
      %921 = vmatprep.subr.mxu0 0.0
      %922 = vmatpush2.msra.mxu0 0.0
      %923 = vmatprep.subr.mxu0 0.0
      %924 = vmatpush2.msra.mxu0 0.0
      %925 = vmatprep.subr.mxu0 0.0
      %926 = vmatpush2.msra.mxu0 0.0
      %927 = vmatprep.subr.mxu0 0.0
      %928 = vmatpush2.msra.mxu0 0.0
      %929 = vmatprep.subr.mxu0 0.0
      %930 = vmatpush2.msra.mxu0 0.0
      %931 = vmatprep.subr.mxu0 0.0
      %932 = vmatpush2.msra.mxu0 0.0
      %933 = vmatprep.subr.mxu0 0.0
      %934 = vmatpush2.msra.mxu0 0.0
      %935 = vmatprep.subr.mxu0 0.0
      %936 = vmatpush2.msra.mxu0 0.0
      %937 = vmatprep.subr.mxu0 0.0
      %938 = vmatpush2.msra.mxu0 0.0
      %939 = vmatprep.subr.mxu0 0.0
      %940 = vmatpush2.msra.mxu0 0.0
      %941 = vmatprep.subr.mxu0 0.0
      %942 = vmatpush2.msra.mxu0 0.0
      %943 = vmatprep.subr.mxu0 0.0
      %944 = vmatpush2.msra.mxu0 0.0
      %945 = vmatprep.subr.mxu0 0.0
      %946 = vmatpush2.msra.mxu0 0.0
      %947 = vmatprep.mubr.f32.mxu0 0.0
      %948 = vmatmul.mubr.f32.gmra.mxu0 %v857
      %v949 = vpop.f32.mrf.mxu0
      %v950 = vadd.f32 0.0, %v949
      %v951 = vpop.f32.mrf.mxu0
      %952 = vmatprep.mubr.f32.mxu0 0.0
      %953 = vmatmul.mubr.f32.gmra.mxu0 %v860
      %v954 = vpop.f32.mrf.mxu0
      %v955 = vadd.f32 0.0, %v954
      %v956 = vpop.f32.mrf.mxu0
      %957 = vmatprep.mubr.f32.mxu0 0.0
      %958 = vmatmul.mubr.f32.gmra.mxu0 %v863
      %v959 = vpop.f32.mrf.mxu0
      %v960 = vadd.f32 0.0, %v959
      %v961 = vpop.f32.mrf.mxu0
      %962 = vmatprep.mubr.f32.mxu0 0.0
      %963 = vmatmul.mubr.f32.gmra.mxu0 %v866
      %v964 = vpop.f32.mrf.mxu0
      %v965 = vadd.f32 0.0, %v964
      %v966 = vpop.f32.mrf.mxu0
      %967 = vmatprep.mubr.f32.mxu0 0.0
      %968 = vmatmul.mubr.f32.gmra.mxu0 %v869
      %v969 = vpop.f32.mrf.mxu0
      %v970 = vadd.f32 0.0, %v969
      %v971 = vpop.f32.mrf.mxu0
      %972 = vmatprep.mubr.f32.mxu0 0.0
      %973 = vmatmul.mubr.f32.gmra.mxu0 %v872
      %v974 = vpop.f32.mrf.mxu0
      %v975 = vadd.f32 0.0, %v974
      %v976 = vpop.f32.mrf.mxu0
      %977 = vmatprep.mubr.f32.mxu0 0.0
      %978 = vmatmul.mubr.f32.gmra.mxu0 %v875
      %v979 = vpop.f32.mrf.mxu0
      %v980 = vadd.f32 0.0, %v979
      %v981 = vpop.f32.mrf.mxu0
      %982 = vmatprep.mubr.f32.mxu0 0.0
      %983 = vmatmul.mubr.f32.gmra.mxu0 %v878
      %v984 = vpop.f32.mrf.mxu0
      %v985 = vadd.f32 0.0, %v984
      %v986 = vpop.f32.mrf.mxu0
      %987 = vdwg.mxu0
      %v988 = vadd.f32 %v846, %v950
      %v989 = vadd.f32 %v847, %v955
      %v990 = vadd.f32 %v848, %v960
      %v991 = vadd.f32 %v849, %v965
      %v992 = vadd.f32 %v850, %v970
      %v993 = vadd.f32 %v851, %v975
      %v994 = vadd.f32 %v852, %v980
      %v995 = vadd.f32 %v853, %v985
      %v1004 = vrot.slane %v252, 1
      %v1005 = vrot.slane %v253, 1
      %v1006 = vsel %vm553, %v1004, %v1005
      %v1007 = vrot.slane %v254, 1
      %v1008 = vrot.slane %v255, 1
      %v1009 = vsel %vm553, %v1007, %v1008
      %v1010 = vrot.slane %v256, 1
      %v1011 = vrot.slane %v257, 1
      %v1012 = vsel %vm553, %v1010, %v1011
      %v1013 = vrot.slane %v258, 1
      %v1014 = vrot.slane %v259, 1
      %v1015 = vsel %vm553, %v1013, %v1014
      %v1016 = vrot.slane %v260, 1
      %v1017 = vrot.slane %v261, 1
      %v1018 = vsel %vm553, %v1016, %v1017
      %v1019 = vrot.slane %v262, 1
      %v1020 = vrot.slane %v263, 1
      %v1021 = vsel %vm553, %v1019, %v1020
      %v1022 = vrot.slane %v264, 1
      %v1023 = vrot.slane %v265, 1
      %v1024 = vsel %vm553, %v1022, %v1023
      %v1025 = vrot.slane %v266, 1
      %v1026 = vrot.slane %v267, 1
      %v1027 = vsel %vm553, %v1025, %v1026
      %s1028 = scalar_lea.vmem %s1, 20
      %v1029 = vld [vmem:[%s1028] sm:$0xf]
      %v1030 = vsel %vm279, %v1006, 0
      %v1032 = vsel %vm279, %v1009, 0
      %v1034 = vsel %vm279, %v1012, 0
      %v1036 = vsel %vm279, %v1015, 0
      %v1038 = vsel %vm279, %v1018, 0
      %v1040 = vsel %vm279, %v1021, 0
      %v1042 = vsel %vm279, %v1024, 0
      %v1044 = vsel %vm279, %v1027, 0
      %v1047 = vsel %vm304, %v1029, 0
      %1049 = vmatprep.subr.mxu0 0.0
      %1050 = vmatpush1.msra.mxu0 0.0
      %1051 = vmatprep.subr.mxu0 0.0
      %1052 = vmatpush1.msra.mxu0 0.0
      %1053 = vmatprep.subr.mxu0 0.0
      %1054 = vmatpush1.msra.mxu0 0.0
      %1055 = vmatprep.subr.mxu0 0.0
      %1056 = vmatpush1.msra.mxu0 0.0
      %1057 = vmatprep.subr.mxu0 0.0
      %1058 = vmatpush1.msra.mxu0 0.0
      %1059 = vmatprep.subr.mxu0 0.0
      %1060 = vmatpush1.msra.mxu0 0.0
      %1061 = vmatprep.subr.mxu0 0.0
      %1062 = vmatpush1.msra.mxu0 0.0
      %1063 = vmatprep.subr.mxu0 0.0
      %1064 = vmatpush1.msra.mxu0 0.0
      %1065 = vmatprep.subr.mxu0 0.0
      %1066 = vmatpush1.msra.mxu0 0.0
      %1067 = vmatprep.subr.mxu0 0.0
      %1068 = vmatpush1.msra.mxu0 0.0
      %1069 = vmatprep.subr.mxu0 0.0
      %1070 = vmatpush1.msra.mxu0 0.0
      %1071 = vmatprep.subr.mxu0 0.0
      %1072 = vmatpush1.msra.mxu0 0.0
      %1073 = vmatprep.subr.mxu0 0.0
      %1074 = vmatpush1.msra.mxu0 0.0
      %1075 = vmatprep.subr.mxu0 0.0
      %1076 = vmatpush1.msra.mxu0 0.0
      %1077 = vmatprep.subr.mxu0 0.0
      %1078 = vmatpush1.msra.mxu0 0.0
      %1079 = vmatprep.subr.mxu0 0.0
      %1080 = vmatpush1.msra.mxu0 %v1047
      %1081 = vmatprep.subr.mxu0 0.0
      %1082 = vmatpush2.msra.mxu0 0.0
      %1083 = vmatprep.subr.mxu0 0.0
      %1084 = vmatpush2.msra.mxu0 0.0
      %1085 = vmatprep.subr.mxu0 0.0
      %1086 = vmatpush2.msra.mxu0 0.0
      %1087 = vmatprep.subr.mxu0 0.0
      %1088 = vmatpush2.msra.mxu0 0.0
      %1089 = vmatprep.subr.mxu0 0.0
      %1090 = vmatpush2.msra.mxu0 0.0
      %1091 = vmatprep.subr.mxu0 0.0
      %1092 = vmatpush2.msra.mxu0 0.0
      %1093 = vmatprep.subr.mxu0 0.0
      %1094 = vmatpush2.msra.mxu0 0.0
      %1095 = vmatprep.subr.mxu0 0.0
      %1096 = vmatpush2.msra.mxu0 0.0
      %1097 = vmatprep.subr.mxu0 0.0
      %1098 = vmatpush2.msra.mxu0 0.0
      %1099 = vmatprep.subr.mxu0 0.0
      %1100 = vmatpush2.msra.mxu0 0.0
      %1101 = vmatprep.subr.mxu0 0.0
      %1102 = vmatpush2.msra.mxu0 0.0
      %1103 = vmatprep.subr.mxu0 0.0
      %1104 = vmatpush2.msra.mxu0 0.0
      %1105 = vmatprep.subr.mxu0 0.0
      %1106 = vmatpush2.msra.mxu0 0.0
      %1107 = vmatprep.subr.mxu0 0.0
      %1108 = vmatpush2.msra.mxu0 0.0
      %1109 = vmatprep.subr.mxu0 0.0
      %1110 = vmatpush2.msra.mxu0 0.0
      %1111 = vmatprep.subr.mxu0 0.0
      %1112 = vmatpush2.msra.mxu0 0.0
      %1113 = vmatprep.mubr.f32.mxu0 0.0
      %1114 = vmatmul.mubr.f32.gmra.mxu0 %v1030
      %v1115 = vpop.f32.mrf.mxu0
      %v1116 = vadd.f32 0.0, %v1115
      %v1117 = vpop.f32.mrf.mxu0
      %1118 = vmatprep.mubr.f32.mxu0 0.0
      %1119 = vmatmul.mubr.f32.gmra.mxu0 %v1032
      %v1120 = vpop.f32.mrf.mxu0
      %v1121 = vadd.f32 0.0, %v1120
      %v1122 = vpop.f32.mrf.mxu0
      %1123 = vmatprep.mubr.f32.mxu0 0.0
      %1124 = vmatmul.mubr.f32.gmra.mxu0 %v1034
      %v1125 = vpop.f32.mrf.mxu0
      %v1126 = vadd.f32 0.0, %v1125
      %v1127 = vpop.f32.mrf.mxu0
      %1128 = vmatprep.mubr.f32.mxu0 0.0
      %1129 = vmatmul.mubr.f32.gmra.mxu0 %v1036
      %v1130 = vpop.f32.mrf.mxu0
      %v1131 = vadd.f32 0.0, %v1130
      %v1132 = vpop.f32.mrf.mxu0
      %1133 = vmatprep.mubr.f32.mxu0 0.0
      %1134 = vmatmul.mubr.f32.gmra.mxu0 %v1038
      %v1135 = vpop.f32.mrf.mxu0
      %v1136 = vadd.f32 0.0, %v1135
      %v1137 = vpop.f32.mrf.mxu0
      %1138 = vmatprep.mubr.f32.mxu0 0.0
      %1139 = vmatmul.mubr.f32.gmra.mxu0 %v1040
      %v1140 = vpop.f32.mrf.mxu0
      %v1141 = vadd.f32 0.0, %v1140
      %v1142 = vpop.f32.mrf.mxu0
      %1143 = vmatprep.mubr.f32.mxu0 0.0
      %1144 = vmatmul.mubr.f32.gmra.mxu0 %v1042
      %v1145 = vpop.f32.mrf.mxu0
      %v1146 = vadd.f32 0.0, %v1145
      %v1147 = vpop.f32.mrf.mxu0
      %1148 = vmatprep.mubr.f32.mxu0 0.0
      %1149 = vmatmul.mubr.f32.gmra.mxu0 %v1044
      %v1150 = vpop.f32.mrf.mxu0
      %v1151 = vadd.f32 0.0, %v1150
      %v1152 = vpop.f32.mrf.mxu0
      %1153 = vdwg.mxu0
      %v1154 = vadd.f32 %v988, %v1116
      %v1155 = vadd.f32 %v989, %v1121
      %v1156 = vadd.f32 %v990, %v1126
      %v1157 = vadd.f32 %v991, %v1131
      %v1158 = vadd.f32 %v992, %v1136
      %v1159 = vadd.f32 %v993, %v1141
      %v1160 = vadd.f32 %v994, %v1146
      %v1161 = vadd.f32 %v995, %v1151
      %s1162 = scalar_lea.vmem %s1, 24
      %v1163 = vld [vmem:[%s1162] sm:$0xf]
      %v1165 = vsel %vm279, %v241, 0
      %v1168 = vsel %vm304, %v1163, 0
      %1170 = vmatprep.subr.mxu0 0.0
      %1171 = vmatpush1.msra.mxu0 0.0
      %1172 = vmatprep.subr.mxu0 0.0
      %1173 = vmatpush1.msra.mxu0 0.0
      %1174 = vmatprep.subr.mxu0 0.0
      %1175 = vmatpush1.msra.mxu0 0.0
      %1176 = vmatprep.subr.mxu0 0.0
      %1177 = vmatpush1.msra.mxu0 0.0
      %1178 = vmatprep.subr.mxu0 0.0
      %1179 = vmatpush1.msra.mxu0 0.0
      %1180 = vmatprep.subr.mxu0 0.0
      %1181 = vmatpush1.msra.mxu0 0.0
      %1182 = vmatprep.subr.mxu0 0.0
      %1183 = vmatpush1.msra.mxu0 0.0
      %1184 = vmatprep.subr.mxu0 0.0
      %1185 = vmatpush1.msra.mxu0 0.0
      %1186 = vmatprep.subr.mxu0 0.0
      %1187 = vmatpush1.msra.mxu0 0.0
      %1188 = vmatprep.subr.mxu0 0.0
      %1189 = vmatpush1.msra.mxu0 0.0
      %1190 = vmatprep.subr.mxu0 0.0
      %1191 = vmatpush1.msra.mxu0 0.0
      %1192 = vmatprep.subr.mxu0 0.0
      %1193 = vmatpush1.msra.mxu0 0.0
      %1194 = vmatprep.subr.mxu0 0.0
      %1195 = vmatpush1.msra.mxu0 0.0
      %1196 = vmatprep.subr.mxu0 0.0
      %1197 = vmatpush1.msra.mxu0 0.0
      %1198 = vmatprep.subr.mxu0 0.0
      %1199 = vmatpush1.msra.mxu0 0.0
      %1200 = vmatprep.subr.mxu0 0.0
      %1201 = vmatpush1.msra.mxu0 %v1168
      %1202 = vmatprep.subr.mxu0 0.0
      %1203 = vmatpush2.msra.mxu0 0.0
      %1204 = vmatprep.subr.mxu0 0.0
      %1205 = vmatpush2.msra.mxu0 0.0
      %1206 = vmatprep.subr.mxu0 0.0
      %1207 = vmatpush2.msra.mxu0 0.0
      %1208 = vmatprep.subr.mxu0 0.0
      %1209 = vmatpush2.msra.mxu0 0.0
      %1210 = vmatprep.subr.mxu0 0.0
      %1211 = vmatpush2.msra.mxu0 0.0
      %1212 = vmatprep.subr.mxu0 0.0
      %1213 = vmatpush2.msra.mxu0 0.0
      %1214 = vmatprep.subr.mxu0 0.0
      %1215 = vmatpush2.msra.mxu0 0.0
      %1216 = vmatprep.subr.mxu0 0.0
      %1217 = vmatpush2.msra.mxu0 0.0
      %1218 = vmatprep.subr.mxu0 0.0
      %1219 = vmatpush2.msra.mxu0 0.0
      %1220 = vmatprep.subr.mxu0 0.0
      %1221 = vmatpush2.msra.mxu0 0.0
      %1222 = vmatprep.subr.mxu0 0.0
      %1223 = vmatpush2.msra.mxu0 0.0
      %1224 = vmatprep.subr.mxu0 0.0
      %1225 = vmatpush2.msra.mxu0 0.0
      %1226 = vmatprep.subr.mxu0 0.0
      %1227 = vmatpush2.msra.mxu0 0.0
      %1228 = vmatprep.subr.mxu0 0.0
      %1229 = vmatpush2.msra.mxu0 0.0
      %1230 = vmatprep.subr.mxu0 0.0
      %1231 = vmatpush2.msra.mxu0 0.0
      %1232 = vmatprep.subr.mxu0 0.0
      %1233 = vmatpush2.msra.mxu0 0.0
      %1234 = vmatprep.mubr.f32.mxu0 0.0
      %1235 = vmatmul.mubr.f32.gmra.mxu0 %v417
      %v1236 = vpop.f32.mrf.mxu0
      %v1237 = vadd.f32 0.0, %v1236
      %v1238 = vpop.f32.mrf.mxu0
      %1239 = vmatprep.mubr.f32.mxu0 0.0
      %1240 = vmatmul.mubr.f32.gmra.mxu0 %v420
      %v1241 = vpop.f32.mrf.mxu0
      %v1242 = vadd.f32 0.0, %v1241
      %v1243 = vpop.f32.mrf.mxu0
      %1244 = vmatprep.mubr.f32.mxu0 0.0
      %1245 = vmatmul.mubr.f32.gmra.mxu0 %v423
      %v1246 = vpop.f32.mrf.mxu0
      %v1247 = vadd.f32 0.0, %v1246
      %v1248 = vpop.f32.mrf.mxu0
      %1249 = vmatprep.mubr.f32.mxu0 0.0
      %1250 = vmatmul.mubr.f32.gmra.mxu0 %v426
      %v1251 = vpop.f32.mrf.mxu0
      %v1252 = vadd.f32 0.0, %v1251
      %v1253 = vpop.f32.mrf.mxu0
      %1254 = vmatprep.mubr.f32.mxu0 0.0
      %1255 = vmatmul.mubr.f32.gmra.mxu0 %v429
      %v1256 = vpop.f32.mrf.mxu0
      %v1257 = vadd.f32 0.0, %v1256
      %v1258 = vpop.f32.mrf.mxu0
      %1259 = vmatprep.mubr.f32.mxu0 0.0
      %1260 = vmatmul.mubr.f32.gmra.mxu0 %v432
      %v1261 = vpop.f32.mrf.mxu0
      %v1262 = vadd.f32 0.0, %v1261
      %v1263 = vpop.f32.mrf.mxu0
      %1264 = vmatprep.mubr.f32.mxu0 0.0
      %1265 = vmatmul.mubr.f32.gmra.mxu0 %v435
      %v1266 = vpop.f32.mrf.mxu0
      %v1267 = vadd.f32 0.0, %v1266
      %v1268 = vpop.f32.mrf.mxu0
      %1269 = vmatprep.mubr.f32.mxu0 0.0
      %1270 = vmatmul.mubr.f32.gmra.mxu0 %v1165
      %v1271 = vpop.f32.mrf.mxu0
      %v1272 = vadd.f32 0.0, %v1271
      %v1273 = vpop.f32.mrf.mxu0
      %1274 = vdwg.mxu0
      %v1275 = vadd.f32 %v1154, %v1237
      %v1276 = vadd.f32 %v1155, %v1242
      %v1277 = vadd.f32 %v1156, %v1247
      %v1278 = vadd.f32 %v1157, %v1252
      %v1279 = vadd.f32 %v1158, %v1257
      %v1280 = vadd.f32 %v1159, %v1262
      %v1281 = vadd.f32 %v1160, %v1267
      %v1282 = vadd.f32 %v1161, %v1272
      %s1283 = scalar_lea.vmem %s1, 28
      %v1284 = vld [vmem:[%s1283] sm:$0xf]
      %v1286 = vsel %vm279, %v251, 0
      %v1289 = vsel %vm304, %v1284, 0
      %1291 = vmatprep.subr.mxu0 0.0
      %1292 = vmatpush1.msra.mxu0 0.0
      %1293 = vmatprep.subr.mxu0 0.0
      %1294 = vmatpush1.msra.mxu0 0.0
      %1295 = vmatprep.subr.mxu0 0.0
      %1296 = vmatpush1.msra.mxu0 0.0
      %1297 = vmatprep.subr.mxu0 0.0
      %1298 = vmatpush1.msra.mxu0 0.0
      %1299 = vmatprep.subr.mxu0 0.0
      %1300 = vmatpush1.msra.mxu0 0.0
      %1301 = vmatprep.subr.mxu0 0.0
      %1302 = vmatpush1.msra.mxu0 0.0
      %1303 = vmatprep.subr.mxu0 0.0
      %1304 = vmatpush1.msra.mxu0 0.0
      %1305 = vmatprep.subr.mxu0 0.0
      %1306 = vmatpush1.msra.mxu0 0.0
      %1307 = vmatprep.subr.mxu0 0.0
      %1308 = vmatpush1.msra.mxu0 0.0
      %1309 = vmatprep.subr.mxu0 0.0
      %1310 = vmatpush1.msra.mxu0 0.0
      %1311 = vmatprep.subr.mxu0 0.0
      %1312 = vmatpush1.msra.mxu0 0.0
      %1313 = vmatprep.subr.mxu0 0.0
      %1314 = vmatpush1.msra.mxu0 0.0
      %1315 = vmatprep.subr.mxu0 0.0
      %1316 = vmatpush1.msra.mxu0 0.0
      %1317 = vmatprep.subr.mxu0 0.0
      %1318 = vmatpush1.msra.mxu0 0.0
      %1319 = vmatprep.subr.mxu0 0.0
      %1320 = vmatpush1.msra.mxu0 0.0
      %1321 = vmatprep.subr.mxu0 0.0
      %1322 = vmatpush1.msra.mxu0 %v1289
      %1323 = vmatprep.subr.mxu0 0.0
      %1324 = vmatpush2.msra.mxu0 0.0
      %1325 = vmatprep.subr.mxu0 0.0
      %1326 = vmatpush2.msra.mxu0 0.0
      %1327 = vmatprep.subr.mxu0 0.0
      %1328 = vmatpush2.msra.mxu0 0.0
      %1329 = vmatprep.subr.mxu0 0.0
      %1330 = vmatpush2.msra.mxu0 0.0
      %1331 = vmatprep.subr.mxu0 0.0
      %1332 = vmatpush2.msra.mxu0 0.0
      %1333 = vmatprep.subr.mxu0 0.0
      %1334 = vmatpush2.msra.mxu0 0.0
      %1335 = vmatprep.subr.mxu0 0.0
      %1336 = vmatpush2.msra.mxu0 0.0
      %1337 = vmatprep.subr.mxu0 0.0
      %1338 = vmatpush2.msra.mxu0 0.0
      %1339 = vmatprep.subr.mxu0 0.0
      %1340 = vmatpush2.msra.mxu0 0.0
      %1341 = vmatprep.subr.mxu0 0.0
      %1342 = vmatpush2.msra.mxu0 0.0
      %1343 = vmatprep.subr.mxu0 0.0
      %1344 = vmatpush2.msra.mxu0 0.0
      %1345 = vmatprep.subr.mxu0 0.0
      %1346 = vmatpush2.msra.mxu0 0.0
      %1347 = vmatprep.subr.mxu0 0.0
      %1348 = vmatpush2.msra.mxu0 0.0
      %1349 = vmatprep.subr.mxu0 0.0
      %1350 = vmatpush2.msra.mxu0 0.0
      %1351 = vmatprep.subr.mxu0 0.0
      %1352 = vmatpush2.msra.mxu0 0.0
      %1353 = vmatprep.subr.mxu0 0.0
      %1354 = vmatpush2.msra.mxu0 0.0
      %1355 = vmatprep.mubr.f32.mxu0 0.0
      %1356 = vmatmul.mubr.f32.gmra.mxu0 %v284
      %v1357 = vpop.f32.mrf.mxu0
      %v1358 = vadd.f32 0.0, %v1357
      %v1359 = vpop.f32.mrf.mxu0
      %1360 = vmatprep.mubr.f32.mxu0 0.0
      %1361 = vmatmul.mubr.f32.gmra.mxu0 %v287
      %v1362 = vpop.f32.mrf.mxu0
      %v1363 = vadd.f32 0.0, %v1362
      %v1364 = vpop.f32.mrf.mxu0
      %1365 = vmatprep.mubr.f32.mxu0 0.0
      %1366 = vmatmul.mubr.f32.gmra.mxu0 %v290
      %v1367 = vpop.f32.mrf.mxu0
      %v1368 = vadd.f32 0.0, %v1367
      %v1369 = vpop.f32.mrf.mxu0
      %1370 = vmatprep.mubr.f32.mxu0 0.0
      %1371 = vmatmul.mubr.f32.gmra.mxu0 %v293
      %v1372 = vpop.f32.mrf.mxu0
      %v1373 = vadd.f32 0.0, %v1372
      %v1374 = vpop.f32.mrf.mxu0
      %1375 = vmatprep.mubr.f32.mxu0 0.0
      %1376 = vmatmul.mubr.f32.gmra.mxu0 %v296
      %v1377 = vpop.f32.mrf.mxu0
      %v1378 = vadd.f32 0.0, %v1377
      %v1379 = vpop.f32.mrf.mxu0
      %1380 = vmatprep.mubr.f32.mxu0 0.0
      %1381 = vmatmul.mubr.f32.gmra.mxu0 %v299
      %v1382 = vpop.f32.mrf.mxu0
      %v1383 = vadd.f32 0.0, %v1382
      %v1384 = vpop.f32.mrf.mxu0
      %1385 = vmatprep.mubr.f32.mxu0 0.0
      %1386 = vmatmul.mubr.f32.gmra.mxu0 %v302
      %v1387 = vpop.f32.mrf.mxu0
      %v1388 = vadd.f32 0.0, %v1387
      %v1389 = vpop.f32.mrf.mxu0
      %1390 = vmatprep.mubr.f32.mxu0 0.0
      %1391 = vmatmul.mubr.f32.gmra.mxu0 %v1286
      %v1392 = vpop.f32.mrf.mxu0
      %v1393 = vadd.f32 0.0, %v1392
      %v1394 = vpop.f32.mrf.mxu0
      %1395 = vdwg.mxu0
      %v1396 = vadd.f32 %v1275, %v1358
      %v1397 = vadd.f32 %v1276, %v1363
      %v1398 = vadd.f32 %v1277, %v1368
      %v1399 = vadd.f32 %v1278, %v1373
      %v1400 = vadd.f32 %v1279, %v1378
      %v1401 = vadd.f32 %v1280, %v1383
      %v1402 = vadd.f32 %v1281, %v1388
      %v1403 = vadd.f32 %v1282, %v1393
      %v1405 = vrot.slane %v241, 1
      %v1406 = vrot.slane %v242, 1
      %v1407 = vsel %vm553, %v1405, %v1406
      %s1408 = scalar_lea.vmem %s1, 32
      %v1409 = vld [vmem:[%s1408] sm:$0xf]
      %v1410 = vsel %vm279, %v1407, 0
      %v1413 = vsel %vm304, %v1409, 0
      %1415 = vmatprep.subr.mxu0 0.0
      %1416 = vmatpush1.msra.mxu0 0.0
      %1417 = vmatprep.subr.mxu0 0.0
      %1418 = vmatpush1.msra.mxu0 0.0
      %1419 = vmatprep.subr.mxu0 0.0
      %1420 = vmatpush1.msra.mxu0 0.0
      %1421 = vmatprep.subr.mxu0 0.0
      %1422 = vmatpush1.msra.mxu0 0.0
      %1423 = vmatprep.subr.mxu0 0.0
      %1424 = vmatpush1.msra.mxu0 0.0
      %1425 = vmatprep.subr.mxu0 0.0
      %1426 = vmatpush1.msra.mxu0 0.0
      %1427 = vmatprep.subr.mxu0 0.0
      %1428 = vmatpush1.msra.mxu0 0.0
      %1429 = vmatprep.subr.mxu0 0.0
      %1430 = vmatpush1.msra.mxu0 0.0
      %1431 = vmatprep.subr.mxu0 0.0
      %1432 = vmatpush1.msra.mxu0 0.0
      %1433 = vmatprep.subr.mxu0 0.0
      %1434 = vmatpush1.msra.mxu0 0.0
      %1435 = vmatprep.subr.mxu0 0.0
      %1436 = vmatpush1.msra.mxu0 0.0
      %1437 = vmatprep.subr.mxu0 0.0
      %1438 = vmatpush1.msra.mxu0 0.0
      %1439 = vmatprep.subr.mxu0 0.0
      %1440 = vmatpush1.msra.mxu0 0.0
      %1441 = vmatprep.subr.mxu0 0.0
      %1442 = vmatpush1.msra.mxu0 0.0
      %1443 = vmatprep.subr.mxu0 0.0
      %1444 = vmatpush1.msra.mxu0 0.0
      %1445 = vmatprep.subr.mxu0 0.0
      %1446 = vmatpush1.msra.mxu0 %v1413
      %1447 = vmatprep.subr.mxu0 0.0
      %1448 = vmatpush2.msra.mxu0 0.0
      %1449 = vmatprep.subr.mxu0 0.0
      %1450 = vmatpush2.msra.mxu0 0.0
      %1451 = vmatprep.subr.mxu0 0.0
      %1452 = vmatpush2.msra.mxu0 0.0
      %1453 = vmatprep.subr.mxu0 0.0
      %1454 = vmatpush2.msra.mxu0 0.0
      %1455 = vmatprep.subr.mxu0 0.0
      %1456 = vmatpush2.msra.mxu0 0.0
      %1457 = vmatprep.subr.mxu0 0.0
      %1458 = vmatpush2.msra.mxu0 0.0
      %1459 = vmatprep.subr.mxu0 0.0
      %1460 = vmatpush2.msra.mxu0 0.0
      %1461 = vmatprep.subr.mxu0 0.0
      %1462 = vmatpush2.msra.mxu0 0.0
      %1463 = vmatprep.subr.mxu0 0.0
      %1464 = vmatpush2.msra.mxu0 0.0
      %1465 = vmatprep.subr.mxu0 0.0
      %1466 = vmatpush2.msra.mxu0 0.0
      %1467 = vmatprep.subr.mxu0 0.0
      %1468 = vmatpush2.msra.mxu0 0.0
      %1469 = vmatprep.subr.mxu0 0.0
      %1470 = vmatpush2.msra.mxu0 0.0
      %1471 = vmatprep.subr.mxu0 0.0
      %1472 = vmatpush2.msra.mxu0 0.0
      %1473 = vmatprep.subr.mxu0 0.0
      %1474 = vmatpush2.msra.mxu0 0.0
      %1475 = vmatprep.subr.mxu0 0.0
      %1476 = vmatpush2.msra.mxu0 0.0
      %1477 = vmatprep.subr.mxu0 0.0
      %1478 = vmatpush2.msra.mxu0 0.0
      %1479 = vmatprep.mubr.f32.mxu0 0.0
      %1480 = vmatmul.mubr.f32.gmra.mxu0 %v582
      %v1481 = vpop.f32.mrf.mxu0
      %v1482 = vadd.f32 0.0, %v1481
      %v1483 = vpop.f32.mrf.mxu0
      %1484 = vmatprep.mubr.f32.mxu0 0.0
      %1485 = vmatmul.mubr.f32.gmra.mxu0 %v584
      %v1486 = vpop.f32.mrf.mxu0
      %v1487 = vadd.f32 0.0, %v1486
      %v1488 = vpop.f32.mrf.mxu0
      %1489 = vmatprep.mubr.f32.mxu0 0.0
      %1490 = vmatmul.mubr.f32.gmra.mxu0 %v586
      %v1491 = vpop.f32.mrf.mxu0
      %v1492 = vadd.f32 0.0, %v1491
      %v1493 = vpop.f32.mrf.mxu0
      %1494 = vmatprep.mubr.f32.mxu0 0.0
      %1495 = vmatmul.mubr.f32.gmra.mxu0 %v588
      %v1496 = vpop.f32.mrf.mxu0
      %v1497 = vadd.f32 0.0, %v1496
      %v1498 = vpop.f32.mrf.mxu0
      %1499 = vmatprep.mubr.f32.mxu0 0.0
      %1500 = vmatmul.mubr.f32.gmra.mxu0 %v590
      %v1501 = vpop.f32.mrf.mxu0
      %v1502 = vadd.f32 0.0, %v1501
      %v1503 = vpop.f32.mrf.mxu0
      %1504 = vmatprep.mubr.f32.mxu0 0.0
      %1505 = vmatmul.mubr.f32.gmra.mxu0 %v592
      %v1506 = vpop.f32.mrf.mxu0
      %v1507 = vadd.f32 0.0, %v1506
      %v1508 = vpop.f32.mrf.mxu0
      %1509 = vmatprep.mubr.f32.mxu0 0.0
      %1510 = vmatmul.mubr.f32.gmra.mxu0 %v594
      %v1511 = vpop.f32.mrf.mxu0
      %v1512 = vadd.f32 0.0, %v1511
      %v1513 = vpop.f32.mrf.mxu0
      %1514 = vmatprep.mubr.f32.mxu0 0.0
      %1515 = vmatmul.mubr.f32.gmra.mxu0 %v1410
      %v1516 = vpop.f32.mrf.mxu0
      %v1517 = vadd.f32 0.0, %v1516
      %v1518 = vpop.f32.mrf.mxu0
      %1519 = vdwg.mxu0
      %v1520 = vadd.f32 %v1396, %v1482
      %v1521 = vadd.f32 %v1397, %v1487
      %v1522 = vadd.f32 %v1398, %v1492
      %v1523 = vadd.f32 %v1399, %v1497
      %v1524 = vadd.f32 %v1400, %v1502
      %v1525 = vadd.f32 %v1401, %v1507
      %v1526 = vadd.f32 %v1402, %v1512
      %v1527 = vadd.f32 %v1403, %v1517
      %v1528 = vld [vmem:[%s2] sm:$0x1]
      %v1530 = vlaneseq
      %v1531 = vshrl.u32 %v1530, 7
      %v1532 = vsub.s32 0, %v1531
      %v1533 = vrot.slane %v1528, %v1532
      %v1535 = vadd.f32 %v1520, %v1533
      %v1536 = vadd.f32 %v1521, %v1533
      %v1537 = vadd.f32 %v1522, %v1533
      %v1538 = vadd.f32 %v1523, %v1533
      %v1539 = vadd.f32 %v1524, %v1533
      %v1540 = vadd.f32 %v1525, %v1533
      %v1541 = vadd.f32 %v1526, %v1533
      %v1542 = vadd.f32 %v1527, %v1533
      %vm1543 = vcmp.gt.f32.partialorder %v1535, 0.0
      %vm1544 = vcmp.gt.f32.partialorder %v1536, 0.0
      %vm1545 = vcmp.gt.f32.partialorder %v1537, 0.0
      %vm1546 = vcmp.gt.f32.partialorder %v1538, 0.0
      %vm1547 = vcmp.gt.f32.partialorder %v1539, 0.0
      %vm1548 = vcmp.gt.f32.partialorder %v1540, 0.0
      %vm1549 = vcmp.gt.f32.partialorder %v1541, 0.0
      %vm1550 = vcmp.gt.f32.partialorder %v1542, 0.0
      %v1551 = vmul.f32 %v1535, 1.442695
      %v1552 = vpow.pop %v1551
      %v1553 = vmul.f32 %v1536, 1.442695
      %v1554 = vpow.pop %v1553
      %v1555 = vmul.f32 %v1537, 1.442695
      %v1556 = vpow.pop %v1555
      %v1557 = vmul.f32 %v1538, 1.442695
      %v1558 = vpow.pop %v1557
      %v1559 = vmul.f32 %v1539, 1.442695
      %v1560 = vpow.pop %v1559
      %v1561 = vmul.f32 %v1540, 1.442695
      %v1562 = vpow.pop %v1561
      %v1563 = vmul.f32 %v1541, 1.442695
      %v1564 = vpow.pop %v1563
      %v1565 = vmul.f32 %v1542, 1.442695
      %v1566 = vpow.pop %v1565
      %v1567 = vsub.f32 %v1552, 1.0
      %v1568 = vsub.f32 %v1554, 1.0
      %v1569 = vsub.f32 %v1556, 1.0
      %v1570 = vsub.f32 %v1558, 1.0
      %v1571 = vsub.f32 %v1560, 1.0
      %v1572 = vsub.f32 %v1562, 1.0
      %v1573 = vsub.f32 %v1564, 1.0
      %v1574 = vsub.f32 %v1566, 1.0
      %v1575 = vsel %vm1543, %v1535, %v1567
      %v1576 = vsel %vm1544, %v1536, %v1568
      %v1577 = vsel %vm1545, %v1537, %v1569
      %v1578 = vsel %vm1546, %v1538, %v1570
      %v1579 = vsel %vm1547, %v1539, %v1571
      %v1580 = vsel %vm1548, %v1540, %v1572
      %v1581 = vsel %vm1549, %v1541, %v1573
      %v1582 = vsel %vm1550, %v1542, %v1574
      %vm1583 = vcmask 64512
      %1584 = vst.msk [vmem:[%s224] sm:$0xff] %vm1583, %v1575
      %1585 = vst.msk [vmem:[%s224 + $0x8] sm:$0xff] %vm1583, %v1576
      %1586 = vst.msk [vmem:[%s224 + $0x10] sm:$0xff] %vm1583, %v1577
      %1587 = vst.msk [vmem:[%s224 + $0x18] sm:$0xff] %vm1583, %v1578
      %1588 = vst.msk [vmem:[%s224 + $0x20] sm:$0xff] %vm1583, %v1579
      %1589 = vst.msk [vmem:[%s224 + $0x28] sm:$0xff] %vm1583, %v1580
      %1590 = vst.msk [vmem:[%s224 + $0x30] sm:$0xff] %vm1583, %v1581
      %1591 = vst.msk [vmem:[%s224 + $0x38] sm:$0xff] %vm1583, %v1582
      %p1592 = scmp.eq.s32.totalorder %s17, 0
      // Predicated region
      $region33: #{encoder_block_forward.4} parent=31 // pred_check
        %p1593 = pneg %p1592
      $region34: #{encoder_block_forward.4} parent=31 // pred_check_branch
        %1595 = sbr.rel (%p1593) target = $region36
      $region35: #{encoder_block_forward.4} parent=31 // pred_region
        %vm1596 = vcmask 57344
        %1597 = vst.msk [vmem:[#allocation2] sm:$0x1] %vm1596, 0.0
        %1598 = vst.msk [vmem:[#allocation3] sm:$0x1] %vm1596, 0.0
      $region36: #{encoder_block_forward.4} parent=31 // pred_fallthru
        _
      %v1599 = vld [vmem:[#allocation2] sm:$0x1]
      %v1600 = vsel %vm1583, %v1575, 0.0
      %v1601 = vsel %vm1583, %v1576, 0.0
      %v1602 = vadd.f32 %v1600, %v1601
      %v1603 = vsel %vm1583, %v1577, 0.0
      %v1604 = vadd.f32 %v1602, %v1603
      %v1605 = vsel %vm1583, %v1578, 0.0
      %v1606 = vadd.f32 %v1604, %v1605
      %v1607 = vsel %vm1583, %v1579, 0.0
      %v1608 = vadd.f32 %v1606, %v1607
      %v1609 = vsel %vm1583, %v1580, 0.0
      %v1610 = vadd.f32 %v1608, %v1609
      %v1611 = vsel %vm1583, %v1581, 0.0
      %v1612 = vadd.f32 %v1610, %v1611
      %v1613 = vsel %vm1583, %v1582, 0.0
      %v1614 = vadd.f32 %v1612, %v1613
      %v1615 = vrot.slane %v1614, 4
      %v1616 = vadd.f32 %v1614, %v1615
      %v1617 = vrot.slane %v1616, 2
      %v1618 = vadd.f32 %v1616, %v1617
      %v1619 = vrot.slane %v1618, 1
      %v1620 = vadd.f32 %v1618, %v1619
      %v1621 = vadd.f32 %v1599, %v1620
      %vm1622 = vcmask 57344
      %1623 = vst.msk [vmem:[#allocation2] sm:$0x1] %vm1622, %v1621
      %v1624 = vld [vmem:[#allocation3] sm:$0x1]
      %v1625 = vmul.f32 %v1575, %v1575
      %v1626 = vmul.f32 %v1576, %v1576
      %v1627 = vmul.f32 %v1577, %v1577
      %v1628 = vmul.f32 %v1578, %v1578
      %v1629 = vmul.f32 %v1579, %v1579
      %v1630 = vmul.f32 %v1580, %v1580
      %v1631 = vmul.f32 %v1581, %v1581
      %v1632 = vmul.f32 %v1582, %v1582
      %v1633 = vsel %vm1583, %v1625, 0.0
      %v1634 = vsel %vm1583, %v1626, 0.0
      %v1635 = vadd.f32 %v1633, %v1634
      %v1636 = vsel %vm1583, %v1627, 0.0
      %v1637 = vadd.f32 %v1635, %v1636
      %v1638 = vsel %vm1583, %v1628, 0.0
      %v1639 = vadd.f32 %v1637, %v1638
      %v1640 = vsel %vm1583, %v1629, 0.0
      %v1641 = vadd.f32 %v1639, %v1640
      %v1642 = vsel %vm1583, %v1630, 0.0
      %v1643 = vadd.f32 %v1641, %v1642
      %v1644 = vsel %vm1583, %v1631, 0.0
      %v1645 = vadd.f32 %v1643, %v1644
      %v1646 = vsel %vm1583, %v1632, 0.0
      %v1647 = vadd.f32 %v1645, %v1646
      %v1648 = vrot.slane %v1647, 4
      %v1649 = vadd.f32 %v1647, %v1648
      %v1650 = vrot.slane %v1649, 2
      %v1651 = vadd.f32 %v1649, %v1650
      %v1652 = vrot.slane %v1651, 1
      %v1653 = vadd.f32 %v1651, %v1652
      %v1654 = vadd.f32 %v1624, %v1653
      %1655 = vst.msk [vmem:[#allocation3] sm:$0x1] %vm1622, %v1654
      %v1656 = vld [vmem:[#allocation2] sm:$0x1]
      %1657 = vst.msk [vmem:[%s4] sm:$0x1] %vm1622, %v1656
      %v1658 = vld [vmem:[#allocation3] sm:$0x1]
      %1659 = vst.msk [vmem:[%s5] sm:$0x1] %vm1622, %v1658
      %p1660 = scmp.lt.s32.totalorder %s17, 1
      %s1661 = scalar_select %p1660, %s17, 1
      %s1662 = smul.addr %s1661, 8
      %s1663 = smul.addr %s1662, 8
      %s1664 = scalar_lea.vmem %s3, %s1663
      // Predicated region
      $region37: #{encoder_block_forward.4} parent=31 // pred_check
        %p1665 = pneg %p103
      $region38: #{encoder_block_forward.4} parent=31 // pred_check_branch
        %1667 = sbr.rel (%p1665) target = $region40
      $region39: #{encoder_block_forward.4} parent=31 // pred_region
        _
      $region40: #{encoder_block_forward.4} parent=31 // pred_fallthru
        _
      // Predicated region
      $region41: #{encoder_block_forward.4} parent=31 // pred_check
        %p1668 = pneg %p124
      $region42: #{encoder_block_forward.4} parent=31 // pred_check_branch
        %1670 = sbr.rel (%p1668) target = $region44
      $region43: #{encoder_block_forward.4} parent=31 // pred_region
        _
      $region44: #{encoder_block_forward.4} parent=31 // pred_fallthru
        _
      // Predicated region
      $region45: #{encoder_block_forward.4} parent=31 // pred_check
        %p1671 = pneg %p145
      $region46: #{encoder_block_forward.4} parent=31 // pred_check_branch
        %1673 = sbr.rel (%p1671) target = $region48
      $region47: #{encoder_block_forward.4} parent=31 // pred_region
        _
      $region48: #{encoder_block_forward.4} parent=31 // pred_fallthru
        _
      // Predicated region
      $region49: #{encoder_block_forward.4} parent=31 // pred_check
        %p1674 = pneg %p124
      $region50: #{encoder_block_forward.4} parent=31 // pred_check_branch
        %1676 = sbr.rel (%p1674) target = $region52
      $region51: #{encoder_block_forward.4} parent=31 // pred_region
        _
      $region52: #{encoder_block_forward.4} parent=31 // pred_fallthru
        _
      // Predicated region
      $region53: #{encoder_block_forward.4} parent=31 // pred_check
        %p1677 = pneg %p145
      $region54: #{encoder_block_forward.4} parent=31 // pred_check_branch
        %1679 = sbr.rel (%p1677) target = $region56
      $region55: #{encoder_block_forward.4} parent=31 // pred_region
        _
      $region56: #{encoder_block_forward.4} parent=31 // pred_fallthru
        _
    $region32: #{encoder_block_forward.4} parent=5 // pred_fallthru
      _
    %p1680 = scmp.le.s32.totalorder 2, %s12
    // Predicated region
    $region57: #{encoder_block_forward.4} parent=5 // pred_check
      %p1681 = pneg %p1680
    $region58: #{encoder_block_forward.4} parent=5 // pred_check_branch
      %1683 = sbr.rel (%p1681) target = $region60
    $region59: #{encoder_block_forward.4} parent=5 // pred_region
      %s1684 = ssub.s32 %s12, 2
      // Predicated region
      $region61: #{encoder_block_forward.4} parent=59 // pred_check
        %p1685 = pneg %p109
      $region62: #{encoder_block_forward.4} parent=59 // pred_check_branch
        %1687 = sbr.rel (%p1685) target = $region64
      $region63: #{encoder_block_forward.4} parent=59 // pred_region
        %p1688 = scmp.lt.s32.totalorder %s18, 1
        %s1689 = scalar_select %p1688, %s18, 1
        %s1690 = smul.addr %s1689, 8
        %s1691 = smul.addr %s1690, 8
        %s1692 = scalar_lea.vmem %s3, %s1691
      $region64: #{encoder_block_forward.4} parent=59 // pred_fallthru
        _
    $region60: #{encoder_block_forward.4} parent=5 // pred_fallthru
      _
  $region6: #{encoder_block_forward.4} parent=0 // loop_footer
    %s16 = sadd.s32 1, %s12
  $region7: #{encoder_block_forward.4} parent=0 // loop_footer_branch
    %11 = sbr.rel target = $region3
  $region8: #{encoder_block_forward.4} parent=0 // loop_exit
    _

// kernel: encoder_block_forward.7
$region0: #{encoder_block_forward.7}
  #allocation0 [shape = 'u32[]', space=smem, size = 0x4, offset = 0x4, fixed_abs, tag = 'smem constant byte address 0x4 - core index']
  #allocation1 [shape = 'u32[144,128]{1,0:T(1,128)}', space=vmem, size = 0x12000, scoped, tag = 'internal scratch']
  %s0 = inlined_call_operand.vmem [shape: f32[128,8], index: 0, kind: input, shape index: {}]
  %s1 = inlined_call_operand.vmem [shape: f32[128,8], index: 1, kind: input, shape index: {}]
  %s2 = inlined_call_operand.vmem [shape: f32[1,8], index: 2, kind: input, shape index: {}]
  %s3 = inlined_call_operand.vmem [shape: f32[1,8], index: 3, kind: input, shape index: {}]
  %s4 = inlined_call_operand.vmem [shape: f32[1,8], index: 4, kind: input, shape index: {}]
  %s5 = inlined_call_operand.vmem [shape: f32[1,8], index: 5, kind: input, shape index: {}]
  %s6 = inlined_call_operand.vmem [shape: f32[128,8], index: 6, kind: output, shape index: {}]
  %s7 = sld [smem:[#allocation0]]
  $region57: #{encoder_block_forward.7} parent=0
    _
  %s9 = ssub.s32 1, %s7
  %s10 = scalar_select 0, %s9, %s7
  loop: start=0, step=1, limit=4
  $region2: #{encoder_block_forward.7} parent=0 // loop_pre_header
    _
  $region3: #{encoder_block_forward.7} parent=0 // loop_header
    %s12 = sphi 0, %s16
    %p13 = scmp.ge.s32.totalorder %s12, 4
    %s22 = sphi 0, %s24
    %s25 = sphi 0, %s22
    %s26 = sphi 0, %s25
    %s42 = sphi 0, %s26
    %s48 = sphi 0, %s50
    %s51 = sphi 0, %s48
    %s52 = sphi 0, %s51
    %s68 = sphi 0, %s52
    %s72 = sphi 0, %s72
    %s74 = sphi 0, %s72
    %s75 = sphi 0, %s74
    %s89 = sphi 0, %s75
    %s93 = sphi 0, %s93
    %s95 = sphi 0, %s93
    %s96 = sphi 0, %s95
    %s110 = sphi 0, %s96
    %s114 = sphi 0, %s114
    %s116 = sphi 0, %s114
    %s117 = sphi 0, %s116
    %s131 = sphi 0, %s117
    %s135 = sphi 0, %s135
    %s137 = sphi 0, %s135
    %s138 = sphi 0, %s137
    %s152 = sphi 0, %s138
    %s158 = sphi 0, %s160
    %s161 = sphi 0, %s158
    %s162 = sphi 0, %s161
    %s178 = sphi 0, %s162
  $region4: #{encoder_block_forward.7} parent=0 // loop_header_branch
    %15 = sbr.rel (%p13) target = $region8
  $region5: #{encoder_block_forward.7} parent=0 // loop_body
    %s17 = ssub.s32 %s12, 1
    %s18 = ssub.s32 %s12, 2
    %s19 = sadd.s32 %s12, 1
    %s20 = ssub.s32 %s12, %s19
    %p21 = scmp.eq.s32.totalorder %s20, 0
    %s23 = sadd.s32 %s22, 1
    %s24 = scalar_select %p21, %s22, %s23
    %p27 = pneg %p21
    %p28 = scmp.eq.s32.totalorder %s12, 1
    %p29 = por %p27, %p28
    %p30 = scmp.ne.s32.totalorder %s22, %s25
    %p31 = scmp.eq.s32.totalorder %s12, 0
    %p32 = por %p30, %p31
    %p33 = scmp.ne.s32.totalorder %s22, %s25
    %p34 = scmp.eq.s32.totalorder %s17, 1
    %p35 = por %p33, %p34
    %p36 = scmp.ne.s32.totalorder %s25, %s26
    %p37 = scmp.eq.s32.totalorder %s17, 0
    %p38 = por %p36, %p37
    %p39 = scmp.ne.s32.totalorder %s25, %s26
    %p40 = scmp.eq.s32.totalorder %s18, 1
    %p41 = por %p39, %p40
    %p43 = scmp.ne.s32.totalorder %s26, %s42
    %p44 = scmp.eq.s32.totalorder %s18, 0
    %p45 = por %p43, %p44
    %s46 = ssub.s32 %s12, %s19
    %p47 = scmp.eq.s32.totalorder %s46, 0
    %s49 = sadd.s32 %s48, 1
    %s50 = scalar_select %p47, %s48, %s49
    %p53 = pneg %p47
    %p54 = scmp.eq.s32.totalorder %s12, 1
    %p55 = por %p53, %p54
    %p56 = scmp.ne.s32.totalorder %s48, %s51
    %p57 = scmp.eq.s32.totalorder %s12, 0
    %p58 = por %p56, %p57
    %p59 = scmp.ne.s32.totalorder %s48, %s51
    %p60 = scmp.eq.s32.totalorder %s17, 1
    %p61 = por %p59, %p60
    %p62 = scmp.ne.s32.totalorder %s51, %s52
    %p63 = scmp.eq.s32.totalorder %s17, 0
    %p64 = por %p62, %p63
    %p65 = scmp.ne.s32.totalorder %s51, %s52
    %p66 = scmp.eq.s32.totalorder %s18, 1
    %p67 = por %p65, %p66
    %p69 = scmp.ne.s32.totalorder %s52, %s68
    %p70 = scmp.eq.s32.totalorder %s18, 0
    %p71 = por %p69, %p70
    %s73 = sadd.s32 %s72, 1
    %p76 = scmp.eq.s32.totalorder %s12, 1
    %p77 = scmp.ne.s32.totalorder %s72, %s74
    %p78 = scmp.eq.s32.totalorder %s12, 0
    %p79 = por %p77, %p78
    %p80 = scmp.ne.s32.totalorder %s72, %s74
    %p81 = scmp.eq.s32.totalorder %s17, 1
    %p82 = por %p80, %p81
    %p83 = scmp.ne.s32.totalorder %s74, %s75
    %p84 = scmp.eq.s32.totalorder %s17, 0
    %p85 = por %p83, %p84
    %p86 = scmp.ne.s32.totalorder %s74, %s75
    %p87 = scmp.eq.s32.totalorder %s18, 1
    %p88 = por %p86, %p87
    %p90 = scmp.ne.s32.totalorder %s75, %s89
    %p91 = scmp.eq.s32.totalorder %s18, 0
    %p92 = por %p90, %p91
    %s94 = sadd.s32 %s93, 1
    %p97 = scmp.eq.s32.totalorder %s12, 1
    %p98 = scmp.ne.s32.totalorder %s93, %s95
    %p99 = scmp.eq.s32.totalorder %s12, 0
    %p100 = por %p98, %p99
    %p101 = scmp.ne.s32.totalorder %s93, %s95
    %p102 = scmp.eq.s32.totalorder %s17, 1
    %p103 = por %p101, %p102
    %p104 = scmp.ne.s32.totalorder %s95, %s96
    %p105 = scmp.eq.s32.totalorder %s17, 0
    %p106 = por %p104, %p105
    %p107 = scmp.ne.s32.totalorder %s95, %s96
    %p108 = scmp.eq.s32.totalorder %s18, 1
    %p109 = por %p107, %p108
    %p111 = scmp.ne.s32.totalorder %s96, %s110
    %p112 = scmp.eq.s32.totalorder %s18, 0
    %p113 = por %p111, %p112
    %s115 = sadd.s32 %s114, 1
    %p118 = scmp.eq.s32.totalorder %s12, 1
    %p119 = scmp.ne.s32.totalorder %s114, %s116
    %p120 = scmp.eq.s32.totalorder %s12, 0
    %p121 = por %p119, %p120
    %p122 = scmp.ne.s32.totalorder %s114, %s116
    %p123 = scmp.eq.s32.totalorder %s17, 1
    %p124 = por %p122, %p123
    %p125 = scmp.ne.s32.totalorder %s116, %s117
    %p126 = scmp.eq.s32.totalorder %s17, 0
    %p127 = por %p125, %p126
    %p128 = scmp.ne.s32.totalorder %s116, %s117
    %p129 = scmp.eq.s32.totalorder %s18, 1
    %p130 = por %p128, %p129
    %p132 = scmp.ne.s32.totalorder %s117, %s131
    %p133 = scmp.eq.s32.totalorder %s18, 0
    %p134 = por %p132, %p133
    %s136 = sadd.s32 %s135, 1
    %p139 = scmp.eq.s32.totalorder %s12, 1
    %p140 = scmp.ne.s32.totalorder %s135, %s137
    %p141 = scmp.eq.s32.totalorder %s12, 0
    %p142 = por %p140, %p141
    %p143 = scmp.ne.s32.totalorder %s135, %s137
    %p144 = scmp.eq.s32.totalorder %s17, 1
    %p145 = por %p143, %p144
    %p146 = scmp.ne.s32.totalorder %s137, %s138
    %p147 = scmp.eq.s32.totalorder %s17, 0
    %p148 = por %p146, %p147
    %p149 = scmp.ne.s32.totalorder %s137, %s138
    %p150 = scmp.eq.s32.totalorder %s18, 1
    %p151 = por %p149, %p150
    %p153 = scmp.ne.s32.totalorder %s138, %s152
    %p154 = scmp.eq.s32.totalorder %s18, 0
    %p155 = por %p153, %p154
    %s156 = ssub.s32 %s12, %s19
    %p157 = scmp.eq.s32.totalorder %s156, 0
    %s159 = sadd.s32 %s158, 1
    %s160 = scalar_select %p157, %s158, %s159
    %p163 = pneg %p157
    %p164 = scmp.eq.s32.totalorder %s12, 1
    %p165 = por %p163, %p164
    %p166 = scmp.ne.s32.totalorder %s158, %s161
    %p167 = scmp.eq.s32.totalorder %s12, 0
    %p168 = por %p166, %p167
    %p169 = scmp.ne.s32.totalorder %s158, %s161
    %p170 = scmp.eq.s32.totalorder %s17, 1
    %p171 = por %p169, %p170
    %p172 = scmp.ne.s32.totalorder %s161, %s162
    %p173 = scmp.eq.s32.totalorder %s17, 0
    %p174 = por %p172, %p173
    %p175 = scmp.ne.s32.totalorder %s161, %s162
    %p176 = scmp.eq.s32.totalorder %s18, 1
    %p177 = por %p175, %p176
    %p179 = scmp.ne.s32.totalorder %s162, %s178
    %p180 = scmp.eq.s32.totalorder %s18, 0
    %p181 = por %p179, %p180
    %p182 = scmp.le.s32.totalorder 1, %s12
    %p183 = scmp.lt.s32.totalorder %s12, 3
    %p184 = pnand %p182, %p183
    %p185 = pneg %p184
    // Predicated region
    $region9: #{encoder_block_forward.7} parent=5 // pred_check
      _
    $region10: #{encoder_block_forward.7} parent=5 // pred_check_branch
      %187 = sbr.rel (%p184) target = $region12
    $region11: #{encoder_block_forward.7} parent=5 // pred_region
      %s188 = ssub.s32 %s12, 1
      // Predicated region
      $region13: #{encoder_block_forward.7} parent=11 // pred_check
        %p189 = pneg %p85
      $region14: #{encoder_block_forward.7} parent=11 // pred_check_branch
        %191 = sbr.rel (%p189) target = $region16
      $region15: #{encoder_block_forward.7} parent=11 // pred_region
        _
      $region16: #{encoder_block_forward.7} parent=11 // pred_fallthru
        _
      // Predicated region
      $region17: #{encoder_block_forward.7} parent=11 // pred_check
        %p192 = pneg %p106
      $region18: #{encoder_block_forward.7} parent=11 // pred_check_branch
        %194 = sbr.rel (%p192) target = $region20
      $region19: #{encoder_block_forward.7} parent=11 // pred_region
        _
      $region20: #{encoder_block_forward.7} parent=11 // pred_fallthru
        _
      // Predicated region
      $region21: #{encoder_block_forward.7} parent=11 // pred_check
        %p195 = pneg %p127
      $region22: #{encoder_block_forward.7} parent=11 // pred_check_branch
        %197 = sbr.rel (%p195) target = $region24
      $region23: #{encoder_block_forward.7} parent=11 // pred_region
        _
      $region24: #{encoder_block_forward.7} parent=11 // pred_fallthru
        _
      // Predicated region
      $region25: #{encoder_block_forward.7} parent=11 // pred_check
        %p198 = pneg %p148
      $region26: #{encoder_block_forward.7} parent=11 // pred_check_branch
        %200 = sbr.rel (%p198) target = $region28
      $region27: #{encoder_block_forward.7} parent=11 // pred_region
        _
      $region28: #{encoder_block_forward.7} parent=11 // pred_fallthru
        _
    $region12: #{encoder_block_forward.7} parent=5 // pred_fallthru
      _
    %p201 = scmp.lt.s32.totalorder %s12, 2
    // Predicated region
    $region29: #{encoder_block_forward.7} parent=5 // pred_check
      %p202 = pneg %p201
    $region30: #{encoder_block_forward.7} parent=5 // pred_check_branch
      %204 = sbr.rel (%p202) target = $region32
    $region31: #{encoder_block_forward.7} parent=5 // pred_region
      // Predicated region
      $region33: #{encoder_block_forward.7} parent=31 // pred_check
        %p205 = pneg %p32
      $region34: #{encoder_block_forward.7} parent=31 // pred_check_branch
        %207 = sbr.rel (%p205) target = $region36
      $region35: #{encoder_block_forward.7} parent=31 // pred_region
        %s208 = smul.u32 8, %s12
        %p209 = scmp.lt.s32.totalorder %s208, 15
        %s210 = scalar_select %p209, %s208, 15
        %s211 = smul.addr %s210, 8
        %s212 = scalar_lea.vmem %s0, %s211
        %s213 = smul.u32 8, %s12
      $region36: #{encoder_block_forward.7} parent=31 // pred_fallthru
        _
      // Predicated region
      $region37: #{encoder_block_forward.7} parent=31 // pred_check
        %p214 = pneg %p58
      $region38: #{encoder_block_forward.7} parent=31 // pred_check_branch
        %216 = sbr.rel (%p214) target = $region40
      $region39: #{encoder_block_forward.7} parent=31 // pred_region
        %s217 = smul.u32 8, %s12
        %p218 = scmp.lt.s32.totalorder %s217, 15
        %s219 = scalar_select %p218, %s217, 15
        %s220 = smul.addr %s219, 8
        %s221 = scalar_lea.vmem %s1, %s220
        %s222 = smul.u32 8, %s12
      $region40: #{encoder_block_forward.7} parent=31 // pred_fallthru
        _
    $region32: #{encoder_block_forward.7} parent=5 // pred_fallthru
      _
    %p223 = scmp.le.s32.totalorder 1, %s12
    %p224 = scmp.lt.s32.totalorder %s12, 3
    %p225 = pnand %p223, %p224
    %p226 = pneg %p225
    // Predicated region
    $region41: #{encoder_block_forward.7} parent=5 // pred_check
      _
    $region42: #{encoder_block_forward.7} parent=5 // pred_check_branch
      %228 = sbr.rel (%p225) target = $region44
    $region43: #{encoder_block_forward.7} parent=5 // pred_region
      %s229 = ssub.s32 %s12, 1
      %s230 = smul.u32 8, %s17
      %p231 = scmp.lt.s32.totalorder %s230, 15
      %s232 = scalar_select %p231, %s230, 15
      %s233 = smul.addr %s232, 8
      %s234 = scalar_lea.vmem %s0, %s233
      %p235 = pneg %p38
      %p236 = pneg %p35
      %s237 = smul.u32 8, %s17
      %p238 = scmp.lt.s32.totalorder %s237, 15
      %s239 = scalar_select %p238, %s237, 15
      %s240 = smul.addr %s239, 8
      %s241 = scalar_lea.vmem %s1, %s240
      %p242 = pneg %p64
      %p243 = pneg %p61
      %p244 = pneg %p85
      %p245 = pneg %p82
      %p246 = pneg %p106
      %p247 = pneg %p103
      %p248 = pneg %p127
      %p249 = pneg %p124
      %p250 = pneg %p148
      %p251 = pneg %p145
      %p252 = pneg %p174
      %p253 = pneg %p171
      %s254 = smul.u32 8, %s17
      %p255 = scmp.lt.s32.totalorder %s254, 15
      %s256 = scalar_select %p255, %s254, 15
      %s257 = smul.addr %s256, 8
      %s258 = scalar_lea.vmem %s6, %s257
      %s259 = smul.u32 8, %s17
      %p260 = scmp.lt.s32.totalorder %s259, 15
      %s261 = scalar_select %p260, %s259, 15
      %s262 = smul.addr %s261, 8
      %s263 = scalar_lea.vmem %s0, %s262
      %s264 = smul.u32 8, %s17
      %s265 = smul.u32 8, %s17
      %p266 = scmp.lt.s32.totalorder %s265, 15
      %s267 = scalar_select %p266, %s265, 15
      %s268 = smul.addr %s267, 8
      %s269 = scalar_lea.vmem %s1, %s268
      %s270 = smul.u32 8, %s17
      %s271 = smul.u32 8, %s17
      %p272 = scmp.lt.s32.totalorder %s271, 15
      %s273 = scalar_select %p272, %s271, 15
      %s274 = smul.addr %s273, 8
      %s275 = scalar_lea.vmem %s6, %s274
      %s276 = smul.u32 8, %s17
      %v277 = vld [vmem:[%s263] sm:$0xff]
      %v278 = vld [vmem:[%s263 + $0x8] sm:$0xff]
      %v279 = vld [vmem:[%s263 + $0x10] sm:$0xff]
      %v280 = vld [vmem:[%s263 + $0x18] sm:$0xff]
      %v281 = vld [vmem:[%s263 + $0x20] sm:$0xff]
      %v282 = vld [vmem:[%s263 + $0x28] sm:$0xff]
      %v283 = vld [vmem:[%s263 + $0x30] sm:$0xff]
      %v284 = vld [vmem:[%s263 + $0x38] sm:$0xff]
      %v285 = vld [vmem:[%s2] sm:$0x1]
      %v287 = vlaneseq
      %v288 = vshrl.u32 %v287, 7
      %v289 = vsub.s32 0, %v288
      %v290 = vrot.slane %v285, %v289
      %v292 = vmul.f32 %v277, %v290
      %v293 = vmul.f32 %v278, %v290
      %v294 = vmul.f32 %v279, %v290
      %v295 = vmul.f32 %v280, %v290
      %v296 = vmul.f32 %v281, %v290
      %v297 = vmul.f32 %v282, %v290
      %v298 = vmul.f32 %v283, %v290
      %v299 = vmul.f32 %v284, %v290
      %v300 = vld [vmem:[%s3] sm:$0x1]
      %v302 = vlaneseq
      %v303 = vshrl.u32 %v302, 7
      %v304 = vsub.s32 0, %v303
      %v305 = vrot.slane %v300, %v304
      %v307 = vadd.f32 %v292, %v305
      %v308 = vadd.f32 %v293, %v305
      %v309 = vadd.f32 %v294, %v305
      %v310 = vadd.f32 %v295, %v305
      %v311 = vadd.f32 %v296, %v305
      %v312 = vadd.f32 %v297, %v305
      %v313 = vadd.f32 %v298, %v305
      %v314 = vadd.f32 %v299, %v305
      %v315 = vld [vmem:[%s269] sm:$0xff]
      %v316 = vld [vmem:[%s269 + $0x8] sm:$0xff]
      %v317 = vld [vmem:[%s269 + $0x10] sm:$0xff]
      %v318 = vld [vmem:[%s269 + $0x18] sm:$0xff]
      %v319 = vld [vmem:[%s269 + $0x20] sm:$0xff]
      %v320 = vld [vmem:[%s269 + $0x28] sm:$0xff]
      %v321 = vld [vmem:[%s269 + $0x30] sm:$0xff]
      %v322 = vld [vmem:[%s269 + $0x38] sm:$0xff]
      %v323 = vld [vmem:[%s4] sm:$0x1]
      %v325 = vlaneseq
      %v326 = vshrl.u32 %v325, 7
      %v327 = vsub.s32 0, %v326
      %v328 = vrot.slane %v323, %v327
      %v330 = vmul.f32 %v315, %v328
      %v331 = vmul.f32 %v316, %v328
      %v332 = vmul.f32 %v317, %v328
      %v333 = vmul.f32 %v318, %v328
      %v334 = vmul.f32 %v319, %v328
      %v335 = vmul.f32 %v320, %v328
      %v336 = vmul.f32 %v321, %v328
      %v337 = vmul.f32 %v322, %v328
      %v338 = vadd.f32 %v307, %v330
      %v339 = vadd.f32 %v308, %v331
      %v340 = vadd.f32 %v309, %v332
      %v341 = vadd.f32 %v310, %v333
      %v342 = vadd.f32 %v311, %v334
      %v343 = vadd.f32 %v312, %v335
      %v344 = vadd.f32 %v313, %v336
      %v345 = vadd.f32 %v314, %v337
      %v346 = vld [vmem:[%s5] sm:$0x1]
      %v348 = vlaneseq
      %v349 = vshrl.u32 %v348, 7
      %v350 = vsub.s32 0, %v349
      %v351 = vrot.slane %v346, %v350
      %v353 = vadd.f32 %v338, %v351
      %v354 = vadd.f32 %v339, %v351
      %v355 = vadd.f32 %v340, %v351
      %v356 = vadd.f32 %v341, %v351
      %v357 = vadd.f32 %v342, %v351
      %v358 = vadd.f32 %v343, %v351
      %v359 = vadd.f32 %v344, %v351
      %v360 = vadd.f32 %v345, %v351
      %vm361 = vcmask 64512
      %362 = vst.msk [vmem:[%s275] sm:$0xff] %vm361, %v353
      %363 = vst.msk [vmem:[%s275 + $0x8] sm:$0xff] %vm361, %v354
      %364 = vst.msk [vmem:[%s275 + $0x10] sm:$0xff] %vm361, %v355
      %365 = vst.msk [vmem:[%s275 + $0x18] sm:$0xff] %vm361, %v356
      %366 = vst.msk [vmem:[%s275 + $0x20] sm:$0xff] %vm361, %v357
      %367 = vst.msk [vmem:[%s275 + $0x28] sm:$0xff] %vm361, %v358
      %368 = vst.msk [vmem:[%s275 + $0x30] sm:$0xff] %vm361, %v359
      %369 = vst.msk [vmem:[%s275 + $0x38] sm:$0xff] %vm361, %v360
      %s370 = smul.u32 8, %s17
      %p371 = scmp.lt.s32.totalorder %s370, 15
      %s372 = scalar_select %p371, %s370, 15
      %s373 = smul.addr %s372, 8
      %s374 = scalar_lea.vmem %s6, %s373
      // Predicated region
      $region45: #{encoder_block_forward.7} parent=43 // pred_check
        %p375 = pneg %p171
      $region46: #{encoder_block_forward.7} parent=43 // pred_check_branch
        %377 = sbr.rel (%p375) target = $region48
      $region47: #{encoder_block_forward.7} parent=43 // pred_region
        %s378 = smul.u32 8, %s17
      $region48: #{encoder_block_forward.7} parent=43 // pred_fallthru
        _
    $region44: #{encoder_block_forward.7} parent=5 // pred_fallthru
      _
    %p379 = scmp.le.s32.totalorder 2, %s12
    // Predicated region
    $region49: #{encoder_block_forward.7} parent=5 // pred_check
      %p380 = pneg %p379
    $region50: #{encoder_block_forward.7} parent=5 // pred_check_branch
      %382 = sbr.rel (%p380) target = $region52
    $region51: #{encoder_block_forward.7} parent=5 // pred_region
      %s383 = ssub.s32 %s12, 2
      // Predicated region
      $region53: #{encoder_block_forward.7} parent=51 // pred_check
        %p384 = pneg %p177
      $region54: #{encoder_block_forward.7} parent=51 // pred_check_branch
        %386 = sbr.rel (%p384) target = $region56
      $region55: #{encoder_block_forward.7} parent=51 // pred_region
        %s387 = smul.u32 8, %s18
        %p388 = scmp.lt.s32.totalorder %s387, 15
        %s389 = scalar_select %p388, %s387, 15
        %s390 = smul.addr %s389, 8
        %s391 = scalar_lea.vmem %s6, %s390
      $region56: #{encoder_block_forward.7} parent=51 // pred_fallthru
        _
    $region52: #{encoder_block_forward.7} parent=5 // pred_fallthru
      _
  $region6: #{encoder_block_forward.7} parent=0 // loop_footer
    %s16 = sadd.s32 1, %s12
  $region7: #{encoder_block_forward.7} parent=0 // loop_footer_branch
    %11 = sbr.rel target = $region3
  $region8: #{encoder_block_forward.7} parent=0 // loop_exit
    _

// kernel: encoder_block_forward.5
$region0: #{encoder_block_forward.5}
  #allocation0 [shape = 'u32[]', space=smem, size = 0x4, offset = 0x4, fixed_abs, tag = 'smem constant byte address 0x4 - core index']
  #allocation1 [shape = 'u32[144,128]{1,0:T(1,128)}', space=vmem, size = 0x12000, scoped, tag = 'internal scratch']
  #allocation2 [shape = 'f32[1,8]{1,0:T(1,128)}', space=vmem, size = 0x200, scoped, tag = 'scratch operand']
  #allocation3 [shape = 'f32[1,8]{1,0:T(1,128)}', space=vmem, size = 0x200, scoped, tag = 'scratch operand']
  %s0 = inlined_call_operand.vmem [shape: f32[2,10,10,8], index: 0, kind: input, shape index: {}]
  %s1 = inlined_call_operand.vmem [shape: f32[1,8], index: 1, kind: input, shape index: {}]
  %s2 = inlined_call_operand.vmem [shape: f32[1,8], index: 2, kind: input, shape index: {}]
  %s3 = inlined_call_operand.vmem [shape: f32[9,8,8], index: 3, kind: input, shape index: {}]
  %s4 = inlined_call_operand.vmem [shape: f32[1,8], index: 4, kind: input, shape index: {}]
  %s5 = inlined_call_operand.vmem [shape: f32[2,8,8,8], index: 5, kind: output, shape index: {0}]
  %s6 = inlined_call_operand.vmem [shape: f32[1,8], index: 6, kind: output, shape index: {1}]
  %s7 = inlined_call_operand.vmem [shape: f32[1,8], index: 7, kind: output, shape index: {2}]
  %8 = xla_tuple %s5, %s6, %s7
  %s9 = sld [smem:[#allocation0]]
  $region73: #{encoder_block_forward.5} parent=0
    _
  %s11 = ssub.s32 1, %s9
  %s12 = scalar_select 0, %s11, %s9
  loop: start=0, step=1, limit=4
  $region2: #{encoder_block_forward.5} parent=0 // loop_pre_header
    _
  $region3: #{encoder_block_forward.5} parent=0 // loop_header
    %s14 = sphi 0, %s18
    %p15 = scmp.ge.s32.totalorder %s14, 4
    %s24 = sphi 0, %s26
    %s27 = sphi 0, %s24
    %s28 = sphi 0, %s27
    %s44 = sphi 0, %s28
    %s48 = sphi 0, %s48
    %s50 = sphi 0, %s48
    %s51 = sphi 0, %s50
    %s65 = sphi 0, %s51
    %s69 = sphi 0, %s69
    %s71 = sphi 0, %s69
    %s72 = sphi 0, %s71
    %s86 = sphi 0, %s72
    %s90 = sphi 0, %s90
    %s92 = sphi 0, %s90
    %s93 = sphi 0, %s92
    %s107 = sphi 0, %s93
    %s111 = sphi 0, %s111
    %s113 = sphi 0, %s111
    %s114 = sphi 0, %s113
    %s128 = sphi 0, %s114
    %s134 = sphi 0, %s136
    %s137 = sphi 0, %s134
    %s138 = sphi 0, %s137
    %s154 = sphi 0, %s138
    %s158 = sphi 0, %s158
    %s160 = sphi 0, %s158
    %s161 = sphi 0, %s160
    %s175 = sphi 0, %s161
    %s179 = sphi 0, %s179
    %s181 = sphi 0, %s179
    %s182 = sphi 0, %s181
    %s196 = sphi 0, %s182
  $region4: #{encoder_block_forward.5} parent=0 // loop_header_branch
    %17 = sbr.rel (%p15) target = $region8
  $region5: #{encoder_block_forward.5} parent=0 // loop_body
    %s19 = ssub.s32 %s14, 1
    %s20 = ssub.s32 %s14, 2
    %s21 = sadd.s32 %s14, 1
    %s22 = ssub.s32 %s14, %s21
    %p23 = scmp.eq.s32.totalorder %s22, 0
    %s25 = sadd.s32 %s24, 1
    %s26 = scalar_select %p23, %s24, %s25
    %p29 = pneg %p23
    %p30 = scmp.eq.s32.totalorder %s14, 1
    %p31 = por %p29, %p30
    %p32 = scmp.ne.s32.totalorder %s24, %s27
    %p33 = scmp.eq.s32.totalorder %s14, 0
    %p34 = por %p32, %p33
    %p35 = scmp.ne.s32.totalorder %s24, %s27
    %p36 = scmp.eq.s32.totalorder %s19, 1
    %p37 = por %p35, %p36
    %p38 = scmp.ne.s32.totalorder %s27, %s28
    %p39 = scmp.eq.s32.totalorder %s19, 0
    %p40 = por %p38, %p39
    %p41 = scmp.ne.s32.totalorder %s27, %s28
    %p42 = scmp.eq.s32.totalorder %s20, 1
    %p43 = por %p41, %p42
    %p45 = scmp.ne.s32.totalorder %s28, %s44
    %p46 = scmp.eq.s32.totalorder %s20, 0
    %p47 = por %p45, %p46
    %s49 = sadd.s32 %s48, 1
    %p52 = scmp.eq.s32.totalorder %s14, 1
    %p53 = scmp.ne.s32.totalorder %s48, %s50
    %p54 = scmp.eq.s32.totalorder %s14, 0
    %p55 = por %p53, %p54
    %p56 = scmp.ne.s32.totalorder %s48, %s50
    %p57 = scmp.eq.s32.totalorder %s19, 1
    %p58 = por %p56, %p57
    %p59 = scmp.ne.s32.totalorder %s50, %s51
    %p60 = scmp.eq.s32.totalorder %s19, 0
    %p61 = por %p59, %p60
    %p62 = scmp.ne.s32.totalorder %s50, %s51
    %p63 = scmp.eq.s32.totalorder %s20, 1
    %p64 = por %p62, %p63
    %p66 = scmp.ne.s32.totalorder %s51, %s65
    %p67 = scmp.eq.s32.totalorder %s20, 0
    %p68 = por %p66, %p67
    %s70 = sadd.s32 %s69, 1
    %p73 = scmp.eq.s32.totalorder %s14, 1
    %p74 = scmp.ne.s32.totalorder %s69, %s71
    %p75 = scmp.eq.s32.totalorder %s14, 0
    %p76 = por %p74, %p75
    %p77 = scmp.ne.s32.totalorder %s69, %s71
    %p78 = scmp.eq.s32.totalorder %s19, 1
    %p79 = por %p77, %p78
    %p80 = scmp.ne.s32.totalorder %s71, %s72
    %p81 = scmp.eq.s32.totalorder %s19, 0
    %p82 = por %p80, %p81
    %p83 = scmp.ne.s32.totalorder %s71, %s72
    %p84 = scmp.eq.s32.totalorder %s20, 1
    %p85 = por %p83, %p84
    %p87 = scmp.ne.s32.totalorder %s72, %s86
    %p88 = scmp.eq.s32.totalorder %s20, 0
    %p89 = por %p87, %p88
    %s91 = sadd.s32 %s90, 1
    %p94 = scmp.eq.s32.totalorder %s14, 1
    %p95 = scmp.ne.s32.totalorder %s90, %s92
    %p96 = scmp.eq.s32.totalorder %s14, 0
    %p97 = por %p95, %p96
    %p98 = scmp.ne.s32.totalorder %s90, %s92
    %p99 = scmp.eq.s32.totalorder %s19, 1
    %p100 = por %p98, %p99
    %p101 = scmp.ne.s32.totalorder %s92, %s93
    %p102 = scmp.eq.s32.totalorder %s19, 0
    %p103 = por %p101, %p102
    %p104 = scmp.ne.s32.totalorder %s92, %s93
    %p105 = scmp.eq.s32.totalorder %s20, 1
    %p106 = por %p104, %p105
    %p108 = scmp.ne.s32.totalorder %s93, %s107
    %p109 = scmp.eq.s32.totalorder %s20, 0
    %p110 = por %p108, %p109
    %s112 = sadd.s32 %s111, 1
    %p115 = scmp.eq.s32.totalorder %s14, 1
    %p116 = scmp.ne.s32.totalorder %s111, %s113
    %p117 = scmp.eq.s32.totalorder %s14, 0
    %p118 = por %p116, %p117
    %p119 = scmp.ne.s32.totalorder %s111, %s113
    %p120 = scmp.eq.s32.totalorder %s19, 1
    %p121 = por %p119, %p120
    %p122 = scmp.ne.s32.totalorder %s113, %s114
    %p123 = scmp.eq.s32.totalorder %s19, 0
    %p124 = por %p122, %p123
    %p125 = scmp.ne.s32.totalorder %s113, %s114
    %p126 = scmp.eq.s32.totalorder %s20, 1
    %p127 = por %p125, %p126
    %p129 = scmp.ne.s32.totalorder %s114, %s128
    %p130 = scmp.eq.s32.totalorder %s20, 0
    %p131 = por %p129, %p130
    %s132 = ssub.s32 %s14, %s21
    %p133 = scmp.eq.s32.totalorder %s132, 0
    %s135 = sadd.s32 %s134, 1
    %s136 = scalar_select %p133, %s134, %s135
    %p139 = pneg %p133
    %p140 = scmp.eq.s32.totalorder %s14, 1
    %p141 = por %p139, %p140
    %p142 = scmp.ne.s32.totalorder %s134, %s137
    %p143 = scmp.eq.s32.totalorder %s14, 0
    %p144 = por %p142, %p143
    %p145 = scmp.ne.s32.totalorder %s134, %s137
    %p146 = scmp.eq.s32.totalorder %s19, 1
    %p147 = por %p145, %p146
    %p148 = scmp.ne.s32.totalorder %s137, %s138
    %p149 = scmp.eq.s32.totalorder %s19, 0
    %p150 = por %p148, %p149
    %p151 = scmp.ne.s32.totalorder %s137, %s138
    %p152 = scmp.eq.s32.totalorder %s20, 1
    %p153 = por %p151, %p152
    %p155 = scmp.ne.s32.totalorder %s138, %s154
    %p156 = scmp.eq.s32.totalorder %s20, 0
    %p157 = por %p155, %p156
    %s159 = sadd.s32 %s158, 1
    %p162 = scmp.eq.s32.totalorder %s14, 1
    %p163 = scmp.ne.s32.totalorder %s158, %s160
    %p164 = scmp.eq.s32.totalorder %s14, 0
    %p165 = por %p163, %p164
    %p166 = scmp.ne.s32.totalorder %s158, %s160
    %p167 = scmp.eq.s32.totalorder %s19, 1
    %p168 = por %p166, %p167
    %p169 = scmp.ne.s32.totalorder %s160, %s161
    %p170 = scmp.eq.s32.totalorder %s19, 0
    %p171 = por %p169, %p170
    %p172 = scmp.ne.s32.totalorder %s160, %s161
    %p173 = scmp.eq.s32.totalorder %s20, 1
    %p174 = por %p172, %p173
    %p176 = scmp.ne.s32.totalorder %s161, %s175
    %p177 = scmp.eq.s32.totalorder %s20, 0
    %p178 = por %p176, %p177
    %s180 = sadd.s32 %s179, 1
    %p183 = scmp.eq.s32.totalorder %s14, 1
    %p184 = scmp.ne.s32.totalorder %s179, %s181
    %p185 = scmp.eq.s32.totalorder %s14, 0
    %p186 = por %p184, %p185
    %p187 = scmp.ne.s32.totalorder %s179, %s181
    %p188 = scmp.eq.s32.totalorder %s19, 1
    %p189 = por %p187, %p188
    %p190 = scmp.ne.s32.totalorder %s181, %s182
    %p191 = scmp.eq.s32.totalorder %s19, 0
    %p192 = por %p190, %p191
    %p193 = scmp.ne.s32.totalorder %s181, %s182
    %p194 = scmp.eq.s32.totalorder %s20, 1
    %p195 = por %p193, %p194
    %p197 = scmp.ne.s32.totalorder %s182, %s196
    %p198 = scmp.eq.s32.totalorder %s20, 0
    %p199 = por %p197, %p198
    %p200 = scmp.le.s32.totalorder 1, %s14
    %p201 = scmp.lt.s32.totalorder %s14, 3
    %p202 = pnand %p200, %p201
    %p203 = pneg %p202
    // Predicated region
    $region9: #{encoder_block_forward.5} parent=5 // pred_check
      _
    $region10: #{encoder_block_forward.5} parent=5 // pred_check_branch
      %205 = sbr.rel (%p202) target = $region12
    $region11: #{encoder_block_forward.5} parent=5 // pred_region
      %s206 = ssub.s32 %s14, 1
      // Predicated region
      $region13: #{encoder_block_forward.5} parent=11 // pred_check
        %p207 = pneg %p61
      $region14: #{encoder_block_forward.5} parent=11 // pred_check_branch
        %209 = sbr.rel (%p207) target = $region16
      $region15: #{encoder_block_forward.5} parent=11 // pred_region
        _
      $region16: #{encoder_block_forward.5} parent=11 // pred_fallthru
        _
      // Predicated region
      $region17: #{encoder_block_forward.5} parent=11 // pred_check
        %p210 = pneg %p82
      $region18: #{encoder_block_forward.5} parent=11 // pred_check_branch
        %212 = sbr.rel (%p210) target = $region20
      $region19: #{encoder_block_forward.5} parent=11 // pred_region
        _
      $region20: #{encoder_block_forward.5} parent=11 // pred_fallthru
        _
      // Predicated region
      $region21: #{encoder_block_forward.5} parent=11 // pred_check
        %p213 = pneg %p103
      $region22: #{encoder_block_forward.5} parent=11 // pred_check_branch
        %215 = sbr.rel (%p213) target = $region24
      $region23: #{encoder_block_forward.5} parent=11 // pred_region
        _
      $region24: #{encoder_block_forward.5} parent=11 // pred_fallthru
        _
      // Predicated region
      $region25: #{encoder_block_forward.5} parent=11 // pred_check
        %p216 = pneg %p124
      $region26: #{encoder_block_forward.5} parent=11 // pred_check_branch
        %218 = sbr.rel (%p216) target = $region28
      $region27: #{encoder_block_forward.5} parent=11 // pred_region
        _
      $region28: #{encoder_block_forward.5} parent=11 // pred_fallthru
        _
    $region12: #{encoder_block_forward.5} parent=5 // pred_fallthru
      _
    %p219 = scmp.lt.s32.totalorder %s14, 2
    // Predicated region
    $region29: #{encoder_block_forward.5} parent=5 // pred_check
      %p220 = pneg %p219
    $region30: #{encoder_block_forward.5} parent=5 // pred_check_branch
      %222 = sbr.rel (%p220) target = $region32
    $region31: #{encoder_block_forward.5} parent=5 // pred_region
      // Predicated region
      $region33: #{encoder_block_forward.5} parent=31 // pred_check
        %p223 = pneg %p34
      $region34: #{encoder_block_forward.5} parent=31 // pred_check_branch
        %225 = sbr.rel (%p223) target = $region36
      $region35: #{encoder_block_forward.5} parent=31 // pred_region
        %p226 = scmp.lt.s32.totalorder %s14, 1
        %s227 = scalar_select %p226, %s14, 1
        %s228 = smul.addr %s227, 20
        %s229 = smul.addr %s228, 8
        %s230 = scalar_lea.vmem %s0, %s229
      $region36: #{encoder_block_forward.5} parent=31 // pred_fallthru
        _
    $region32: #{encoder_block_forward.5} parent=5 // pred_fallthru
      _
    %p231 = scmp.le.s32.totalorder 1, %s14
    %p232 = scmp.lt.s32.totalorder %s14, 3
    %p233 = pnand %p231, %p232
    %p234 = pneg %p233
    // Predicated region
    $region37: #{encoder_block_forward.5} parent=5 // pred_check
      _
    $region38: #{encoder_block_forward.5} parent=5 // pred_check_branch
      %236 = sbr.rel (%p233) target = $region40
    $region39: #{encoder_block_forward.5} parent=5 // pred_region
      %s237 = ssub.s32 %s14, 1
      %p238 = scmp.lt.s32.totalorder %s19, 1
      %s239 = scalar_select %p238, %s19, 1
      %s240 = smul.addr %s239, 20
      %s241 = smul.addr %s240, 8
      %s242 = scalar_lea.vmem %s0, %s241
      %p243 = pneg %p40
      %p244 = pneg %p37
      %p245 = pneg %p61
      %p246 = pneg %p58
      %p247 = pneg %p82
      %p248 = pneg %p79
      %p249 = pneg %p103
      %p250 = pneg %p100
      %p251 = pneg %p124
      %p252 = pneg %p121
      %p253 = pneg %p150
      %p254 = pneg %p147
      %p255 = scmp.lt.s32.totalorder %s19, 1
      %s256 = scalar_select %p255, %s19, 1
      %s257 = smul.addr %s256, 8
      %s258 = smul.addr %s257, 8
      %s259 = scalar_lea.vmem %s5, %s258
      %p260 = pneg %p171
      %p261 = pneg %p168
      %p262 = pneg %p192
      %p263 = pneg %p189
      %p264 = scmp.lt.s32.totalorder %s19, 1
      %s265 = scalar_select %p264, %s19, 1
      %s266 = smul.addr %s265, 20
      %s267 = smul.addr %s266, 8
      %s268 = scalar_lea.vmem %s0, %s267
      %p269 = scmp.lt.s32.totalorder %s19, 1
      %s270 = scalar_select %p269, %s19, 1
      %s271 = smul.addr %s270, 8
      %s272 = smul.addr %s271, 8
      %s273 = scalar_lea.vmem %s5, %s272
      %v274 = vld [vmem:[%s268] sm:$0xff]
      %v275 = vld [vmem:[%s268 + $0x8] sm:$0x3]
      %v276 = vld [vmem:[%s268 + $0x10] sm:$0xff]
      %v277 = vld [vmem:[%s268 + $0x18] sm:$0x3]
      %v278 = vld [vmem:[%s268 + $0x20] sm:$0xff]
      %v279 = vld [vmem:[%s268 + $0x28] sm:$0x3]
      %v280 = vld [vmem:[%s268 + $0x30] sm:$0xff]
      %v281 = vld [vmem:[%s268 + $0x38] sm:$0x3]
      %v282 = vld [vmem:[%s268 + $0x40] sm:$0xff]
      %v283 = vld [vmem:[%s268 + $0x48] sm:$0x3]
      %v284 = vld [vmem:[%s268 + $0x50] sm:$0xff]
      %v285 = vld [vmem:[%s268 + $0x58] sm:$0x3]
      %v286 = vld [vmem:[%s268 + $0x60] sm:$0xff]
      %v287 = vld [vmem:[%s268 + $0x68] sm:$0x3]
      %v288 = vld [vmem:[%s268 + $0x70] sm:$0xff]
      %v289 = vld [vmem:[%s268 + $0x78] sm:$0x3]
      %v290 = vld [vmem:[%s268 + $0x80] sm:$0xff]
      %v291 = vld [vmem:[%s268 + $0x88] sm:$0x3]
      %v292 = vld [vmem:[%s268 + $0x90] sm:$0xff]
      %v293 = vld [vmem:[%s268 + $0x98] sm:$0x3]
      %v294 = vlaneseq
      %v295 = vshrl.u32 %v294, 7
      %v296 = vadd.s32 %v295, 8
      %vm297 = vcmp.ge.s32.totalorder %v295, 1
      %vm298 = vcmp.ge.s32.totalorder %v296, 1
      %vm299 = vmand 0, %vm297
      %vm300 = vmand 0, %vm298
      %vm301 = vmand 1, %vm297
      %vm302 = vmand 1, %vm298
      %vm303 = vcmp.le.s32.totalorder %v295, 8
      %vm304 = vcmp.le.s32.totalorder %v296, 8
      %vm305 = vmand %vm299, %vm303
      %vm306 = vmand %vm300, %vm304
      %vm307 = vmand %vm301, %vm303
      %vm308 = vmand %vm302, %vm304
      %v309 = vld [vmem:[%s1] sm:$0x1]
      %v310 = vld [vmem:[%s2] sm:$0x1]
      %v312 = vlaneseq
      %v313 = vshrl.u32 %v312, 7
      %v314 = vsub.s32 0, %v313
      %v315 = vrot.slane %v309, %v314
      %v317 = vmul.f32 %v274, %v315
      %v318 = vmul.f32 %v275, %v315
      %v319 = vmul.f32 %v276, %v315
      %v320 = vmul.f32 %v277, %v315
      %v321 = vmul.f32 %v278, %v315
      %v322 = vmul.f32 %v279, %v315
      %v323 = vmul.f32 %v280, %v315
      %v324 = vmul.f32 %v281, %v315
      %v325 = vmul.f32 %v282, %v315
      %v326 = vmul.f32 %v283, %v315
      %v327 = vmul.f32 %v284, %v315
      %v328 = vmul.f32 %v285, %v315
      %v329 = vmul.f32 %v286, %v315
      %v330 = vmul.f32 %v287, %v315
      %v331 = vmul.f32 %v288, %v315
      %v332 = vmul.f32 %v289, %v315
      %v333 = vmul.f32 %v290, %v315
      %v334 = vmul.f32 %v291, %v315
      %v335 = vmul.f32 %v292, %v315
      %v336 = vmul.f32 %v293, %v315
      %v338 = vlaneseq
      %v339 = vshrl.u32 %v338, 7
      %v340 = vsub.s32 0, %v339
      %v341 = vrot.slane %v310, %v340
      %v343 = vadd.f32 %v317, %v341
      %v344 = vadd.f32 %v318, %v341
      %v345 = vadd.f32 %v319, %v341
      %v346 = vadd.f32 %v320, %v341
      %v347 = vadd.f32 %v321, %v341
      %v348 = vadd.f32 %v322, %v341
      %v349 = vadd.f32 %v323, %v341
      %v350 = vadd.f32 %v324, %v341
      %v351 = vadd.f32 %v325, %v341
      %v352 = vadd.f32 %v326, %v341
      %v353 = vadd.f32 %v327, %v341
      %v354 = vadd.f32 %v328, %v341
      %v355 = vadd.f32 %v329, %v341
      %v356 = vadd.f32 %v330, %v341
      %v357 = vadd.f32 %v331, %v341
      %v358 = vadd.f32 %v332, %v341
      %v359 = vadd.f32 %v333, %v341
      %v360 = vadd.f32 %v334, %v341
      %v361 = vadd.f32 %v335, %v341
      %v362 = vadd.f32 %v336, %v341
      %v363 = vsel %vm305, %v343, 0.0
      %v364 = vsel %vm306, %v344, 0.0
      %v365 = vsel %vm307, %v345, 0.0
      %v366 = vsel %vm308, %v346, 0.0
      %v367 = vsel %vm307, %v347, 0.0
      %v368 = vsel %vm308, %v348, 0.0
      %v369 = vsel %vm307, %v349, 0.0
      %v370 = vsel %vm308, %v350, 0.0
      %v371 = vsel %vm307, %v351, 0.0
      %v372 = vsel %vm308, %v352, 0.0
      %v373 = vsel %vm307, %v353, 0.0
      %v374 = vsel %vm308, %v354, 0.0
      %v375 = vsel %vm307, %v355, 0.0
      %v376 = vsel %vm308, %v356, 0.0
      %v377 = vsel %vm307, %v357, 0.0
      %v378 = vsel %vm308, %v358, 0.0
      %v379 = vsel %vm307, %v359, 0.0
      %v380 = vsel %vm308, %v360, 0.0
      %v381 = vsel %vm305, %v361, 0.0
      %v382 = vsel %vm306, %v362, 0.0
      %v383 = vld [vmem:[%s3] sm:$0xff]
      %vm400 = vcmask 1046528
      %v401 = vrot.slane %v363, 1
      %v402 = vrot.slane %v364, 1
      %v403 = vsel %vm400, %v401, %v402
      %v404 = vrot.slane %v365, 1
      %v405 = vrot.slane %v366, 1
      %v406 = vsel %vm400, %v404, %v405
      %v407 = vrot.slane %v367, 1
      %v408 = vrot.slane %v368, 1
      %v409 = vsel %vm400, %v407, %v408
      %v410 = vrot.slane %v369, 1
      %v411 = vrot.slane %v370, 1
      %v412 = vsel %vm400, %v410, %v411
      %v413 = vrot.slane %v371, 1
      %v414 = vrot.slane %v372, 1
      %v415 = vsel %vm400, %v413, %v414
      %v416 = vrot.slane %v373, 1
      %v417 = vrot.slane %v374, 1
      %v418 = vsel %vm400, %v416, %v417
      %v419 = vrot.slane %v375, 1
      %v420 = vrot.slane %v376, 1
      %v421 = vsel %vm400, %v419, %v420
      %v422 = vrot.slane %v377, 1
      %v423 = vrot.slane %v378, 1
      %v424 = vsel %vm400, %v422, %v423
      %s425 = scalar_lea.vmem %s3, 8
      %v426 = vld [vmem:[%s425] sm:$0xff]
      %vm427 = vcmask 64512
      %v428 = vsel %vm427, %v403, 0
      %v430 = vsel %vm427, %v406, 0
      %v432 = vsel %vm427, %v409, 0
      %v434 = vsel %vm427, %v412, 0
      %v436 = vsel %vm427, %v415, 0
      %v438 = vsel %vm427, %v418, 0
      %v440 = vsel %vm427, %v421, 0
      %v442 = vsel %vm427, %v424, 0
      %444 = vmatprep.subr.mxu0 0.0
      %445 = vmatpush1.msra.mxu0 0.0
      %446 = vmatprep.subr.mxu0 0.0
      %447 = vmatpush1.msra.mxu0 0.0
      %448 = vmatprep.subr.mxu0 0.0
      %449 = vmatpush1.msra.mxu0 0.0
      %450 = vmatprep.subr.mxu0 0.0
      %451 = vmatpush1.msra.mxu0 0.0
      %452 = vmatprep.subr.mxu0 0.0
      %453 = vmatpush1.msra.mxu0 0.0
      %454 = vmatprep.subr.mxu0 0.0
      %455 = vmatpush1.msra.mxu0 0.0
      %456 = vmatprep.subr.mxu0 0.0
      %457 = vmatpush1.msra.mxu0 0.0
      %458 = vmatprep.subr.mxu0 0.0
      %459 = vmatpush1.msra.mxu0 0.0
      %460 = vmatprep.subr.mxu0 0.0
      %461 = vmatpush1.msra.mxu0 0.0
      %462 = vmatprep.subr.mxu0 0.0
      %463 = vmatpush1.msra.mxu0 0.0
      %464 = vmatprep.subr.mxu0 0.0
      %465 = vmatpush1.msra.mxu0 0.0
      %466 = vmatprep.subr.mxu0 0.0
      %467 = vmatpush1.msra.mxu0 0.0
      %468 = vmatprep.subr.mxu0 0.0
      %469 = vmatpush1.msra.mxu0 0.0
      %470 = vmatprep.subr.mxu0 0.0
      %471 = vmatpush1.msra.mxu0 0.0
      %472 = vmatprep.subr.mxu0 0.0
      %473 = vmatpush1.msra.mxu0 0.0
      %474 = vmatprep.subr.mxu0 0.0
      %475 = vmatpush1.msra.mxu0 %v426
      %476 = vmatprep.subr.mxu0 0.0
      %477 = vmatpush2.msra.mxu0 0.0
      %478 = vmatprep.subr.mxu0 0.0
      %479 = vmatpush2.msra.mxu0 0.0
      %480 = vmatprep.subr.mxu0 0.0
      %481 = vmatpush2.msra.mxu0 0.0
      %482 = vmatprep.subr.mxu0 0.0
      %483 = vmatpush2.msra.mxu0 0.0
      %484 = vmatprep.subr.mxu0 0.0
      %485 = vmatpush2.msra.mxu0 0.0
      %486 = vmatprep.subr.mxu0 0.0
      %487 = vmatpush2.msra.mxu0 0.0
      %488 = vmatprep.subr.mxu0 0.0
      %489 = vmatpush2.msra.mxu0 0.0
      %490 = vmatprep.subr.mxu0 0.0
      %491 = vmatpush2.msra.mxu0 0.0
      %492 = vmatprep.subr.mxu0 0.0
      %493 = vmatpush2.msra.mxu0 0.0
      %494 = vmatprep.subr.mxu0 0.0
      %495 = vmatpush2.msra.mxu0 0.0
      %496 = vmatprep.subr.mxu0 0.0
      %497 = vmatpush2.msra.mxu0 0.0
      %498 = vmatprep.subr.mxu0 0.0
      %499 = vmatpush2.msra.mxu0 0.0
      %500 = vmatprep.subr.mxu0 0.0
      %501 = vmatpush2.msra.mxu0 0.0
      %502 = vmatprep.subr.mxu0 0.0
      %503 = vmatpush2.msra.mxu0 0.0
      %504 = vmatprep.subr.mxu0 0.0
      %505 = vmatpush2.msra.mxu0 0.0
      %506 = vmatprep.subr.mxu0 0.0
      %507 = vmatpush2.msra.mxu0 0.0
      %508 = vmatprep.mubr.f32.mxu0 0.0
      %509 = vmatmul.mubr.f32.gmra.mxu0 %v428
      %v510 = vpop.f32.mrf.mxu0
      %v511 = vadd.f32 0.0, %v510
      %v512 = vpop.f32.mrf.mxu0
      %513 = vmatprep.mubr.f32.mxu0 0.0
      %514 = vmatmul.mubr.f32.gmra.mxu0 %v430
      %v515 = vpop.f32.mrf.mxu0
      %v516 = vadd.f32 0.0, %v515
      %v517 = vpop.f32.mrf.mxu0
      %518 = vmatprep.mubr.f32.mxu0 0.0
      %519 = vmatmul.mubr.f32.gmra.mxu0 %v432
      %v520 = vpop.f32.mrf.mxu0
      %v521 = vadd.f32 0.0, %v520
      %v522 = vpop.f32.mrf.mxu0
      %523 = vmatprep.mubr.f32.mxu0 0.0
      %524 = vmatmul.mubr.f32.gmra.mxu0 %v434
      %v525 = vpop.f32.mrf.mxu0
      %v526 = vadd.f32 0.0, %v525
      %v527 = vpop.f32.mrf.mxu0
      %528 = vmatprep.mubr.f32.mxu0 0.0
      %529 = vmatmul.mubr.f32.gmra.mxu0 %v436
      %v530 = vpop.f32.mrf.mxu0
      %v531 = vadd.f32 0.0, %v530
      %v532 = vpop.f32.mrf.mxu0
      %533 = vmatprep.mubr.f32.mxu0 0.0
      %534 = vmatmul.mubr.f32.gmra.mxu0 %v438
      %v535 = vpop.f32.mrf.mxu0
      %v536 = vadd.f32 0.0, %v535
      %v537 = vpop.f32.mrf.mxu0
      %538 = vmatprep.mubr.f32.mxu0 0.0
      %539 = vmatmul.mubr.f32.gmra.mxu0 %v440
      %v540 = vpop.f32.mrf.mxu0
      %v541 = vadd.f32 0.0, %v540
      %v542 = vpop.f32.mrf.mxu0
      %543 = vmatprep.mubr.f32.mxu0 0.0
      %544 = vmatmul.mubr.f32.gmra.mxu0 %v442
      %v545 = vpop.f32.mrf.mxu0
      %v546 = vadd.f32 0.0, %v545
      %v547 = vpop.f32.mrf.mxu0
      %548 = vdwg.mxu0
      %v549 = vsel %vm427, %v363, 0
      %v551 = vsel %vm427, %v365, 0
      %v553 = vsel %vm427, %v367, 0
      %v555 = vsel %vm427, %v369, 0
      %v557 = vsel %vm427, %v371, 0
      %v559 = vsel %vm427, %v373, 0
      %v561 = vsel %vm427, %v375, 0
      %v563 = vsel %vm427, %v377, 0
      %565 = vmatprep.subr.mxu0 0.0
      %566 = vmatpush1.msra.mxu0 0.0
      %567 = vmatprep.subr.mxu0 0.0
      %568 = vmatpush1.msra.mxu0 0.0
      %569 = vmatprep.subr.mxu0 0.0
      %570 = vmatpush1.msra.mxu0 0.0
      %571 = vmatprep.subr.mxu0 0.0
      %572 = vmatpush1.msra.mxu0 0.0
      %573 = vmatprep.subr.mxu0 0.0
      %574 = vmatpush1.msra.mxu0 0.0
      %575 = vmatprep.subr.mxu0 0.0
      %576 = vmatpush1.msra.mxu0 0.0
      %577 = vmatprep.subr.mxu0 0.0
      %578 = vmatpush1.msra.mxu0 0.0
      %579 = vmatprep.subr.mxu0 0.0
      %580 = vmatpush1.msra.mxu0 0.0
      %581 = vmatprep.subr.mxu0 0.0
      %582 = vmatpush1.msra.mxu0 0.0
      %583 = vmatprep.subr.mxu0 0.0
      %584 = vmatpush1.msra.mxu0 0.0
      %585 = vmatprep.subr.mxu0 0.0
      %586 = vmatpush1.msra.mxu0 0.0
      %587 = vmatprep.subr.mxu0 0.0
      %588 = vmatpush1.msra.mxu0 0.0
      %589 = vmatprep.subr.mxu0 0.0
      %590 = vmatpush1.msra.mxu0 0.0
      %591 = vmatprep.subr.mxu0 0.0
      %592 = vmatpush1.msra.mxu0 0.0
      %593 = vmatprep.subr.mxu0 0.0
      %594 = vmatpush1.msra.mxu0 0.0
      %595 = vmatprep.subr.mxu0 0.0
      %596 = vmatpush1.msra.mxu0 %v383
      %597 = vmatprep.subr.mxu0 0.0
      %598 = vmatpush2.msra.mxu0 0.0
      %599 = vmatprep.subr.mxu0 0.0
      %600 = vmatpush2.msra.mxu0 0.0
      %601 = vmatprep.subr.mxu0 0.0
      %602 = vmatpush2.msra.mxu0 0.0
      %603 = vmatprep.subr.mxu0 0.0
      %604 = vmatpush2.msra.mxu0 0.0
      %605 = vmatprep.subr.mxu0 0.0
      %606 = vmatpush2.msra.mxu0 0.0
      %607 = vmatprep.subr.mxu0 0.0
      %608 = vmatpush2.msra.mxu0 0.0
      %609 = vmatprep.subr.mxu0 0.0
      %610 = vmatpush2.msra.mxu0 0.0
      %611 = vmatprep.subr.mxu0 0.0
      %612 = vmatpush2.msra.mxu0 0.0
      %613 = vmatprep.subr.mxu0 0.0
      %614 = vmatpush2.msra.mxu0 0.0
      %615 = vmatprep.subr.mxu0 0.0
      %616 = vmatpush2.msra.mxu0 0.0
      %617 = vmatprep.subr.mxu0 0.0
      %618 = vmatpush2.msra.mxu0 0.0
      %619 = vmatprep.subr.mxu0 0.0
      %620 = vmatpush2.msra.mxu0 0.0
      %621 = vmatprep.subr.mxu0 0.0
      %622 = vmatpush2.msra.mxu0 0.0
      %623 = vmatprep.subr.mxu0 0.0
      %624 = vmatpush2.msra.mxu0 0.0
      %625 = vmatprep.subr.mxu0 0.0
      %626 = vmatpush2.msra.mxu0 0.0
      %627 = vmatprep.subr.mxu0 0.0
      %628 = vmatpush2.msra.mxu0 0.0
      %629 = vmatprep.mubr.f32.mxu0 0.0
      %630 = vmatmul.mubr.f32.gmra.mxu0 %v549
      %v631 = vpop.f32.mrf.mxu0
      %v632 = vadd.f32 %v511, %v631
      %v633 = vpop.f32.mrf.mxu0
      %634 = vmatprep.mubr.f32.mxu0 0.0
      %635 = vmatmul.mubr.f32.gmra.mxu0 %v551
      %v636 = vpop.f32.mrf.mxu0
      %v637 = vadd.f32 %v516, %v636
      %v638 = vpop.f32.mrf.mxu0
      %639 = vmatprep.mubr.f32.mxu0 0.0
      %640 = vmatmul.mubr.f32.gmra.mxu0 %v553
      %v641 = vpop.f32.mrf.mxu0
      %v642 = vadd.f32 %v521, %v641
      %v643 = vpop.f32.mrf.mxu0
      %644 = vmatprep.mubr.f32.mxu0 0.0
      %645 = vmatmul.mubr.f32.gmra.mxu0 %v555
      %v646 = vpop.f32.mrf.mxu0
      %v647 = vadd.f32 %v526, %v646
      %v648 = vpop.f32.mrf.mxu0
      %649 = vmatprep.mubr.f32.mxu0 0.0
      %650 = vmatmul.mubr.f32.gmra.mxu0 %v557
      %v651 = vpop.f32.mrf.mxu0
      %v652 = vadd.f32 %v531, %v651
      %v653 = vpop.f32.mrf.mxu0
      %654 = vmatprep.mubr.f32.mxu0 0.0
      %655 = vmatmul.mubr.f32.gmra.mxu0 %v559
      %v656 = vpop.f32.mrf.mxu0
      %v657 = vadd.f32 %v536, %v656
      %v658 = vpop.f32.mrf.mxu0
      %659 = vmatprep.mubr.f32.mxu0 0.0
      %660 = vmatmul.mubr.f32.gmra.mxu0 %v561
      %v661 = vpop.f32.mrf.mxu0
      %v662 = vadd.f32 %v541, %v661
      %v663 = vpop.f32.mrf.mxu0
      %664 = vmatprep.mubr.f32.mxu0 0.0
      %665 = vmatmul.mubr.f32.gmra.mxu0 %v563
      %v666 = vpop.f32.mrf.mxu0
      %v667 = vadd.f32 %v546, %v666
      %v668 = vpop.f32.mrf.mxu0
      %669 = vdwg.mxu0
      %vm670 = vcmask 1045504
      %v671 = vrot.slane %v363, 2
      %v672 = vrot.slane %v364, 2
      %v673 = vsel %vm670, %v671, %v672
      %v674 = vrot.slane %v365, 2
      %v675 = vrot.slane %v366, 2
      %v676 = vsel %vm670, %v674, %v675
      %v677 = vrot.slane %v367, 2
      %v678 = vrot.slane %v368, 2
      %v679 = vsel %vm670, %v677, %v678
      %v680 = vrot.slane %v369, 2
      %v681 = vrot.slane %v370, 2
      %v682 = vsel %vm670, %v680, %v681
      %v683 = vrot.slane %v371, 2
      %v684 = vrot.slane %v372, 2
      %v685 = vsel %vm670, %v683, %v684
      %v686 = vrot.slane %v373, 2
      %v687 = vrot.slane %v374, 2
      %v688 = vsel %vm670, %v686, %v687
      %v689 = vrot.slane %v375, 2
      %v690 = vrot.slane %v376, 2
      %v691 = vsel %vm670, %v689, %v690
      %v692 = vrot.slane %v377, 2
      %v693 = vrot.slane %v378, 2
      %v694 = vsel %vm670, %v692, %v693
      %s695 = scalar_lea.vmem %s3, 16
      %v696 = vld [vmem:[%s695] sm:$0xff]
      %v697 = vsel %vm427, %v673, 0
      %v699 = vsel %vm427, %v676, 0
      %v701 = vsel %vm427, %v679, 0
      %v703 = vsel %vm427, %v682, 0
      %v705 = vsel %vm427, %v685, 0
      %v707 = vsel %vm427, %v688, 0
      %v709 = vsel %vm427, %v691, 0
      %v711 = vsel %vm427, %v694, 0
      %713 = vmatprep.subr.mxu0 0.0
      %714 = vmatpush1.msra.mxu0 0.0
      %715 = vmatprep.subr.mxu0 0.0
      %716 = vmatpush1.msra.mxu0 0.0
      %717 = vmatprep.subr.mxu0 0.0
      %718 = vmatpush1.msra.mxu0 0.0
      %719 = vmatprep.subr.mxu0 0.0
      %720 = vmatpush1.msra.mxu0 0.0
      %721 = vmatprep.subr.mxu0 0.0
      %722 = vmatpush1.msra.mxu0 0.0
      %723 = vmatprep.subr.mxu0 0.0
      %724 = vmatpush1.msra.mxu0 0.0
      %725 = vmatprep.subr.mxu0 0.0
      %726 = vmatpush1.msra.mxu0 0.0
      %727 = vmatprep.subr.mxu0 0.0
      %728 = vmatpush1.msra.mxu0 0.0
      %729 = vmatprep.subr.mxu0 0.0
      %730 = vmatpush1.msra.mxu0 0.0
      %731 = vmatprep.subr.mxu0 0.0
      %732 = vmatpush1.msra.mxu0 0.0
      %733 = vmatprep.subr.mxu0 0.0
      %734 = vmatpush1.msra.mxu0 0.0
      %735 = vmatprep.subr.mxu0 0.0
      %736 = vmatpush1.msra.mxu0 0.0
      %737 = vmatprep.subr.mxu0 0.0
      %738 = vmatpush1.msra.mxu0 0.0
      %739 = vmatprep.subr.mxu0 0.0
      %740 = vmatpush1.msra.mxu0 0.0
      %741 = vmatprep.subr.mxu0 0.0
      %742 = vmatpush1.msra.mxu0 0.0
      %743 = vmatprep.subr.mxu0 0.0
      %744 = vmatpush1.msra.mxu0 %v696
      %745 = vmatprep.subr.mxu0 0.0
      %746 = vmatpush2.msra.mxu0 0.0
      %747 = vmatprep.subr.mxu0 0.0
      %748 = vmatpush2.msra.mxu0 0.0
      %749 = vmatprep.subr.mxu0 0.0
      %750 = vmatpush2.msra.mxu0 0.0
      %751 = vmatprep.subr.mxu0 0.0
      %752 = vmatpush2.msra.mxu0 0.0
      %753 = vmatprep.subr.mxu0 0.0
      %754 = vmatpush2.msra.mxu0 0.0
      %755 = vmatprep.subr.mxu0 0.0
      %756 = vmatpush2.msra.mxu0 0.0
      %757 = vmatprep.subr.mxu0 0.0
      %758 = vmatpush2.msra.mxu0 0.0
      %759 = vmatprep.subr.mxu0 0.0
      %760 = vmatpush2.msra.mxu0 0.0
      %761 = vmatprep.subr.mxu0 0.0
      %762 = vmatpush2.msra.mxu0 0.0
      %763 = vmatprep.subr.mxu0 0.0
      %764 = vmatpush2.msra.mxu0 0.0
      %765 = vmatprep.subr.mxu0 0.0
      %766 = vmatpush2.msra.mxu0 0.0
      %767 = vmatprep.subr.mxu0 0.0
      %768 = vmatpush2.msra.mxu0 0.0
      %769 = vmatprep.subr.mxu0 0.0
      %770 = vmatpush2.msra.mxu0 0.0
      %771 = vmatprep.subr.mxu0 0.0
      %772 = vmatpush2.msra.mxu0 0.0
      %773 = vmatprep.subr.mxu0 0.0
      %774 = vmatpush2.msra.mxu0 0.0
      %775 = vmatprep.subr.mxu0 0.0
      %776 = vmatpush2.msra.mxu0 0.0
      %777 = vmatprep.mubr.f32.mxu0 0.0
      %778 = vmatmul.mubr.f32.gmra.mxu0 %v697
      %v779 = vpop.f32.mrf.mxu0
      %v780 = vadd.f32 0.0, %v779
      %v781 = vpop.f32.mrf.mxu0
      %782 = vmatprep.mubr.f32.mxu0 0.0
      %783 = vmatmul.mubr.f32.gmra.mxu0 %v699
      %v784 = vpop.f32.mrf.mxu0
      %v785 = vadd.f32 0.0, %v784
      %v786 = vpop.f32.mrf.mxu0
      %787 = vmatprep.mubr.f32.mxu0 0.0
      %788 = vmatmul.mubr.f32.gmra.mxu0 %v701
      %v789 = vpop.f32.mrf.mxu0
      %v790 = vadd.f32 0.0, %v789
      %v791 = vpop.f32.mrf.mxu0
      %792 = vmatprep.mubr.f32.mxu0 0.0
      %793 = vmatmul.mubr.f32.gmra.mxu0 %v703
      %v794 = vpop.f32.mrf.mxu0
      %v795 = vadd.f32 0.0, %v794
      %v796 = vpop.f32.mrf.mxu0
      %797 = vmatprep.mubr.f32.mxu0 0.0
      %798 = vmatmul.mubr.f32.gmra.mxu0 %v705
      %v799 = vpop.f32.mrf.mxu0
      %v800 = vadd.f32 0.0, %v799
      %v801 = vpop.f32.mrf.mxu0
      %802 = vmatprep.mubr.f32.mxu0 0.0
      %803 = vmatmul.mubr.f32.gmra.mxu0 %v707
      %v804 = vpop.f32.mrf.mxu0
      %v805 = vadd.f32 0.0, %v804
      %v806 = vpop.f32.mrf.mxu0
      %807 = vmatprep.mubr.f32.mxu0 0.0
      %808 = vmatmul.mubr.f32.gmra.mxu0 %v709
      %v809 = vpop.f32.mrf.mxu0
      %v810 = vadd.f32 0.0, %v809
      %v811 = vpop.f32.mrf.mxu0
      %812 = vmatprep.mubr.f32.mxu0 0.0
      %813 = vmatmul.mubr.f32.gmra.mxu0 %v711
      %v814 = vpop.f32.mrf.mxu0
      %v815 = vadd.f32 0.0, %v814
      %v816 = vpop.f32.mrf.mxu0
      %817 = vdwg.mxu0
      %v818 = vadd.f32 %v632, %v780
      %v819 = vadd.f32 %v637, %v785
      %v820 = vadd.f32 %v642, %v790
      %v821 = vadd.f32 %v647, %v795
      %v822 = vadd.f32 %v652, %v800
      %v823 = vadd.f32 %v657, %v805
      %v824 = vadd.f32 %v662, %v810
      %v825 = vadd.f32 %v667, %v815
      %s826 = scalar_lea.vmem %s3, 24
      %v827 = vld [vmem:[%s826] sm:$0xff]
      %v829 = vsel %vm427, %v379, 0
      %831 = vmatprep.subr.mxu0 0.0
      %832 = vmatpush1.msra.mxu0 0.0
      %833 = vmatprep.subr.mxu0 0.0
      %834 = vmatpush1.msra.mxu0 0.0
      %835 = vmatprep.subr.mxu0 0.0
      %836 = vmatpush1.msra.mxu0 0.0
      %837 = vmatprep.subr.mxu0 0.0
      %838 = vmatpush1.msra.mxu0 0.0
      %839 = vmatprep.subr.mxu0 0.0
      %840 = vmatpush1.msra.mxu0 0.0
      %841 = vmatprep.subr.mxu0 0.0
      %842 = vmatpush1.msra.mxu0 0.0
      %843 = vmatprep.subr.mxu0 0.0
      %844 = vmatpush1.msra.mxu0 0.0
      %845 = vmatprep.subr.mxu0 0.0
      %846 = vmatpush1.msra.mxu0 0.0
      %847 = vmatprep.subr.mxu0 0.0
      %848 = vmatpush1.msra.mxu0 0.0
      %849 = vmatprep.subr.mxu0 0.0
      %850 = vmatpush1.msra.mxu0 0.0
      %851 = vmatprep.subr.mxu0 0.0
      %852 = vmatpush1.msra.mxu0 0.0
      %853 = vmatprep.subr.mxu0 0.0
      %854 = vmatpush1.msra.mxu0 0.0
      %855 = vmatprep.subr.mxu0 0.0
      %856 = vmatpush1.msra.mxu0 0.0
      %857 = vmatprep.subr.mxu0 0.0
      %858 = vmatpush1.msra.mxu0 0.0
      %859 = vmatprep.subr.mxu0 0.0
      %860 = vmatpush1.msra.mxu0 0.0
      %861 = vmatprep.subr.mxu0 0.0
      %862 = vmatpush1.msra.mxu0 %v827
      %863 = vmatprep.subr.mxu0 0.0
      %864 = vmatpush2.msra.mxu0 0.0
      %865 = vmatprep.subr.mxu0 0.0
      %866 = vmatpush2.msra.mxu0 0.0
      %867 = vmatprep.subr.mxu0 0.0
      %868 = vmatpush2.msra.mxu0 0.0
      %869 = vmatprep.subr.mxu0 0.0
      %870 = vmatpush2.msra.mxu0 0.0
      %871 = vmatprep.subr.mxu0 0.0
      %872 = vmatpush2.msra.mxu0 0.0
      %873 = vmatprep.subr.mxu0 0.0
      %874 = vmatpush2.msra.mxu0 0.0
      %875 = vmatprep.subr.mxu0 0.0
      %876 = vmatpush2.msra.mxu0 0.0
      %877 = vmatprep.subr.mxu0 0.0
      %878 = vmatpush2.msra.mxu0 0.0
      %879 = vmatprep.subr.mxu0 0.0
      %880 = vmatpush2.msra.mxu0 0.0
      %881 = vmatprep.subr.mxu0 0.0
      %882 = vmatpush2.msra.mxu0 0.0
      %883 = vmatprep.subr.mxu0 0.0
      %884 = vmatpush2.msra.mxu0 0.0
      %885 = vmatprep.subr.mxu0 0.0
      %886 = vmatpush2.msra.mxu0 0.0
      %887 = vmatprep.subr.mxu0 0.0
      %888 = vmatpush2.msra.mxu0 0.0
      %889 = vmatprep.subr.mxu0 0.0
      %890 = vmatpush2.msra.mxu0 0.0
      %891 = vmatprep.subr.mxu0 0.0
      %892 = vmatpush2.msra.mxu0 0.0
      %893 = vmatprep.subr.mxu0 0.0
      %894 = vmatpush2.msra.mxu0 0.0
      %895 = vmatprep.mubr.f32.mxu0 0.0
      %896 = vmatmul.mubr.f32.gmra.mxu0 %v551
      %v897 = vpop.f32.mrf.mxu0
      %v898 = vadd.f32 0.0, %v897
      %v899 = vpop.f32.mrf.mxu0
      %900 = vmatprep.mubr.f32.mxu0 0.0
      %901 = vmatmul.mubr.f32.gmra.mxu0 %v553
      %v902 = vpop.f32.mrf.mxu0
      %v903 = vadd.f32 0.0, %v902
      %v904 = vpop.f32.mrf.mxu0
      %905 = vmatprep.mubr.f32.mxu0 0.0
      %906 = vmatmul.mubr.f32.gmra.mxu0 %v555
      %v907 = vpop.f32.mrf.mxu0
      %v908 = vadd.f32 0.0, %v907
      %v909 = vpop.f32.mrf.mxu0
      %910 = vmatprep.mubr.f32.mxu0 0.0
      %911 = vmatmul.mubr.f32.gmra.mxu0 %v557
      %v912 = vpop.f32.mrf.mxu0
      %v913 = vadd.f32 0.0, %v912
      %v914 = vpop.f32.mrf.mxu0
      %915 = vmatprep.mubr.f32.mxu0 0.0
      %916 = vmatmul.mubr.f32.gmra.mxu0 %v559
      %v917 = vpop.f32.mrf.mxu0
      %v918 = vadd.f32 0.0, %v917
      %v919 = vpop.f32.mrf.mxu0
      %920 = vmatprep.mubr.f32.mxu0 0.0
      %921 = vmatmul.mubr.f32.gmra.mxu0 %v561
      %v922 = vpop.f32.mrf.mxu0
      %v923 = vadd.f32 0.0, %v922
      %v924 = vpop.f32.mrf.mxu0
      %925 = vmatprep.mubr.f32.mxu0 0.0
      %926 = vmatmul.mubr.f32.gmra.mxu0 %v563
      %v927 = vpop.f32.mrf.mxu0
      %v928 = vadd.f32 0.0, %v927
      %v929 = vpop.f32.mrf.mxu0
      %930 = vmatprep.mubr.f32.mxu0 0.0
      %931 = vmatmul.mubr.f32.gmra.mxu0 %v829
      %v932 = vpop.f32.mrf.mxu0
      %v933 = vadd.f32 0.0, %v932
      %v934 = vpop.f32.mrf.mxu0
      %935 = vdwg.mxu0
      %v936 = vadd.f32 %v818, %v898
      %v937 = vadd.f32 %v819, %v903
      %v938 = vadd.f32 %v820, %v908
      %v939 = vadd.f32 %v821, %v913
      %v940 = vadd.f32 %v822, %v918
      %v941 = vadd.f32 %v823, %v923
      %v942 = vadd.f32 %v824, %v928
      %v943 = vadd.f32 %v825, %v933
      %v945 = vrot.slane %v379, 1
      %v946 = vrot.slane %v380, 1
      %v947 = vsel %vm400, %v945, %v946
      %s948 = scalar_lea.vmem %s3, 32
      %v949 = vld [vmem:[%s948] sm:$0xff]
      %v950 = vsel %vm427, %v947, 0
      %952 = vmatprep.subr.mxu0 0.0
      %953 = vmatpush1.msra.mxu0 0.0
      %954 = vmatprep.subr.mxu0 0.0
      %955 = vmatpush1.msra.mxu0 0.0
      %956 = vmatprep.subr.mxu0 0.0
      %957 = vmatpush1.msra.mxu0 0.0
      %958 = vmatprep.subr.mxu0 0.0
      %959 = vmatpush1.msra.mxu0 0.0
      %960 = vmatprep.subr.mxu0 0.0
      %961 = vmatpush1.msra.mxu0 0.0
      %962 = vmatprep.subr.mxu0 0.0
      %963 = vmatpush1.msra.mxu0 0.0
      %964 = vmatprep.subr.mxu0 0.0
      %965 = vmatpush1.msra.mxu0 0.0
      %966 = vmatprep.subr.mxu0 0.0
      %967 = vmatpush1.msra.mxu0 0.0
      %968 = vmatprep.subr.mxu0 0.0
      %969 = vmatpush1.msra.mxu0 0.0
      %970 = vmatprep.subr.mxu0 0.0
      %971 = vmatpush1.msra.mxu0 0.0
      %972 = vmatprep.subr.mxu0 0.0
      %973 = vmatpush1.msra.mxu0 0.0
      %974 = vmatprep.subr.mxu0 0.0
      %975 = vmatpush1.msra.mxu0 0.0
      %976 = vmatprep.subr.mxu0 0.0
      %977 = vmatpush1.msra.mxu0 0.0
      %978 = vmatprep.subr.mxu0 0.0
      %979 = vmatpush1.msra.mxu0 0.0
      %980 = vmatprep.subr.mxu0 0.0
      %981 = vmatpush1.msra.mxu0 0.0
      %982 = vmatprep.subr.mxu0 0.0
      %983 = vmatpush1.msra.mxu0 %v949
      %984 = vmatprep.subr.mxu0 0.0
      %985 = vmatpush2.msra.mxu0 0.0
      %986 = vmatprep.subr.mxu0 0.0
      %987 = vmatpush2.msra.mxu0 0.0
      %988 = vmatprep.subr.mxu0 0.0
      %989 = vmatpush2.msra.mxu0 0.0
      %990 = vmatprep.subr.mxu0 0.0
      %991 = vmatpush2.msra.mxu0 0.0
      %992 = vmatprep.subr.mxu0 0.0
      %993 = vmatpush2.msra.mxu0 0.0
      %994 = vmatprep.subr.mxu0 0.0
      %995 = vmatpush2.msra.mxu0 0.0
      %996 = vmatprep.subr.mxu0 0.0
      %997 = vmatpush2.msra.mxu0 0.0
      %998 = vmatprep.subr.mxu0 0.0
      %999 = vmatpush2.msra.mxu0 0.0
      %1000 = vmatprep.subr.mxu0 0.0
      %1001 = vmatpush2.msra.mxu0 0.0
      %1002 = vmatprep.subr.mxu0 0.0
      %1003 = vmatpush2.msra.mxu0 0.0
      %1004 = vmatprep.subr.mxu0 0.0
      %1005 = vmatpush2.msra.mxu0 0.0
      %1006 = vmatprep.subr.mxu0 0.0
      %1007 = vmatpush2.msra.mxu0 0.0
      %1008 = vmatprep.subr.mxu0 0.0
      %1009 = vmatpush2.msra.mxu0 0.0
      %1010 = vmatprep.subr.mxu0 0.0
      %1011 = vmatpush2.msra.mxu0 0.0
      %1012 = vmatprep.subr.mxu0 0.0
      %1013 = vmatpush2.msra.mxu0 0.0
      %1014 = vmatprep.subr.mxu0 0.0
      %1015 = vmatpush2.msra.mxu0 0.0
      %1016 = vmatprep.mubr.f32.mxu0 0.0
      %1017 = vmatmul.mubr.f32.gmra.mxu0 %v430
      %v1018 = vpop.f32.mrf.mxu0
      %v1019 = vadd.f32 0.0, %v1018
      %v1020 = vpop.f32.mrf.mxu0
      %1021 = vmatprep.mubr.f32.mxu0 0.0
      %1022 = vmatmul.mubr.f32.gmra.mxu0 %v432
      %v1023 = vpop.f32.mrf.mxu0
      %v1024 = vadd.f32 0.0, %v1023
      %v1025 = vpop.f32.mrf.mxu0
      %1026 = vmatprep.mubr.f32.mxu0 0.0
      %1027 = vmatmul.mubr.f32.gmra.mxu0 %v434
      %v1028 = vpop.f32.mrf.mxu0
      %v1029 = vadd.f32 0.0, %v1028
      %v1030 = vpop.f32.mrf.mxu0
      %1031 = vmatprep.mubr.f32.mxu0 0.0
      %1032 = vmatmul.mubr.f32.gmra.mxu0 %v436
      %v1033 = vpop.f32.mrf.mxu0
      %v1034 = vadd.f32 0.0, %v1033
      %v1035 = vpop.f32.mrf.mxu0
      %1036 = vmatprep.mubr.f32.mxu0 0.0
      %1037 = vmatmul.mubr.f32.gmra.mxu0 %v438
      %v1038 = vpop.f32.mrf.mxu0
      %v1039 = vadd.f32 0.0, %v1038
      %v1040 = vpop.f32.mrf.mxu0
      %1041 = vmatprep.mubr.f32.mxu0 0.0
      %1042 = vmatmul.mubr.f32.gmra.mxu0 %v440
      %v1043 = vpop.f32.mrf.mxu0
      %v1044 = vadd.f32 0.0, %v1043
      %v1045 = vpop.f32.mrf.mxu0
      %1046 = vmatprep.mubr.f32.mxu0 0.0
      %1047 = vmatmul.mubr.f32.gmra.mxu0 %v442
      %v1048 = vpop.f32.mrf.mxu0
      %v1049 = vadd.f32 0.0, %v1048
      %v1050 = vpop.f32.mrf.mxu0
      %1051 = vmatprep.mubr.f32.mxu0 0.0
      %1052 = vmatmul.mubr.f32.gmra.mxu0 %v950
      %v1053 = vpop.f32.mrf.mxu0
      %v1054 = vadd.f32 0.0, %v1053
      %v1055 = vpop.f32.mrf.mxu0
      %1056 = vdwg.mxu0
      %v1057 = vadd.f32 %v936, %v1019
      %v1058 = vadd.f32 %v937, %v1024
      %v1059 = vadd.f32 %v938, %v1029
      %v1060 = vadd.f32 %v939, %v1034
      %v1061 = vadd.f32 %v940, %v1039
      %v1062 = vadd.f32 %v941, %v1044
      %v1063 = vadd.f32 %v942, %v1049
      %v1064 = vadd.f32 %v943, %v1054
      %v1065 = vrot.slane %v379, 2
      %v1066 = vrot.slane %v380, 2
      %v1067 = vsel %vm670, %v1065, %v1066
      %s1068 = scalar_lea.vmem %s3, 40
      %v1069 = vld [vmem:[%s1068] sm:$0xff]
      %v1070 = vsel %vm427, %v1067, 0
      %1072 = vmatprep.subr.mxu0 0.0
      %1073 = vmatpush1.msra.mxu0 0.0
      %1074 = vmatprep.subr.mxu0 0.0
      %1075 = vmatpush1.msra.mxu0 0.0
      %1076 = vmatprep.subr.mxu0 0.0
      %1077 = vmatpush1.msra.mxu0 0.0
      %1078 = vmatprep.subr.mxu0 0.0
      %1079 = vmatpush1.msra.mxu0 0.0
      %1080 = vmatprep.subr.mxu0 0.0
      %1081 = vmatpush1.msra.mxu0 0.0
      %1082 = vmatprep.subr.mxu0 0.0
      %1083 = vmatpush1.msra.mxu0 0.0
      %1084 = vmatprep.subr.mxu0 0.0
      %1085 = vmatpush1.msra.mxu0 0.0
      %1086 = vmatprep.subr.mxu0 0.0
      %1087 = vmatpush1.msra.mxu0 0.0
      %1088 = vmatprep.subr.mxu0 0.0
      %1089 = vmatpush1.msra.mxu0 0.0
      %1090 = vmatprep.subr.mxu0 0.0
      %1091 = vmatpush1.msra.mxu0 0.0
      %1092 = vmatprep.subr.mxu0 0.0
      %1093 = vmatpush1.msra.mxu0 0.0
      %1094 = vmatprep.subr.mxu0 0.0
      %1095 = vmatpush1.msra.mxu0 0.0
      %1096 = vmatprep.subr.mxu0 0.0
      %1097 = vmatpush1.msra.mxu0 0.0
      %1098 = vmatprep.subr.mxu0 0.0
      %1099 = vmatpush1.msra.mxu0 0.0
      %1100 = vmatprep.subr.mxu0 0.0
      %1101 = vmatpush1.msra.mxu0 0.0
      %1102 = vmatprep.subr.mxu0 0.0
      %1103 = vmatpush1.msra.mxu0 %v1069
      %1104 = vmatprep.subr.mxu0 0.0
      %1105 = vmatpush2.msra.mxu0 0.0
      %1106 = vmatprep.subr.mxu0 0.0
      %1107 = vmatpush2.msra.mxu0 0.0
      %1108 = vmatprep.subr.mxu0 0.0
      %1109 = vmatpush2.msra.mxu0 0.0
      %1110 = vmatprep.subr.mxu0 0.0
      %1111 = vmatpush2.msra.mxu0 0.0
      %1112 = vmatprep.subr.mxu0 0.0
      %1113 = vmatpush2.msra.mxu0 0.0
      %1114 = vmatprep.subr.mxu0 0.0
      %1115 = vmatpush2.msra.mxu0 0.0
      %1116 = vmatprep.subr.mxu0 0.0
      %1117 = vmatpush2.msra.mxu0 0.0
      %1118 = vmatprep.subr.mxu0 0.0
      %1119 = vmatpush2.msra.mxu0 0.0
      %1120 = vmatprep.subr.mxu0 0.0
      %1121 = vmatpush2.msra.mxu0 0.0
      %1122 = vmatprep.subr.mxu0 0.0
      %1123 = vmatpush2.msra.mxu0 0.0
      %1124 = vmatprep.subr.mxu0 0.0
      %1125 = vmatpush2.msra.mxu0 0.0
      %1126 = vmatprep.subr.mxu0 0.0
      %1127 = vmatpush2.msra.mxu0 0.0
      %1128 = vmatprep.subr.mxu0 0.0
      %1129 = vmatpush2.msra.mxu0 0.0
      %1130 = vmatprep.subr.mxu0 0.0
      %1131 = vmatpush2.msra.mxu0 0.0
      %1132 = vmatprep.subr.mxu0 0.0
      %1133 = vmatpush2.msra.mxu0 0.0
      %1134 = vmatprep.subr.mxu0 0.0
      %1135 = vmatpush2.msra.mxu0 0.0
      %1136 = vmatprep.mubr.f32.mxu0 0.0
      %1137 = vmatmul.mubr.f32.gmra.mxu0 %v699
      %v1138 = vpop.f32.mrf.mxu0
      %v1139 = vadd.f32 0.0, %v1138
      %v1140 = vpop.f32.mrf.mxu0
      %1141 = vmatprep.mubr.f32.mxu0 0.0
      %1142 = vmatmul.mubr.f32.gmra.mxu0 %v701
      %v1143 = vpop.f32.mrf.mxu0
      %v1144 = vadd.f32 0.0, %v1143
      %v1145 = vpop.f32.mrf.mxu0
      %1146 = vmatprep.mubr.f32.mxu0 0.0
      %1147 = vmatmul.mubr.f32.gmra.mxu0 %v703
      %v1148 = vpop.f32.mrf.mxu0
      %v1149 = vadd.f32 0.0, %v1148
      %v1150 = vpop.f32.mrf.mxu0
      %1151 = vmatprep.mubr.f32.mxu0 0.0
      %1152 = vmatmul.mubr.f32.gmra.mxu0 %v705
      %v1153 = vpop.f32.mrf.mxu0
      %v1154 = vadd.f32 0.0, %v1153
      %v1155 = vpop.f32.mrf.mxu0
      %1156 = vmatprep.mubr.f32.mxu0 0.0
      %1157 = vmatmul.mubr.f32.gmra.mxu0 %v707
      %v1158 = vpop.f32.mrf.mxu0
      %v1159 = vadd.f32 0.0, %v1158
      %v1160 = vpop.f32.mrf.mxu0
      %1161 = vmatprep.mubr.f32.mxu0 0.0
      %1162 = vmatmul.mubr.f32.gmra.mxu0 %v709
      %v1163 = vpop.f32.mrf.mxu0
      %v1164 = vadd.f32 0.0, %v1163
      %v1165 = vpop.f32.mrf.mxu0
      %1166 = vmatprep.mubr.f32.mxu0 0.0
      %1167 = vmatmul.mubr.f32.gmra.mxu0 %v711
      %v1168 = vpop.f32.mrf.mxu0
      %v1169 = vadd.f32 0.0, %v1168
      %v1170 = vpop.f32.mrf.mxu0
      %1171 = vmatprep.mubr.f32.mxu0 0.0
      %1172 = vmatmul.mubr.f32.gmra.mxu0 %v1070
      %v1173 = vpop.f32.mrf.mxu0
      %v1174 = vadd.f32 0.0, %v1173
      %v1175 = vpop.f32.mrf.mxu0
      %1176 = vdwg.mxu0
      %v1177 = vadd.f32 %v1057, %v1139
      %v1178 = vadd.f32 %v1058, %v1144
      %v1179 = vadd.f32 %v1059, %v1149
      %v1180 = vadd.f32 %v1060, %v1154
      %v1181 = vadd.f32 %v1061, %v1159
      %v1182 = vadd.f32 %v1062, %v1164
      %v1183 = vadd.f32 %v1063, %v1169
      %v1184 = vadd.f32 %v1064, %v1174
      %s1185 = scalar_lea.vmem %s3, 48
      %v1186 = vld [vmem:[%s1185] sm:$0xff]
      %v1188 = vsel %vm427, %v381, 0
      %1190 = vmatprep.subr.mxu0 0.0
      %1191 = vmatpush1.msra.mxu0 0.0
      %1192 = vmatprep.subr.mxu0 0.0
      %1193 = vmatpush1.msra.mxu0 0.0
      %1194 = vmatprep.subr.mxu0 0.0
      %1195 = vmatpush1.msra.mxu0 0.0
      %1196 = vmatprep.subr.mxu0 0.0
      %1197 = vmatpush1.msra.mxu0 0.0
      %1198 = vmatprep.subr.mxu0 0.0
      %1199 = vmatpush1.msra.mxu0 0.0
      %1200 = vmatprep.subr.mxu0 0.0
      %1201 = vmatpush1.msra.mxu0 0.0
      %1202 = vmatprep.subr.mxu0 0.0
      %1203 = vmatpush1.msra.mxu0 0.0
      %1204 = vmatprep.subr.mxu0 0.0
      %1205 = vmatpush1.msra.mxu0 0.0
      %1206 = vmatprep.subr.mxu0 0.0
      %1207 = vmatpush1.msra.mxu0 0.0
      %1208 = vmatprep.subr.mxu0 0.0
      %1209 = vmatpush1.msra.mxu0 0.0
      %1210 = vmatprep.subr.mxu0 0.0
      %1211 = vmatpush1.msra.mxu0 0.0
      %1212 = vmatprep.subr.mxu0 0.0
      %1213 = vmatpush1.msra.mxu0 0.0
      %1214 = vmatprep.subr.mxu0 0.0
      %1215 = vmatpush1.msra.mxu0 0.0
      %1216 = vmatprep.subr.mxu0 0.0
      %1217 = vmatpush1.msra.mxu0 0.0
      %1218 = vmatprep.subr.mxu0 0.0
      %1219 = vmatpush1.msra.mxu0 0.0
      %1220 = vmatprep.subr.mxu0 0.0
      %1221 = vmatpush1.msra.mxu0 %v1186
      %1222 = vmatprep.subr.mxu0 0.0
      %1223 = vmatpush2.msra.mxu0 0.0
      %1224 = vmatprep.subr.mxu0 0.0
      %1225 = vmatpush2.msra.mxu0 0.0
      %1226 = vmatprep.subr.mxu0 0.0
      %1227 = vmatpush2.msra.mxu0 0.0
      %1228 = vmatprep.subr.mxu0 0.0
      %1229 = vmatpush2.msra.mxu0 0.0
      %1230 = vmatprep.subr.mxu0 0.0
      %1231 = vmatpush2.msra.mxu0 0.0
      %1232 = vmatprep.subr.mxu0 0.0
      %1233 = vmatpush2.msra.mxu0 0.0
      %1234 = vmatprep.subr.mxu0 0.0
      %1235 = vmatpush2.msra.mxu0 0.0
      %1236 = vmatprep.subr.mxu0 0.0
      %1237 = vmatpush2.msra.mxu0 0.0
      %1238 = vmatprep.subr.mxu0 0.0
      %1239 = vmatpush2.msra.mxu0 0.0
      %1240 = vmatprep.subr.mxu0 0.0
      %1241 = vmatpush2.msra.mxu0 0.0
      %1242 = vmatprep.subr.mxu0 0.0
      %1243 = vmatpush2.msra.mxu0 0.0
      %1244 = vmatprep.subr.mxu0 0.0
      %1245 = vmatpush2.msra.mxu0 0.0
      %1246 = vmatprep.subr.mxu0 0.0
      %1247 = vmatpush2.msra.mxu0 0.0
      %1248 = vmatprep.subr.mxu0 0.0
      %1249 = vmatpush2.msra.mxu0 0.0
      %1250 = vmatprep.subr.mxu0 0.0
      %1251 = vmatpush2.msra.mxu0 0.0
      %1252 = vmatprep.subr.mxu0 0.0
      %1253 = vmatpush2.msra.mxu0 0.0
      %1254 = vmatprep.mubr.f32.mxu0 0.0
      %1255 = vmatmul.mubr.f32.gmra.mxu0 %v553
      %v1256 = vpop.f32.mrf.mxu0
      %v1257 = vadd.f32 0.0, %v1256
      %v1258 = vpop.f32.mrf.mxu0
      %1259 = vmatprep.mubr.f32.mxu0 0.0
      %1260 = vmatmul.mubr.f32.gmra.mxu0 %v555
      %v1261 = vpop.f32.mrf.mxu0
      %v1262 = vadd.f32 0.0, %v1261
      %v1263 = vpop.f32.mrf.mxu0
      %1264 = vmatprep.mubr.f32.mxu0 0.0
      %1265 = vmatmul.mubr.f32.gmra.mxu0 %v557
      %v1266 = vpop.f32.mrf.mxu0
      %v1267 = vadd.f32 0.0, %v1266
      %v1268 = vpop.f32.mrf.mxu0
      %1269 = vmatprep.mubr.f32.mxu0 0.0
      %1270 = vmatmul.mubr.f32.gmra.mxu0 %v559
      %v1271 = vpop.f32.mrf.mxu0
      %v1272 = vadd.f32 0.0, %v1271
      %v1273 = vpop.f32.mrf.mxu0
      %1274 = vmatprep.mubr.f32.mxu0 0.0
      %1275 = vmatmul.mubr.f32.gmra.mxu0 %v561
      %v1276 = vpop.f32.mrf.mxu0
      %v1277 = vadd.f32 0.0, %v1276
      %v1278 = vpop.f32.mrf.mxu0
      %1279 = vmatprep.mubr.f32.mxu0 0.0
      %1280 = vmatmul.mubr.f32.gmra.mxu0 %v563
      %v1281 = vpop.f32.mrf.mxu0
      %v1282 = vadd.f32 0.0, %v1281
      %v1283 = vpop.f32.mrf.mxu0
      %1284 = vmatprep.mubr.f32.mxu0 0.0
      %1285 = vmatmul.mubr.f32.gmra.mxu0 %v829
      %v1286 = vpop.f32.mrf.mxu0
      %v1287 = vadd.f32 0.0, %v1286
      %v1288 = vpop.f32.mrf.mxu0
      %1289 = vmatprep.mubr.f32.mxu0 0.0
      %1290 = vmatmul.mubr.f32.gmra.mxu0 %v1188
      %v1291 = vpop.f32.mrf.mxu0
      %v1292 = vadd.f32 0.0, %v1291
      %v1293 = vpop.f32.mrf.mxu0
      %1294 = vdwg.mxu0
      %v1295 = vadd.f32 %v1177, %v1257
      %v1296 = vadd.f32 %v1178, %v1262
      %v1297 = vadd.f32 %v1179, %v1267
      %v1298 = vadd.f32 %v1180, %v1272
      %v1299 = vadd.f32 %v1181, %v1277
      %v1300 = vadd.f32 %v1182, %v1282
      %v1301 = vadd.f32 %v1183, %v1287
      %v1302 = vadd.f32 %v1184, %v1292
      %v1304 = vrot.slane %v381, 1
      %v1305 = vrot.slane %v382, 1
      %v1306 = vsel %vm400, %v1304, %v1305
      %s1307 = scalar_lea.vmem %s3, 56
      %v1308 = vld [vmem:[%s1307] sm:$0xff]
      %v1309 = vsel %vm427, %v1306, 0
      %1311 = vmatprep.subr.mxu0 0.0
      %1312 = vmatpush1.msra.mxu0 0.0
      %1313 = vmatprep.subr.mxu0 0.0
      %1314 = vmatpush1.msra.mxu0 0.0
      %1315 = vmatprep.subr.mxu0 0.0
      %1316 = vmatpush1.msra.mxu0 0.0
      %1317 = vmatprep.subr.mxu0 0.0
      %1318 = vmatpush1.msra.mxu0 0.0
      %1319 = vmatprep.subr.mxu0 0.0
      %1320 = vmatpush1.msra.mxu0 0.0
      %1321 = vmatprep.subr.mxu0 0.0
      %1322 = vmatpush1.msra.mxu0 0.0
      %1323 = vmatprep.subr.mxu0 0.0
      %1324 = vmatpush1.msra.mxu0 0.0
      %1325 = vmatprep.subr.mxu0 0.0
      %1326 = vmatpush1.msra.mxu0 0.0
      %1327 = vmatprep.subr.mxu0 0.0
      %1328 = vmatpush1.msra.mxu0 0.0
      %1329 = vmatprep.subr.mxu0 0.0
      %1330 = vmatpush1.msra.mxu0 0.0
      %1331 = vmatprep.subr.mxu0 0.0
      %1332 = vmatpush1.msra.mxu0 0.0
      %1333 = vmatprep.subr.mxu0 0.0
      %1334 = vmatpush1.msra.mxu0 0.0
      %1335 = vmatprep.subr.mxu0 0.0
      %1336 = vmatpush1.msra.mxu0 0.0
      %1337 = vmatprep.subr.mxu0 0.0
      %1338 = vmatpush1.msra.mxu0 0.0
      %1339 = vmatprep.subr.mxu0 0.0
      %1340 = vmatpush1.msra.mxu0 0.0
      %1341 = vmatprep.subr.mxu0 0.0
      %1342 = vmatpush1.msra.mxu0 %v1308
      %1343 = vmatprep.subr.mxu0 0.0
      %1344 = vmatpush2.msra.mxu0 0.0
      %1345 = vmatprep.subr.mxu0 0.0
      %1346 = vmatpush2.msra.mxu0 0.0
      %1347 = vmatprep.subr.mxu0 0.0
      %1348 = vmatpush2.msra.mxu0 0.0
      %1349 = vmatprep.subr.mxu0 0.0
      %1350 = vmatpush2.msra.mxu0 0.0
      %1351 = vmatprep.subr.mxu0 0.0
      %1352 = vmatpush2.msra.mxu0 0.0
      %1353 = vmatprep.subr.mxu0 0.0
      %1354 = vmatpush2.msra.mxu0 0.0
      %1355 = vmatprep.subr.mxu0 0.0
      %1356 = vmatpush2.msra.mxu0 0.0
      %1357 = vmatprep.subr.mxu0 0.0
      %1358 = vmatpush2.msra.mxu0 0.0
      %1359 = vmatprep.subr.mxu0 0.0
      %1360 = vmatpush2.msra.mxu0 0.0
      %1361 = vmatprep.subr.mxu0 0.0
      %1362 = vmatpush2.msra.mxu0 0.0
      %1363 = vmatprep.subr.mxu0 0.0
      %1364 = vmatpush2.msra.mxu0 0.0
      %1365 = vmatprep.subr.mxu0 0.0
      %1366 = vmatpush2.msra.mxu0 0.0
      %1367 = vmatprep.subr.mxu0 0.0
      %1368 = vmatpush2.msra.mxu0 0.0
      %1369 = vmatprep.subr.mxu0 0.0
      %1370 = vmatpush2.msra.mxu0 0.0
      %1371 = vmatprep.subr.mxu0 0.0
      %1372 = vmatpush2.msra.mxu0 0.0
      %1373 = vmatprep.subr.mxu0 0.0
      %1374 = vmatpush2.msra.mxu0 0.0
      %1375 = vmatprep.mubr.f32.mxu0 0.0
      %1376 = vmatmul.mubr.f32.gmra.mxu0 %v432
      %v1377 = vpop.f32.mrf.mxu0
      %v1378 = vadd.f32 0.0, %v1377
      %v1379 = vpop.f32.mrf.mxu0
      %1380 = vmatprep.mubr.f32.mxu0 0.0
      %1381 = vmatmul.mubr.f32.gmra.mxu0 %v434
      %v1382 = vpop.f32.mrf.mxu0
      %v1383 = vadd.f32 0.0, %v1382
      %v1384 = vpop.f32.mrf.mxu0
      %1385 = vmatprep.mubr.f32.mxu0 0.0
      %1386 = vmatmul.mubr.f32.gmra.mxu0 %v436
      %v1387 = vpop.f32.mrf.mxu0
      %v1388 = vadd.f32 0.0, %v1387
      %v1389 = vpop.f32.mrf.mxu0
      %1390 = vmatprep.mubr.f32.mxu0 0.0
      %1391 = vmatmul.mubr.f32.gmra.mxu0 %v438
      %v1392 = vpop.f32.mrf.mxu0
      %v1393 = vadd.f32 0.0, %v1392
      %v1394 = vpop.f32.mrf.mxu0
      %1395 = vmatprep.mubr.f32.mxu0 0.0
      %1396 = vmatmul.mubr.f32.gmra.mxu0 %v440
      %v1397 = vpop.f32.mrf.mxu0
      %v1398 = vadd.f32 0.0, %v1397
      %v1399 = vpop.f32.mrf.mxu0
      %1400 = vmatprep.mubr.f32.mxu0 0.0
      %1401 = vmatmul.mubr.f32.gmra.mxu0 %v442
      %v1402 = vpop.f32.mrf.mxu0
      %v1403 = vadd.f32 0.0, %v1402
      %v1404 = vpop.f32.mrf.mxu0
      %1405 = vmatprep.mubr.f32.mxu0 0.0
      %1406 = vmatmul.mubr.f32.gmra.mxu0 %v950
      %v1407 = vpop.f32.mrf.mxu0
      %v1408 = vadd.f32 0.0, %v1407
      %v1409 = vpop.f32.mrf.mxu0
      %1410 = vmatprep.mubr.f32.mxu0 0.0
      %1411 = vmatmul.mubr.f32.gmra.mxu0 %v1309
      %v1412 = vpop.f32.mrf.mxu0
      %v1413 = vadd.f32 0.0, %v1412
      %v1414 = vpop.f32.mrf.mxu0
      %1415 = vdwg.mxu0
      %v1416 = vadd.f32 %v1295, %v1378
      %v1417 = vadd.f32 %v1296, %v1383
      %v1418 = vadd.f32 %v1297, %v1388
      %v1419 = vadd.f32 %v1298, %v1393
      %v1420 = vadd.f32 %v1299, %v1398
      %v1421 = vadd.f32 %v1300, %v1403
      %v1422 = vadd.f32 %v1301, %v1408
      %v1423 = vadd.f32 %v1302, %v1413
      %v1424 = vrot.slane %v381, 2
      %v1425 = vrot.slane %v382, 2
      %v1426 = vsel %vm670, %v1424, %v1425
      %s1427 = scalar_lea.vmem %s3, 64
      %v1428 = vld [vmem:[%s1427] sm:$0xff]
      %v1429 = vsel %vm427, %v1426, 0
      %1431 = vmatprep.subr.mxu0 0.0
      %1432 = vmatpush1.msra.mxu0 0.0
      %1433 = vmatprep.subr.mxu0 0.0
      %1434 = vmatpush1.msra.mxu0 0.0
      %1435 = vmatprep.subr.mxu0 0.0
      %1436 = vmatpush1.msra.mxu0 0.0
      %1437 = vmatprep.subr.mxu0 0.0
      %1438 = vmatpush1.msra.mxu0 0.0
      %1439 = vmatprep.subr.mxu0 0.0
      %1440 = vmatpush1.msra.mxu0 0.0
      %1441 = vmatprep.subr.mxu0 0.0
      %1442 = vmatpush1.msra.mxu0 0.0
      %1443 = vmatprep.subr.mxu0 0.0
      %1444 = vmatpush1.msra.mxu0 0.0
      %1445 = vmatprep.subr.mxu0 0.0
      %1446 = vmatpush1.msra.mxu0 0.0
      %1447 = vmatprep.subr.mxu0 0.0
      %1448 = vmatpush1.msra.mxu0 0.0
      %1449 = vmatprep.subr.mxu0 0.0
      %1450 = vmatpush1.msra.mxu0 0.0
      %1451 = vmatprep.subr.mxu0 0.0
      %1452 = vmatpush1.msra.mxu0 0.0
      %1453 = vmatprep.subr.mxu0 0.0
      %1454 = vmatpush1.msra.mxu0 0.0
      %1455 = vmatprep.subr.mxu0 0.0
      %1456 = vmatpush1.msra.mxu0 0.0
      %1457 = vmatprep.subr.mxu0 0.0
      %1458 = vmatpush1.msra.mxu0 0.0
      %1459 = vmatprep.subr.mxu0 0.0
      %1460 = vmatpush1.msra.mxu0 0.0
      %1461 = vmatprep.subr.mxu0 0.0
      %1462 = vmatpush1.msra.mxu0 %v1428
      %1463 = vmatprep.subr.mxu0 0.0
      %1464 = vmatpush2.msra.mxu0 0.0
      %1465 = vmatprep.subr.mxu0 0.0
      %1466 = vmatpush2.msra.mxu0 0.0
      %1467 = vmatprep.subr.mxu0 0.0
      %1468 = vmatpush2.msra.mxu0 0.0
      %1469 = vmatprep.subr.mxu0 0.0
      %1470 = vmatpush2.msra.mxu0 0.0
      %1471 = vmatprep.subr.mxu0 0.0
      %1472 = vmatpush2.msra.mxu0 0.0
      %1473 = vmatprep.subr.mxu0 0.0
      %1474 = vmatpush2.msra.mxu0 0.0
      %1475 = vmatprep.subr.mxu0 0.0
      %1476 = vmatpush2.msra.mxu0 0.0
      %1477 = vmatprep.subr.mxu0 0.0
      %1478 = vmatpush2.msra.mxu0 0.0
      %1479 = vmatprep.subr.mxu0 0.0
      %1480 = vmatpush2.msra.mxu0 0.0
      %1481 = vmatprep.subr.mxu0 0.0
      %1482 = vmatpush2.msra.mxu0 0.0
      %1483 = vmatprep.subr.mxu0 0.0
      %1484 = vmatpush2.msra.mxu0 0.0
      %1485 = vmatprep.subr.mxu0 0.0
      %1486 = vmatpush2.msra.mxu0 0.0
      %1487 = vmatprep.subr.mxu0 0.0
      %1488 = vmatpush2.msra.mxu0 0.0
      %1489 = vmatprep.subr.mxu0 0.0
      %1490 = vmatpush2.msra.mxu0 0.0
      %1491 = vmatprep.subr.mxu0 0.0
      %1492 = vmatpush2.msra.mxu0 0.0
      %1493 = vmatprep.subr.mxu0 0.0
      %1494 = vmatpush2.msra.mxu0 0.0
      %1495 = vmatprep.mubr.f32.mxu0 0.0
      %1496 = vmatmul.mubr.f32.gmra.mxu0 %v701
      %v1497 = vpop.f32.mrf.mxu0
      %v1498 = vadd.f32 0.0, %v1497
      %v1499 = vpop.f32.mrf.mxu0
      %1500 = vmatprep.mubr.f32.mxu0 0.0
      %1501 = vmatmul.mubr.f32.gmra.mxu0 %v703
      %v1502 = vpop.f32.mrf.mxu0
      %v1503 = vadd.f32 0.0, %v1502
      %v1504 = vpop.f32.mrf.mxu0
      %1505 = vmatprep.mubr.f32.mxu0 0.0
      %1506 = vmatmul.mubr.f32.gmra.mxu0 %v705
      %v1507 = vpop.f32.mrf.mxu0
      %v1508 = vadd.f32 0.0, %v1507
      %v1509 = vpop.f32.mrf.mxu0
      %1510 = vmatprep.mubr.f32.mxu0 0.0
      %1511 = vmatmul.mubr.f32.gmra.mxu0 %v707
      %v1512 = vpop.f32.mrf.mxu0
      %v1513 = vadd.f32 0.0, %v1512
      %v1514 = vpop.f32.mrf.mxu0
      %1515 = vmatprep.mubr.f32.mxu0 0.0
      %1516 = vmatmul.mubr.f32.gmra.mxu0 %v709
      %v1517 = vpop.f32.mrf.mxu0
      %v1518 = vadd.f32 0.0, %v1517
      %v1519 = vpop.f32.mrf.mxu0
      %1520 = vmatprep.mubr.f32.mxu0 0.0
      %1521 = vmatmul.mubr.f32.gmra.mxu0 %v711
      %v1522 = vpop.f32.mrf.mxu0
      %v1523 = vadd.f32 0.0, %v1522
      %v1524 = vpop.f32.mrf.mxu0
      %1525 = vmatprep.mubr.f32.mxu0 0.0
      %1526 = vmatmul.mubr.f32.gmra.mxu0 %v1070
      %v1527 = vpop.f32.mrf.mxu0
      %v1528 = vadd.f32 0.0, %v1527
      %v1529 = vpop.f32.mrf.mxu0
      %1530 = vmatprep.mubr.f32.mxu0 0.0
      %1531 = vmatmul.mubr.f32.gmra.mxu0 %v1429
      %v1532 = vpop.f32.mrf.mxu0
      %v1533 = vadd.f32 0.0, %v1532
      %v1534 = vpop.f32.mrf.mxu0
      %1535 = vdwg.mxu0
      %v1536 = vadd.f32 %v1416, %v1498
      %v1537 = vadd.f32 %v1417, %v1503
      %v1538 = vadd.f32 %v1418, %v1508
      %v1539 = vadd.f32 %v1419, %v1513
      %v1540 = vadd.f32 %v1420, %v1518
      %v1541 = vadd.f32 %v1421, %v1523
      %v1542 = vadd.f32 %v1422, %v1528
      %v1543 = vadd.f32 %v1423, %v1533
      %v1544 = vld [vmem:[%s4] sm:$0x1]
      %v1546 = vlaneseq
      %v1547 = vshrl.u32 %v1546, 7
      %v1548 = vsub.s32 0, %v1547
      %v1549 = vrot.slane %v1544, %v1548
      %v1551 = vadd.f32 %v1536, %v1549
      %v1552 = vadd.f32 %v1537, %v1549
      %v1553 = vadd.f32 %v1538, %v1549
      %v1554 = vadd.f32 %v1539, %v1549
      %v1555 = vadd.f32 %v1540, %v1549
      %v1556 = vadd.f32 %v1541, %v1549
      %v1557 = vadd.f32 %v1542, %v1549
      %v1558 = vadd.f32 %v1543, %v1549
      %vm1559 = vcmp.gt.f32.partialorder %v1551, 0.0
      %vm1560 = vcmp.gt.f32.partialorder %v1552, 0.0
      %vm1561 = vcmp.gt.f32.partialorder %v1553, 0.0
      %vm1562 = vcmp.gt.f32.partialorder %v1554, 0.0
      %vm1563 = vcmp.gt.f32.partialorder %v1555, 0.0
      %vm1564 = vcmp.gt.f32.partialorder %v1556, 0.0
      %vm1565 = vcmp.gt.f32.partialorder %v1557, 0.0
      %vm1566 = vcmp.gt.f32.partialorder %v1558, 0.0
      %v1567 = vmul.f32 %v1551, 1.442695
      %v1568 = vpow.pop %v1567
      %v1569 = vmul.f32 %v1552, 1.442695
      %v1570 = vpow.pop %v1569
      %v1571 = vmul.f32 %v1553, 1.442695
      %v1572 = vpow.pop %v1571
      %v1573 = vmul.f32 %v1554, 1.442695
      %v1574 = vpow.pop %v1573
      %v1575 = vmul.f32 %v1555, 1.442695
      %v1576 = vpow.pop %v1575
      %v1577 = vmul.f32 %v1556, 1.442695
      %v1578 = vpow.pop %v1577
      %v1579 = vmul.f32 %v1557, 1.442695
      %v1580 = vpow.pop %v1579
      %v1581 = vmul.f32 %v1558, 1.442695
      %v1582 = vpow.pop %v1581
      %v1583 = vsub.f32 %v1568, 1.0
      %v1584 = vsub.f32 %v1570, 1.0
      %v1585 = vsub.f32 %v1572, 1.0
      %v1586 = vsub.f32 %v1574, 1.0
      %v1587 = vsub.f32 %v1576, 1.0
      %v1588 = vsub.f32 %v1578, 1.0
      %v1589 = vsub.f32 %v1580, 1.0
      %v1590 = vsub.f32 %v1582, 1.0
      %v1591 = vsel %vm1559, %v1551, %v1583
      %v1592 = vsel %vm1560, %v1552, %v1584
      %v1593 = vsel %vm1561, %v1553, %v1585
      %v1594 = vsel %vm1562, %v1554, %v1586
      %v1595 = vsel %vm1563, %v1555, %v1587
      %v1596 = vsel %vm1564, %v1556, %v1588
      %v1597 = vsel %vm1565, %v1557, %v1589
      %v1598 = vsel %vm1566, %v1558, %v1590
      %1599 = vst.msk [vmem:[%s273] sm:$0xff] %vm427, %v1591
      %1600 = vst.msk [vmem:[%s273 + $0x8] sm:$0xff] %vm427, %v1592
      %1601 = vst.msk [vmem:[%s273 + $0x10] sm:$0xff] %vm427, %v1593
      %1602 = vst.msk [vmem:[%s273 + $0x18] sm:$0xff] %vm427, %v1594
      %1603 = vst.msk [vmem:[%s273 + $0x20] sm:$0xff] %vm427, %v1595
      %1604 = vst.msk [vmem:[%s273 + $0x28] sm:$0xff] %vm427, %v1596
      %1605 = vst.msk [vmem:[%s273 + $0x30] sm:$0xff] %vm427, %v1597
      %1606 = vst.msk [vmem:[%s273 + $0x38] sm:$0xff] %vm427, %v1598
      %p1607 = scmp.eq.s32.totalorder %s19, 0
      // Predicated region
      $region41: #{encoder_block_forward.5} parent=39 // pred_check
        %p1608 = pneg %p1607
      $region42: #{encoder_block_forward.5} parent=39 // pred_check_branch
        %1610 = sbr.rel (%p1608) target = $region44
      $region43: #{encoder_block_forward.5} parent=39 // pred_region
        %vm1611 = vcmask 57344
        %1612 = vst.msk [vmem:[#allocation2] sm:$0x1] %vm1611, 0.0
        %1613 = vst.msk [vmem:[#allocation3] sm:$0x1] %vm1611, 0.0
      $region44: #{encoder_block_forward.5} parent=39 // pred_fallthru
        _
      %v1614 = vld [vmem:[#allocation2] sm:$0x1]
      %v1615 = vsel %vm427, %v1591, 0.0
      %v1616 = vsel %vm427, %v1592, 0.0
      %v1617 = vadd.f32 %v1615, %v1616
      %v1618 = vsel %vm427, %v1593, 0.0
      %v1619 = vadd.f32 %v1617, %v1618
      %v1620 = vsel %vm427, %v1594, 0.0
      %v1621 = vadd.f32 %v1619, %v1620
      %v1622 = vsel %vm427, %v1595, 0.0
      %v1623 = vadd.f32 %v1621, %v1622
      %v1624 = vsel %vm427, %v1596, 0.0
      %v1625 = vadd.f32 %v1623, %v1624
      %v1626 = vsel %vm427, %v1597, 0.0
      %v1627 = vadd.f32 %v1625, %v1626
      %v1628 = vsel %vm427, %v1598, 0.0
      %v1629 = vadd.f32 %v1627, %v1628
      %v1630 = vrot.slane %v1629, 4
      %v1631 = vadd.f32 %v1629, %v1630
      %v1632 = vrot.slane %v1631, 2
      %v1633 = vadd.f32 %v1631, %v1632
      %v1634 = vrot.slane %v1633, 1
      %v1635 = vadd.f32 %v1633, %v1634
      %v1636 = vadd.f32 %v1614, %v1635
      %vm1637 = vcmask 57344
      %1638 = vst.msk [vmem:[#allocation2] sm:$0x1] %vm1637, %v1636
      %v1639 = vld [vmem:[#allocation3] sm:$0x1]
      %v1640 = vmul.f32 %v1591, %v1591
      %v1641 = vmul.f32 %v1592, %v1592
      %v1642 = vmul.f32 %v1593, %v1593
      %v1643 = vmul.f32 %v1594, %v1594
      %v1644 = vmul.f32 %v1595, %v1595
      %v1645 = vmul.f32 %v1596, %v1596
      %v1646 = vmul.f32 %v1597, %v1597
      %v1647 = vmul.f32 %v1598, %v1598
      %v1648 = vsel %vm427, %v1640, 0.0
      %v1649 = vsel %vm427, %v1641, 0.0
      %v1650 = vadd.f32 %v1648, %v1649
      %v1651 = vsel %vm427, %v1642, 0.0
      %v1652 = vadd.f32 %v1650, %v1651
      %v1653 = vsel %vm427, %v1643, 0.0
      %v1654 = vadd.f32 %v1652, %v1653
      %v1655 = vsel %vm427, %v1644, 0.0
      %v1656 = vadd.f32 %v1654, %v1655
      %v1657 = vsel %vm427, %v1645, 0.0
      %v1658 = vadd.f32 %v1656, %v1657
      %v1659 = vsel %vm427, %v1646, 0.0
      %v1660 = vadd.f32 %v1658, %v1659
      %v1661 = vsel %vm427, %v1647, 0.0
      %v1662 = vadd.f32 %v1660, %v1661
      %v1663 = vrot.slane %v1662, 4
      %v1664 = vadd.f32 %v1662, %v1663
      %v1665 = vrot.slane %v1664, 2
      %v1666 = vadd.f32 %v1664, %v1665
      %v1667 = vrot.slane %v1666, 1
      %v1668 = vadd.f32 %v1666, %v1667
      %v1669 = vadd.f32 %v1639, %v1668
      %1670 = vst.msk [vmem:[#allocation3] sm:$0x1] %vm1637, %v1669
      %v1671 = vld [vmem:[#allocation2] sm:$0x1]
      %1672 = vst.msk [vmem:[%s6] sm:$0x1] %vm1637, %v1671
      %v1673 = vld [vmem:[#allocation3] sm:$0x1]
      %1674 = vst.msk [vmem:[%s7] sm:$0x1] %vm1637, %v1673
      %p1675 = scmp.lt.s32.totalorder %s19, 1
      %s1676 = scalar_select %p1675, %s19, 1
      %s1677 = smul.addr %s1676, 8
      %s1678 = smul.addr %s1677, 8
      %s1679 = scalar_lea.vmem %s5, %s1678
      // Predicated region
      $region45: #{encoder_block_forward.5} parent=39 // pred_check
        %p1680 = pneg %p147
      $region46: #{encoder_block_forward.5} parent=39 // pred_check_branch
        %1682 = sbr.rel (%p1680) target = $region48
      $region47: #{encoder_block_forward.5} parent=39 // pred_region
        _
      $region48: #{encoder_block_forward.5} parent=39 // pred_fallthru
        _
      // Predicated region
      $region49: #{encoder_block_forward.5} parent=39 // pred_check
        %p1683 = pneg %p168
      $region50: #{encoder_block_forward.5} parent=39 // pred_check_branch
        %1685 = sbr.rel (%p1683) target = $region52
      $region51: #{encoder_block_forward.5} parent=39 // pred_region
        _
      $region52: #{encoder_block_forward.5} parent=39 // pred_fallthru
        _
      // Predicated region
      $region53: #{encoder_block_forward.5} parent=39 // pred_check
        %p1686 = pneg %p189
      $region54: #{encoder_block_forward.5} parent=39 // pred_check_branch
        %1688 = sbr.rel (%p1686) target = $region56
      $region55: #{encoder_block_forward.5} parent=39 // pred_region
        _
      $region56: #{encoder_block_forward.5} parent=39 // pred_fallthru
        _
      // Predicated region
      $region57: #{encoder_block_forward.5} parent=39 // pred_check
        %p1689 = pneg %p168
      $region58: #{encoder_block_forward.5} parent=39 // pred_check_branch
        %1691 = sbr.rel (%p1689) target = $region60
      $region59: #{encoder_block_forward.5} parent=39 // pred_region
        _
      $region60: #{encoder_block_forward.5} parent=39 // pred_fallthru
        _
      // Predicated region
      $region61: #{encoder_block_forward.5} parent=39 // pred_check
        %p1692 = pneg %p189
      $region62: #{encoder_block_forward.5} parent=39 // pred_check_branch
        %1694 = sbr.rel (%p1692) target = $region64
      $region63: #{encoder_block_forward.5} parent=39 // pred_region
        _
      $region64: #{encoder_block_forward.5} parent=39 // pred_fallthru
        _
    $region40: #{encoder_block_forward.5} parent=5 // pred_fallthru
      _
    %p1695 = scmp.le.s32.totalorder 2, %s14
    // Predicated region
    $region65: #{encoder_block_forward.5} parent=5 // pred_check
      %p1696 = pneg %p1695
    $region66: #{encoder_block_forward.5} parent=5 // pred_check_branch
      %1698 = sbr.rel (%p1696) target = $region68
    $region67: #{encoder_block_forward.5} parent=5 // pred_region
      %s1699 = ssub.s32 %s14, 2
      // Predicated region
      $region69: #{encoder_block_forward.5} parent=67 // pred_check
        %p1700 = pneg %p153
      $region70: #{encoder_block_forward.5} parent=67 // pred_check_branch
        %1702 = sbr.rel (%p1700) target = $region72
      $region71: #{encoder_block_forward.5} parent=67 // pred_region
        %p1703 = scmp.lt.s32.totalorder %s20, 1
        %s1704 = scalar_select %p1703, %s20, 1
        %s1705 = smul.addr %s1704, 8
        %s1706 = smul.addr %s1705, 8
        %s1707 = scalar_lea.vmem %s5, %s1706
      $region72: #{encoder_block_forward.5} parent=67 // pred_fallthru
        _
    $region68: #{encoder_block_forward.5} parent=5 // pred_fallthru
      _
  $region6: #{encoder_block_forward.5} parent=0 // loop_footer
    %s18 = sadd.s32 1, %s14
  $region7: #{encoder_block_forward.5} parent=0 // loop_footer_branch
    %13 = sbr.rel target = $region3
  $region8: #{encoder_block_forward.5} parent=0 // loop_exit
    _

</llo_original>
